<compile_context>
chip_gen: v7x
topology: tpu7x:2x2x1
jax: 0.10.0
libtpu: 0.0.40
codegen_flags: <defaults>
</compile_context>

<pallas_src>
import functools

import jax
import jax.numpy as jnp
from jax.experimental import pallas as pl
from jax.experimental.pallas import tpu as pltpu


_VMEM_LIMIT = 32 * 1024 * 1024   # explicit; tiles sized far below every generation's VMEM


def _leaky_relu(x, slope=0.2):
    return jnp.where(x > 0, x, slope * x)


def _pick_tile_b(batch: int) -> int:
    # Largest multiple-of-128 divisor of B, capped at 512 (HBM-bound => big tiles).
    for t in (512, 384, 256, 128):
        if batch % t == 0:
            return t
    return batch


# ---------- pass 1: corrupt -> encoder Linear -> accumulate BN batch stats ----------
def make_encode_kernel(tile_b: int, d_out: int):
    rows8 = tile_b // 8

    def kernel(x_ref, keep_ref, w_enc_ref, b_enc_ref, h_ref, sum_ref, sq_ref):
        i = pl.program_id(1)                               # inner (reduction) axis

        x = x_ref[...]                                     # [tile_b, D_in] f32
        # Corruption: where(rand > zero_ratio, x, 0), mask streamed as bf16 {0,1}.
        x = jnp.where(keep_ref[...] > 0, x, jnp.zeros_like(x))

        # Encoder Linear: weight pre-transposed to [D_in, D_out] and pre-cast to bf16
        # wrapper-side -> no in-kernel transpose; bf16 MXU matmul, f32 accumulation.
        h = jnp.dot(x.astype(jnp.bfloat16), w_enc_ref[...],
                    preferred_element_type=jnp.float32)
        h = h + b_enc_ref[...]                             # [tile_b, D_out] f32
        h_ref[...] = h.astype(h_ref.dtype)                 # bf16 store: halves h HBM bytes

        # BatchNorm statistics: accumulate into resident (8, D_out) output blocks
        # (one block per parallel split -> safe under v7x megacore sharding).
        @pl.when(i == 0)
        def _():
            sum_ref[...] = jnp.zeros_like(sum_ref)
            sq_ref[...] = jnp.zeros_like(sq_ref)

        hp = h.reshape(rows8, 8, d_out)                    # full-sublane partial reduction
        sum_ref[...] += jnp.sum(hp, axis=0)
        sq_ref[...] += jnp.sum(hp * hp, axis=0)

    return kernel


# ---------- pass 2: BN finalize + affine -> LeakyReLU -> decoder Linear -> LeakyReLU ----------
def make_decode_kernel(batch: int, eps: float):
    inv_b = 1.0 / float(batch)

    def kernel(h_ref, sum_ref, sq_ref, gamma_ref, beta_ref, w_dec_ref, b_dec_ref, y_ref):
        # BN finalize folded in-kernel (tiny [1, D_out] math; rsqrt -> EUP slot, rest VPU slack).
        mean = jnp.sum(sum_ref[...], axis=0, keepdims=True) * inv_b
        ex2 = jnp.sum(sq_ref[...], axis=0, keepdims=True) * inv_b
        var = jnp.maximum(ex2 - mean * mean, 0.0)          # clamp: cancellation guard
        inv_std = jax.lax.rsqrt(var + eps)
        scale = gamma_ref[...] * inv_std
        shift = beta_ref[...] - mean * scale

        h = h_ref[...].astype(jnp.float32) * scale + shift # BN affine in f32
        h = _leaky_relu(h)
        y = jnp.dot(h.astype(jnp.bfloat16), w_dec_ref[...],
                    preferred_element_type=jnp.float32)
        y = y + b_dec_ref[...]
        y_ref[...] = _leaky_relu(y).astype(y_ref.dtype)

    return kernel


@functools.partial(jax.jit, static_argnames=("tile_b", "eps"))
def layer_forward(x, keep_mask, params, *, tile_b=None, eps=1e-5):
    """x: [B, D_in] f32, keep_mask: [B, D_in] bf16 (1.0 = keep, 0.0 = zero). Returns [B, D_in] f32."""
    B, D_in = x.shape
    D_out = params["w_enc"].shape[0]
    if tile_b is None:
        tile_b = _pick_tile_b(B)
    assert B % tile_b == 0 and tile_b % 8 == 0, "batch must be divisible by the batch tile (tile % 8 == 0)"

    nb = B // tile_b
    num_splits = 2 if (nb % 2 == 0 and nb >= 2) else 1      # v7x: split pass 1 over both TCs
    nb_in = nb // num_splits

    # Pre-transpose (x @ W.T == x @ W_t) and pre-cast matmul weights to bf16 (wrapper-side, free).
    w_enc_t = params["w_enc"].T.astype(jnp.bfloat16)         # [D_in, D_out]
    w_dec_t = params["w_dec"].T.astype(jnp.bfloat16)         # [D_out, D_in]
    b_enc = params["b_enc"].reshape(1, D_out).astype(jnp.float32)
    b_dec = params["b_dec"].reshape(1, D_in).astype(jnp.float32)
    gamma = params["gamma"].reshape(1, D_out).astype(jnp.float32)
    beta = params["beta"].reshape(1, D_out).astype(jnp.float32)

    # ---- pass 1: corruption + encoder + BN-stat accumulation ----
    h, s_sum, s_sq = pl.pallas_call(
        make_encode_kernel(tile_b, D_out),
        out_shape=(
            jax.ShapeDtypeStruct((B, D_out), jnp.bfloat16),            # pre-BN encoder output
            jax.ShapeDtypeStruct((num_splits * 8, D_out), jnp.float32),  # per-split sum(h) partials
            jax.ShapeDtypeStruct((num_splits * 8, D_out), jnp.float32),  # per-split sum(h*h) partials
        ),
        grid=(num_splits, nb_in),
        in_specs=[
            pl.BlockSpec((tile_b, D_in), lambda c, i: (c * nb_in + i, 0)),   # x tile
            pl.BlockSpec((tile_b, D_in), lambda c, i: (c * nb_in + i, 0)),   # keep-mask tile
            pl.BlockSpec((D_in, D_out), lambda c, i: (0, 0)),                # w_enc_t (resident)
            pl.BlockSpec((1, D_out), lambda c, i: (0, 0)),                   # b_enc (resident)
        ],
        out_specs=[
            pl.BlockSpec((tile_b, D_out), lambda c, i: (c * nb_in + i, 0)),  # h tile
            pl.BlockSpec((8, D_out), lambda c, i: (c, 0)),                   # stats (resident per split)
            pl.BlockSpec((8, D_out), lambda c, i: (c, 0)),
        ],
        compiler_params=pltpu.CompilerParams(
            dimension_semantics=("parallel", "arbitrary"),   # v7x: splits across TCs; inner axis reduces
            vmem_limit_bytes=_VMEM_LIMIT,
        ),
    )(x, keep_mask, w_enc_t, b_enc)

    # ---- pass 2: BN finalize + affine + LeakyReLU + decoder (independent batch tiles) ----
    y = pl.pallas_call(
        make_decode_kernel(B, eps),
        out_shape=jax.ShapeDtypeStruct((B, D_in), jnp.float32),
        grid=(nb,),
        in_specs=[
            pl.BlockSpec((tile_b, D_out), lambda i: (i, 0)),                 # h tile (bf16)
            pl.BlockSpec((num_splits * 8, D_out), lambda i: (0, 0)),         # sum partials (resident)
            pl.BlockSpec((num_splits * 8, D_out), lambda i: (0, 0)),         # sumsq partials (resident)
            pl.BlockSpec((1, D_out), lambda i: (0, 0)),                      # gamma
            pl.BlockSpec((1, D_out), lambda i: (0, 0)),                      # beta
            pl.BlockSpec((D_out, D_in), lambda i: (0, 0)),                   # w_dec_t (resident)
            pl.BlockSpec((1, D_in), lambda i: (0, 0)),                       # b_dec
        ],
        out_specs=pl.BlockSpec((tile_b, D_in), lambda i: (i, 0)),
        compiler_params=pltpu.CompilerParams(
            dimension_semantics=("parallel",),
            vmem_limit_bytes=_VMEM_LIMIT,
        ),
    )(h, s_sum, s_sq, gamma, beta, w_dec_t, b_dec)
    return y


def init_params(key, input_dim, output_dim):
    k1, k2, k3, k4 = jax.random.split(key, 4)
    # PyTorch nn.Linear default init: U(-1/sqrt(fan_in), 1/sqrt(fan_in))
    lim_enc = 1.0 / jnp.sqrt(input_dim)
    lim_dec = 1.0 / jnp.sqrt(output_dim)
    return {
        "w_enc": jax.random.uniform(k1, (output_dim, input_dim), jnp.float32, -lim_enc, lim_enc),
        "b_enc": jax.random.uniform(k2, (output_dim,), jnp.float32, -lim_enc, lim_enc),
        "gamma": jnp.ones((output_dim,), jnp.float32),   # BatchNorm1d weight init
        "beta": jnp.zeros((output_dim,), jnp.float32),   # BatchNorm1d bias init
        "w_dec": jax.random.uniform(k3, (input_dim, output_dim), jnp.float32, -lim_dec, lim_dec),
        "b_dec": jax.random.uniform(k4, (input_dim,), jnp.float32, -lim_dec, lim_dec),
    }


def ref_forward(x, keep_mask, p, eps=1e-5):
    # Pure-JAX reference mirroring the kernel's precision choices (bf16 matmuls, bf16 h,
    # f32 batch stats with clamped E[h^2]-E[h]^2 variance).
    xc = jnp.where(keep_mask > 0, x, jnp.zeros_like(x))
    h = jnp.dot(xc.astype(jnp.bfloat16), p["w_enc"].T.astype(jnp.bfloat16),
                preferred_element_type=jnp.float32) + p["b_enc"]
    inv_b = 1.0 / x.shape[0]
    mean = h.sum(0) * inv_b
    var = jnp.maximum((h * h).sum(0) * inv_b - mean * mean, 0.0)
    inv_std = jax.lax.rsqrt(var + eps)
    scale = p["gamma"] * inv_std
    shift = p["beta"] - mean * scale
    hq = h.astype(jnp.bfloat16).astype(jnp.float32)        # kernel stores h as bf16
    hn = hq * scale + shift
    hn = jnp.where(hn > 0, hn, 0.2 * hn)
    y = jnp.dot(hn.astype(jnp.bfloat16), p["w_dec"].T.astype(jnp.bfloat16),
                preferred_element_type=jnp.float32) + p["b_dec"]
    return jnp.where(y > 0, y, 0.2 * y)


if __name__ == "__main__":
    key = jax.random.PRNGKey(0)
    k_param, k_x, k_mask = jax.random.split(key, 3)

    # Lane-dense shapes: feature dims multiples of 128; batch large enough to exercise
    # multi-tile stats accumulation and the 2-way parallel split of pass 1.
    B, D_in, D_out = 2048, 256, 128
    zero_ratio = 0.2

    params = init_params(k_param, D_in, D_out)
    x = jax.random.normal(k_x, (B, D_in), jnp.float32)
    # Corruption mask (torch: rand > zero_ratio keeps the element), shared with the reference.
    keep_mask = (jax.random.uniform(k_mask, (B, D_in)) > zero_ratio).astype(jnp.bfloat16)

    y = layer_forward(x, keep_mask, params)
    jax.block_until_ready(y)
    assert y.shape == (B, D_in)
    assert bool(jnp.all(jnp.isfinite(y)))

    y_ref = ref_forward(x, keep_mask, params)
    assert jnp.allclose(y, y_ref, atol=2e-2, rtol=2e-2), float(jnp.max(jnp.abs(y - y_ref)))

    print("KERNEL_OK")
</pallas_src>

<mosaic_0001>
module attributes {stable_mosaic.version = 11 : i64} {
  func.func @kernel(%arg0: i32, %arg1: memref<512x128xbf16, #tpu.memory_space<vmem>>, %arg2: memref<16x128xf32, #tpu.memory_space<vmem>>, %arg3: memref<16x128xf32, #tpu.memory_space<vmem>>, %arg4: memref<1x128xf32, #tpu.memory_space<vmem>>, %arg5: memref<1x128xf32, #tpu.memory_space<vmem>>, %arg6: memref<128x256xbf16, #tpu.memory_space<vmem>>, %arg7: memref<1x256xf32, #tpu.memory_space<vmem>>, %arg8: memref<512x256xf32, #tpu.memory_space<vmem>>) attributes {dimension_semantics = [#tpu.dimension_semantics<parallel>], iteration_bounds = array<i64: 4>, scalar_prefetch = 0 : i64, scratch_operands = 0 : i64, tpu.core_type = #tpu.core_type<tc>, window_params = [{transform_indices = @transform_0, window_bounds = array<i64: 512, 128>}, {pipeline_mode = #tpu.pipeline_mode<synchronous>, transform_indices = @transform_1, window_bounds = array<i64: 16, 128>}, {pipeline_mode = #tpu.pipeline_mode<synchronous>, transform_indices = @transform_2, window_bounds = array<i64: 16, 128>}, {pipeline_mode = #tpu.pipeline_mode<synchronous>, transform_indices = @transform_3, window_bounds = array<i64: 1, 128>}, {pipeline_mode = #tpu.pipeline_mode<synchronous>, transform_indices = @transform_4, window_bounds = array<i64: 1, 128>}, {pipeline_mode = #tpu.pipeline_mode<synchronous>, transform_indices = @transform_5, window_bounds = array<i64: 128, 256>}, {pipeline_mode = #tpu.pipeline_mode<synchronous>, transform_indices = @transform_6, window_bounds = array<i64: 1, 256>}, {transform_indices = @transform_7, window_bounds = array<i64: 512, 256>}]} {
    %c0 = arith.constant 0 : index
    %c0_0 = arith.constant 0 : index
    %0 = vector.load %arg2[%c0, %c0_0] : memref<16x128xf32, #tpu.memory_space<vmem>>, vector<16x128xf32>
    %cst = arith.constant dense<0.000000e+00> : vector<128xf32>
    %1 = vector.multi_reduction <add>, %0, %cst [0] : vector<16x128xf32> to vector<128xf32>
    %2 = vector.shape_cast %1 : vector<128xf32> to vector<1x128xf32>
    %cst_1 = arith.constant 4.8828125E-4 : f32
    %3 = vector.broadcast %cst_1 : f32 to vector<1x128xf32>
    %4 = arith.mulf %2, %3 : vector<1x128xf32>
    %c0_2 = arith.constant 0 : index
    %c0_3 = arith.constant 0 : index
    %5 = vector.load %arg3[%c0_2, %c0_3] : memref<16x128xf32, #tpu.memory_space<vmem>>, vector<16x128xf32>
    %cst_4 = arith.constant dense<0.000000e+00> : vector<128xf32>
    %6 = vector.multi_reduction <add>, %5, %cst_4 [0] : vector<16x128xf32> to vector<128xf32>
    %7 = vector.shape_cast %6 : vector<128xf32> to vector<1x128xf32>
    %cst_5 = arith.constant 4.8828125E-4 : f32
    %8 = vector.broadcast %cst_5 : f32 to vector<1x128xf32>
    %9 = arith.mulf %7, %8 : vector<1x128xf32>
    %10 = arith.mulf %4, %4 : vector<1x128xf32>
    %11 = arith.subf %9, %10 : vector<1x128xf32>
    %cst_6 = arith.constant 0.000000e+00 : f32
    %12 = vector.broadcast %cst_6 : f32 to vector<1x128xf32>
    %13 = arith.maximumf %11, %12 : vector<1x128xf32>
    %cst_7 = arith.constant 9.99999974E-6 : f32
    %14 = vector.broadcast %cst_7 : f32 to vector<1x128xf32>
    %15 = arith.addf %13, %14 : vector<1x128xf32>
    %16 = math.rsqrt %15 : vector<1x128xf32>
    %c0_8 = arith.constant 0 : index
    %c0_9 = arith.constant 0 : index
    %17 = vector.load %arg4[%c0_8, %c0_9] : memref<1x128xf32, #tpu.memory_space<vmem>>, vector<1x128xf32>
    %18 = arith.mulf %17, %16 : vector<1x128xf32>
    %c0_10 = arith.constant 0 : index
    %c0_11 = arith.constant 0 : index
    %19 = vector.load %arg5[%c0_10, %c0_11] : memref<1x128xf32, #tpu.memory_space<vmem>>, vector<1x128xf32>
    %20 = arith.mulf %4, %18 : vector<1x128xf32>
    %21 = arith.subf %19, %20 : vector<1x128xf32>
    %c0_12 = arith.constant 0 : index
    %c0_13 = arith.constant 0 : index
    %22 = vector.load %arg1[%c0_12, %c0_13] : memref<512x128xbf16, #tpu.memory_space<vmem>>, vector<512x128xbf16>
    %23 = arith.extf %22 : vector<512x128xbf16> to vector<512x128xf32>
    %24 = vector.broadcast %18 : vector<1x128xf32> to vector<512x128xf32>
    %25 = arith.mulf %23, %24 : vector<512x128xf32>
    %26 = vector.broadcast %21 : vector<1x128xf32> to vector<512x128xf32>
    %27 = arith.addf %25, %26 : vector<512x128xf32>
    %cst_14 = arith.constant 0.000000e+00 : f32
    %28 = vector.broadcast %cst_14 : f32 to vector<512x128xf32>
    %29 = arith.cmpf ogt, %27, %28 : vector<512x128xf32>
    %cst_15 = arith.constant 2.000000e-01 : f32
    %30 = vector.broadcast %cst_15 : f32 to vector<512x128xf32>
    %31 = arith.mulf %30, %27 : vector<512x128xf32>
    %32 = arith.select %29, %27, %31 : vector<512x128xi1>, vector<512x128xf32>
    %33 = arith.truncf %32 : vector<512x128xf32> to vector<512x128xbf16>
    %c0_16 = arith.constant 0 : index
    %c0_17 = arith.constant 0 : index
    %34 = vector.load %arg6[%c0_16, %c0_17] : memref<128x256xbf16, #tpu.memory_space<vmem>>, vector<128x256xbf16>
    %cst_18 = arith.constant dense<0.000000e+00> : vector<512x256xf32>
    %35 = tpu.matmul %33, %34, %cst_18 {dimension_numbers = #tpu.dot_dimension_numbers<[1], [0], [0], [1], [0, 0, 1, 1], [], []>} : vector<512x128xbf16>, vector<128x256xbf16>, vector<512x256xf32> -> vector<512x256xf32>
    %c0_19 = arith.constant 0 : index
    %c0_20 = arith.constant 0 : index
    %36 = vector.load %arg7[%c0_19, %c0_20] : memref<1x256xf32, #tpu.memory_space<vmem>>, vector<1x256xf32>
    %37 = vector.broadcast %36 : vector<1x256xf32> to vector<512x256xf32>
    %38 = arith.addf %35, %37 : vector<512x256xf32>
    %cst_21 = arith.constant 0.000000e+00 : f32
    %39 = vector.broadcast %cst_21 : f32 to vector<512x256xf32>
    %40 = arith.cmpf ogt, %38, %39 : vector<512x256xf32>
    %cst_22 = arith.constant 2.000000e-01 : f32
    %41 = vector.broadcast %cst_22 : f32 to vector<512x256xf32>
    %42 = arith.mulf %41, %38 : vector<512x256xf32>
    %43 = arith.select %40, %38, %42 : vector<512x256xi1>, vector<512x256xf32>
    %c0_23 = arith.constant 0 : index
    %c0_24 = arith.constant 0 : index
    %44 = vector.load %arg8[%c0_23, %c0_24] : memref<512x256xf32, #tpu.memory_space<vmem>>, vector<512x256xf32>
    tpu.vector_store %arg8[%c0_23, %c0_24], %43 {strides = array<i32>} : memref<512x256xf32, #tpu.memory_space<vmem>>, vector<512x256xf32>,
    return
  }
  func.func @transform_0(%arg0: i32) -> (i32, i32) {
    %c0_i32 = arith.constant 0 : i32
    %c0_i32_0 = arith.constant 0 : i32
    return %arg0, %c0_i32 : i32, i32
  }
  func.func @transform_1(%arg0: i32) -> (i32, i32) {
    %c0_i32 = arith.constant 0 : i32
    %c0_i32_0 = arith.constant 0 : i32
    %c0_i32_1 = arith.constant 0 : i32
    return %c0_i32, %c0_i32_0 : i32, i32
  }
  func.func @transform_2(%arg0: i32) -> (i32, i32) {
    %c0_i32 = arith.constant 0 : i32
    %c0_i32_0 = arith.constant 0 : i32
    %c0_i32_1 = arith.constant 0 : i32
    return %c0_i32, %c0_i32_0 : i32, i32
  }
  func.func @transform_3(%arg0: i32) -> (i32, i32) {
    %c0_i32 = arith.constant 0 : i32
    %c0_i32_0 = arith.constant 0 : i32
    %c0_i32_1 = arith.constant 0 : i32
    return %c0_i32, %c0_i32_0 : i32, i32
  }
  func.func @transform_4(%arg0: i32) -> (i32, i32) {
    %c0_i32 = arith.constant 0 : i32
    %c0_i32_0 = arith.constant 0 : i32
    %c0_i32_1 = arith.constant 0 : i32
    return %c0_i32, %c0_i32_0 : i32, i32
  }
  func.func @transform_5(%arg0: i32) -> (i32, i32) {
    %c0_i32 = arith.constant 0 : i32
    %c0_i32_0 = arith.constant 0 : i32
    %c0_i32_1 = arith.constant 0 : i32
    return %c0_i32, %c0_i32_0 : i32, i32
  }
  func.func @transform_6(%arg0: i32) -> (i32, i32) {
    %c0_i32 = arith.constant 0 : i32
    %c0_i32_0 = arith.constant 0 : i32
    %c0_i32_1 = arith.constant 0 : i32
    return %c0_i32, %c0_i32_0 : i32, i32
  }
  func.func @transform_7(%arg0: i32) -> (i32, i32) {
    %c0_i32 = arith.constant 0 : i32
    %c0_i32_0 = arith.constant 0 : i32
    return %arg0, %c0_i32 : i32, i32
  }
}

module attributes {stable_mosaic.version = 11 : i64} {
  func.func @kernel(%arg0: i32, %arg1: i32, %arg2: memref<512x256xf32, #tpu.memory_space<vmem>>, %arg3: memref<512x256xbf16, #tpu.memory_space<vmem>>, %arg4: memref<256x128xbf16, #tpu.memory_space<vmem>>, %arg5: memref<1x128xf32, #tpu.memory_space<vmem>>, %arg6: memref<512x128xbf16, #tpu.memory_space<vmem>>, %arg7: memref<8x128xf32, #tpu.memory_space<vmem>>, %arg8: memref<8x128xf32, #tpu.memory_space<vmem>>) attributes {dimension_semantics = [#tpu.dimension_semantics<parallel>, #tpu.dimension_semantics<arbitrary>], iteration_bounds = array<i64: 2, 2>, scalar_prefetch = 0 : i64, scratch_operands = 0 : i64, tpu.core_type = #tpu.core_type<tc>, window_params = [{transform_indices = @transform_0, window_bounds = array<i64: 512, 256>}, {transform_indices = @transform_1, window_bounds = array<i64: 512, 256>}, {pipeline_mode = #tpu.pipeline_mode<synchronous>, transform_indices = @transform_2, window_bounds = array<i64: 256, 128>}, {pipeline_mode = #tpu.pipeline_mode<synchronous>, transform_indices = @transform_3, window_bounds = array<i64: 1, 128>}, {transform_indices = @transform_4, window_bounds = array<i64: 512, 128>}, {transform_indices = @transform_5, window_bounds = array<i64: 8, 128>}, {transform_indices = @transform_6, window_bounds = array<i64: 8, 128>}]} {
    %c0 = arith.constant 0 : index
    %c0_0 = arith.constant 0 : index
    %0 = vector.load %arg2[%c0, %c0_0] : memref<512x256xf32, #tpu.memory_space<vmem>>, vector<512x256xf32>
    %c0_1 = arith.constant 0 : index
    %c0_2 = arith.constant 0 : index
    %1 = vector.load %arg3[%c0_1, %c0_2] : memref<512x256xbf16, #tpu.memory_space<vmem>>, vector<512x256xbf16>
    %cst = arith.constant 0.000000e+00 : bf16
    %2 = vector.broadcast %cst : bf16 to vector<512x256xbf16>
    %3 = arith.cmpf ogt, %1, %2 : vector<512x256xbf16>
    %cst_3 = arith.constant 0.000000e+00 : f32
    %4 = vector.broadcast %cst_3 : f32 to vector<512x256xf32>
    %5 = arith.select %3, %0, %4 : vector<512x256xi1>, vector<512x256xf32>
    %6 = arith.truncf %5 : vector<512x256xf32> to vector<512x256xbf16>
    %c0_4 = arith.constant 0 : index
    %c0_5 = arith.constant 0 : index
    %7 = vector.load %arg4[%c0_4, %c0_5] : memref<256x128xbf16, #tpu.memory_space<vmem>>, vector<256x128xbf16>
    %cst_6 = arith.constant dense<0.000000e+00> : vector<512x128xf32>
    %8 = tpu.matmul %6, %7, %cst_6 {dimension_numbers = #tpu.dot_dimension_numbers<[1], [0], [0], [1], [0, 0, 1, 1], [], []>} : vector<512x256xbf16>, vector<256x128xbf16>, vector<512x128xf32> -> vector<512x128xf32>
    %c0_7 = arith.constant 0 : index
    %c0_8 = arith.constant 0 : index
    %9 = vector.load %arg5[%c0_7, %c0_8] : memref<1x128xf32, #tpu.memory_space<vmem>>, vector<1x128xf32>
    %10 = vector.broadcast %9 : vector<1x128xf32> to vector<512x128xf32>
    %11 = arith.addf %8, %10 : vector<512x128xf32>
    %12 = arith.truncf %11 : vector<512x128xf32> to vector<512x128xbf16>
    %c0_9 = arith.constant 0 : index
    %c0_10 = arith.constant 0 : index
    %13 = vector.load %arg6[%c0_9, %c0_10] : memref<512x128xbf16, #tpu.memory_space<vmem>>, vector<512x128xbf16>
    tpu.vector_store %arg6[%c0_9, %c0_10], %12 {strides = array<i32>} : memref<512x128xbf16, #tpu.memory_space<vmem>>, vector<512x128xbf16>,
    %c0_i32 = arith.constant 0 : i32
    %14 = arith.cmpi eq, %arg1, %c0_i32 : i32
    %15 = arith.extui %14 : i1 to i32
    %c0_i32_11 = arith.constant 0 : i32
    %16 = arith.cmpi ne, %15, %c0_i32_11 : i32
    scf.if %16 {
      %cst_22 = arith.constant 0.000000e+00 : f32
      %27 = vector.broadcast %cst_22 : f32 to vector<8x128xf32>
      %c0_23 = arith.constant 0 : index
      %c0_24 = arith.constant 0 : index
      %28 = vector.load %arg7[%c0_23, %c0_24] : memref<8x128xf32, #tpu.memory_space<vmem>>, vector<8x128xf32>
      tpu.vector_store %arg7[%c0_23, %c0_24], %27 {strides = array<i32>} : memref<8x128xf32, #tpu.memory_space<vmem>>, vector<8x128xf32>,
      %cst_25 = arith.constant 0.000000e+00 : f32
      %29 = vector.broadcast %cst_25 : f32 to vector<8x128xf32>
      %c0_26 = arith.constant 0 : index
      %c0_27 = arith.constant 0 : index
      %30 = vector.load %arg8[%c0_26, %c0_27] : memref<8x128xf32, #tpu.memory_space<vmem>>, vector<8x128xf32>
      tpu.vector_store %arg8[%c0_26, %c0_27], %29 {strides = array<i32>} : memref<8x128xf32, #tpu.memory_space<vmem>>, vector<8x128xf32>,
    } else {
    }
    %17 = vector.shape_cast %11 : vector<512x128xf32> to vector<64x8x128xf32>
    %c0_12 = arith.constant 0 : index
    %c0_13 = arith.constant 0 : index
    %18 = vector.load %arg7[%c0_12, %c0_13] : memref<8x128xf32, #tpu.memory_space<vmem>>, vector<8x128xf32>
    %cst_14 = arith.constant dense<0.000000e+00> : vector<8x128xf32>
    %19 = vector.multi_reduction <add>, %17, %cst_14 [0] : vector<64x8x128xf32> to vector<8x128xf32>
    %20 = arith.addf %18, %19 : vector<8x128xf32>
    %c0_15 = arith.constant 0 : index
    %c0_16 = arith.constant 0 : index
    %21 = vector.load %arg7[%c0_15, %c0_16] : memref<8x128xf32, #tpu.memory_space<vmem>>, vector<8x128xf32>
    tpu.vector_store %arg7[%c0_15, %c0_16], %20 {strides = array<i32>} : memref<8x128xf32, #tpu.memory_space<vmem>>, vector<8x128xf32>,
    %c0_17 = arith.constant 0 : index
    %c0_18 = arith.constant 0 : index
    %22 = vector.load %arg8[%c0_17, %c0_18] : memref<8x128xf32, #tpu.memory_space<vmem>>, vector<8x128xf32>
    %23 = arith.mulf %17, %17 : vector<64x8x128xf32>
    %cst_19 = arith.constant dense<0.000000e+00> : vector<8x128xf32>
    %24 = vector.multi_reduction <add>, %23, %cst_19 [0] : vector<64x8x128xf32> to vector<8x128xf32>
    %25 = arith.addf %22, %24 : vector<8x128xf32>
    %c0_20 = arith.constant 0 : index
    %c0_21 = arith.constant 0 : index
    %26 = vector.load %arg8[%c0_20, %c0_21] : memref<8x128xf32, #tpu.memory_space<vmem>>, vector<8x128xf32>
    tpu.vector_store %arg8[%c0_20, %c0_21], %25 {strides = array<i32>} : memref<8x128xf32, #tpu.memory_space<vmem>>, vector<8x128xf32>,
    return
  }
  func.func @transform_0(%arg0: i32, %arg1: i32) -> (i32, i32) {
    %c2_i32 = arith.constant 2 : i32
    %0 = arith.muli %arg0, %c2_i32 : i32
    %1 = arith.addi %0, %arg1 : i32
    %c0_i32 = arith.constant 0 : i32
    %c0_i32_0 = arith.constant 0 : i32
    return %1, %c0_i32 : i32, i32
  }
  func.func @transform_1(%arg0: i32, %arg1: i32) -> (i32, i32) {
    %c2_i32 = arith.constant 2 : i32
    %0 = arith.muli %arg0, %c2_i32 : i32
    %1 = arith.addi %0, %arg1 : i32
    %c0_i32 = arith.constant 0 : i32
    %c0_i32_0 = arith.constant 0 : i32
    return %1, %c0_i32 : i32, i32
  }
  func.func @transform_2(%arg0: i32, %arg1: i32) -> (i32, i32) {
    %c0_i32 = arith.constant 0 : i32
    %c0_i32_0 = arith.constant 0 : i32
    %c0_i32_1 = arith.constant 0 : i32
    return %c0_i32, %c0_i32_0 : i32, i32
  }
  func.func @transform_3(%arg0: i32, %arg1: i32) -> (i32, i32) {
    %c0_i32 = arith.constant 0 : i32
    %c0_i32_0 = arith.constant 0 : i32
    %c0_i32_1 = arith.constant 0 : i32
    return %c0_i32, %c0_i32_0 : i32, i32
  }
  func.func @transform_4(%arg0: i32, %arg1: i32) -> (i32, i32) {
    %c2_i32 = arith.constant 2 : i32
    %0 = arith.muli %arg0, %c2_i32 : i32
    %1 = arith.addi %0, %arg1 : i32
    %c0_i32 = arith.constant 0 : i32
    %c0_i32_0 = arith.constant 0 : i32
    return %1, %c0_i32 : i32, i32
  }
  func.func @transform_5(%arg0: i32, %arg1: i32) -> (i32, i32) {
    %c0_i32 = arith.constant 0 : i32
    %c0_i32_0 = arith.constant 0 : i32
    return %arg0, %c0_i32 : i32, i32
  }
  func.func @transform_6(%arg0: i32, %arg1: i32) -> (i32, i32) {
    %c0_i32 = arith.constant 0 : i32
    %c0_i32_0 = arith.constant 0 : i32
    return %arg0, %c0_i32 : i32, i32
  }
}

</mosaic_0001>

<llo_original>
// kernel: layer_forward.3
$region0: #{layer_forward.3}
  #allocation0 [shape = 'u32[]', space=smem, size = 0x4, offset = 0x4, fixed_abs, tag = 'smem constant byte address 0x4 - core index']
  #allocation1 [shape = 'u32[144,128]{1,0:T(1,128)}', space=vmem, size = 0x12000, scoped, tag = 'internal scratch']
  %s0 = inlined_call_operand.vmem [shape: bf16[2048,128], index: 0, kind: input, shape index: {}]
  %s1 = inlined_call_operand.vmem [shape: f32[16,128], index: 1, kind: input, shape index: {}]
  %s2 = inlined_call_operand.vmem [shape: f32[16,128], index: 2, kind: input, shape index: {}]
  %s3 = inlined_call_operand.vmem [shape: f32[1,128], index: 3, kind: input, shape index: {}]
  %s4 = inlined_call_operand.vmem [shape: f32[1,128], index: 4, kind: input, shape index: {}]
  %s5 = inlined_call_operand.vmem [shape: bf16[128,256], index: 5, kind: input, shape index: {}]
  %s6 = inlined_call_operand.vmem [shape: f32[1,256], index: 6, kind: input, shape index: {}]
  %s7 = inlined_call_operand.hbm [shape: f32[2048,256], index: 7, kind: output, shape index: {}]
  %s8 = sld [smem:[#allocation0]]
  $region61: #{layer_forward.3} parent=0
    _
  %s10 = ssub.s32 1, %s8
  %s11 = scalar_select 0, %s10, %s8
  $region1: #{layer_forward.3} parent=0
    #allocation2 [shape = 'u8[1048576]{0}', space=vmem, size = 0x100000, scoped, tag = 'output window, operand 0']
    #allocation3 [shape = 's32[2]{0}', space=sflag, size = 0x8, scoped, tag = 'scoped memory for layer_forward.3']
    %12 = vsyncpa [#allocation3], 0
    %s13 = scalar_lea.sflag [#allocation3], 1
    %14 = vsyncpa %s13, 0
    loop: start=0, step=1, limit=6
    $region2: #{layer_forward.3} parent=1 // loop_pre_header
      _
    $region3: #{layer_forward.3} parent=1 // loop_header
      %s16 = sphi 0, %s20
      %p17 = scmp.ge.s32.totalorder %s16, 6
      %s26 = sphi 0, %s28
      %s29 = sphi 0, %s26
      %s30 = sphi 0, %s29
      %s46 = sphi 0, %s30
      %s50 = sphi 0, %s50
      %s52 = sphi 0, %s50
      %s53 = sphi 0, %s52
      %s67 = sphi 0, %s53
      %s71 = sphi 0, %s71
      %s73 = sphi 0, %s71
      %s74 = sphi 0, %s73
      %s88 = sphi 0, %s74
      %s92 = sphi 0, %s92
      %s94 = sphi 0, %s92
      %s95 = sphi 0, %s94
      %s109 = sphi 0, %s95
      %s113 = sphi 0, %s113
      %s115 = sphi 0, %s113
      %s116 = sphi 0, %s115
      %s130 = sphi 0, %s116
      %s134 = sphi 0, %s134
      %s136 = sphi 0, %s134
      %s137 = sphi 0, %s136
      %s151 = sphi 0, %s137
      %s155 = sphi 0, %s155
      %s157 = sphi 0, %s155
      %s158 = sphi 0, %s157
      %s172 = sphi 0, %s158
      %s178 = sphi 0, %s180
      %s181 = sphi 0, %s178
      %s182 = sphi 0, %s181
      %s198 = sphi 0, %s182
    $region4: #{layer_forward.3} parent=1 // loop_header_branch
      %19 = sbr.rel (%p17) target = $region8
    $region5: #{layer_forward.3} parent=1 // loop_body
      %s21 = ssub.s32 %s16, 1
      %s22 = ssub.s32 %s16, 2
      %s23 = sadd.s32 %s16, 1
      %s24 = ssub.s32 %s16, %s23
      %p25 = scmp.eq.s32.totalorder %s24, 0
      %s27 = sadd.s32 %s26, 1
      %s28 = scalar_select %p25, %s26, %s27
      %p31 = pneg %p25
      %p32 = scmp.eq.s32.totalorder %s16, 3
      %p33 = por %p31, %p32
      %p34 = scmp.ne.s32.totalorder %s26, %s29
      %p35 = scmp.eq.s32.totalorder %s16, 0
      %p36 = por %p34, %p35
      %p37 = scmp.ne.s32.totalorder %s26, %s29
      %p38 = scmp.eq.s32.totalorder %s21, 3
      %p39 = por %p37, %p38
      %p40 = scmp.ne.s32.totalorder %s29, %s30
      %p41 = scmp.eq.s32.totalorder %s21, 0
      %p42 = por %p40, %p41
      %p43 = scmp.ne.s32.totalorder %s29, %s30
      %p44 = scmp.eq.s32.totalorder %s22, 3
      %p45 = por %p43, %p44
      %p47 = scmp.ne.s32.totalorder %s30, %s46
      %p48 = scmp.eq.s32.totalorder %s22, 0
      %p49 = por %p47, %p48
      %s51 = sadd.s32 %s50, 1
      %p54 = scmp.eq.s32.totalorder %s16, 3
      %p55 = scmp.ne.s32.totalorder %s50, %s52
      %p56 = scmp.eq.s32.totalorder %s16, 0
      %p57 = por %p55, %p56
      %p58 = scmp.ne.s32.totalorder %s50, %s52
      %p59 = scmp.eq.s32.totalorder %s21, 3
      %p60 = por %p58, %p59
      %p61 = scmp.ne.s32.totalorder %s52, %s53
      %p62 = scmp.eq.s32.totalorder %s21, 0
      %p63 = por %p61, %p62
      %p64 = scmp.ne.s32.totalorder %s52, %s53
      %p65 = scmp.eq.s32.totalorder %s22, 3
      %p66 = por %p64, %p65
      %p68 = scmp.ne.s32.totalorder %s53, %s67
      %p69 = scmp.eq.s32.totalorder %s22, 0
      %p70 = por %p68, %p69
      %s72 = sadd.s32 %s71, 1
      %p75 = scmp.eq.s32.totalorder %s16, 3
      %p76 = scmp.ne.s32.totalorder %s71, %s73
      %p77 = scmp.eq.s32.totalorder %s16, 0
      %p78 = por %p76, %p77
      %p79 = scmp.ne.s32.totalorder %s71, %s73
      %p80 = scmp.eq.s32.totalorder %s21, 3
      %p81 = por %p79, %p80
      %p82 = scmp.ne.s32.totalorder %s73, %s74
      %p83 = scmp.eq.s32.totalorder %s21, 0
      %p84 = por %p82, %p83
      %p85 = scmp.ne.s32.totalorder %s73, %s74
      %p86 = scmp.eq.s32.totalorder %s22, 3
      %p87 = por %p85, %p86
      %p89 = scmp.ne.s32.totalorder %s74, %s88
      %p90 = scmp.eq.s32.totalorder %s22, 0
      %p91 = por %p89, %p90
      %s93 = sadd.s32 %s92, 1
      %p96 = scmp.eq.s32.totalorder %s16, 3
      %p97 = scmp.ne.s32.totalorder %s92, %s94
      %p98 = scmp.eq.s32.totalorder %s16, 0
      %p99 = por %p97, %p98
      %p100 = scmp.ne.s32.totalorder %s92, %s94
      %p101 = scmp.eq.s32.totalorder %s21, 3
      %p102 = por %p100, %p101
      %p103 = scmp.ne.s32.totalorder %s94, %s95
      %p104 = scmp.eq.s32.totalorder %s21, 0
      %p105 = por %p103, %p104
      %p106 = scmp.ne.s32.totalorder %s94, %s95
      %p107 = scmp.eq.s32.totalorder %s22, 3
      %p108 = por %p106, %p107
      %p110 = scmp.ne.s32.totalorder %s95, %s109
      %p111 = scmp.eq.s32.totalorder %s22, 0
      %p112 = por %p110, %p111
      %s114 = sadd.s32 %s113, 1
      %p117 = scmp.eq.s32.totalorder %s16, 3
      %p118 = scmp.ne.s32.totalorder %s113, %s115
      %p119 = scmp.eq.s32.totalorder %s16, 0
      %p120 = por %p118, %p119
      %p121 = scmp.ne.s32.totalorder %s113, %s115
      %p122 = scmp.eq.s32.totalorder %s21, 3
      %p123 = por %p121, %p122
      %p124 = scmp.ne.s32.totalorder %s115, %s116
      %p125 = scmp.eq.s32.totalorder %s21, 0
      %p126 = por %p124, %p125
      %p127 = scmp.ne.s32.totalorder %s115, %s116
      %p128 = scmp.eq.s32.totalorder %s22, 3
      %p129 = por %p127, %p128
      %p131 = scmp.ne.s32.totalorder %s116, %s130
      %p132 = scmp.eq.s32.totalorder %s22, 0
      %p133 = por %p131, %p132
      %s135 = sadd.s32 %s134, 1
      %p138 = scmp.eq.s32.totalorder %s16, 3
      %p139 = scmp.ne.s32.totalorder %s134, %s136
      %p140 = scmp.eq.s32.totalorder %s16, 0
      %p141 = por %p139, %p140
      %p142 = scmp.ne.s32.totalorder %s134, %s136
      %p143 = scmp.eq.s32.totalorder %s21, 3
      %p144 = por %p142, %p143
      %p145 = scmp.ne.s32.totalorder %s136, %s137
      %p146 = scmp.eq.s32.totalorder %s21, 0
      %p147 = por %p145, %p146
      %p148 = scmp.ne.s32.totalorder %s136, %s137
      %p149 = scmp.eq.s32.totalorder %s22, 3
      %p150 = por %p148, %p149
      %p152 = scmp.ne.s32.totalorder %s137, %s151
      %p153 = scmp.eq.s32.totalorder %s22, 0
      %p154 = por %p152, %p153
      %s156 = sadd.s32 %s155, 1
      %p159 = scmp.eq.s32.totalorder %s16, 3
      %p160 = scmp.ne.s32.totalorder %s155, %s157
      %p161 = scmp.eq.s32.totalorder %s16, 0
      %p162 = por %p160, %p161
      %p163 = scmp.ne.s32.totalorder %s155, %s157
      %p164 = scmp.eq.s32.totalorder %s21, 3
      %p165 = por %p163, %p164
      %p166 = scmp.ne.s32.totalorder %s157, %s158
      %p167 = scmp.eq.s32.totalorder %s21, 0
      %p168 = por %p166, %p167
      %p169 = scmp.ne.s32.totalorder %s157, %s158
      %p170 = scmp.eq.s32.totalorder %s22, 3
      %p171 = por %p169, %p170
      %p173 = scmp.ne.s32.totalorder %s158, %s172
      %p174 = scmp.eq.s32.totalorder %s22, 0
      %p175 = por %p173, %p174
      %s176 = ssub.s32 %s16, %s23
      %p177 = scmp.eq.s32.totalorder %s176, 0
      %s179 = sadd.s32 %s178, 1
      %s180 = scalar_select %p177, %s178, %s179
      %p183 = pneg %p177
      %p184 = scmp.eq.s32.totalorder %s16, 3
      %p185 = por %p183, %p184
      %p186 = scmp.ne.s32.totalorder %s178, %s181
      %p187 = scmp.eq.s32.totalorder %s16, 0
      %p188 = por %p186, %p187
      %p189 = scmp.ne.s32.totalorder %s178, %s181
      %p190 = scmp.eq.s32.totalorder %s21, 3
      %p191 = por %p189, %p190
      %p192 = scmp.ne.s32.totalorder %s181, %s182
      %p193 = scmp.eq.s32.totalorder %s21, 0
      %p194 = por %p192, %p193
      %p195 = scmp.ne.s32.totalorder %s181, %s182
      %p196 = scmp.eq.s32.totalorder %s22, 3
      %p197 = por %p195, %p196
      %p199 = scmp.ne.s32.totalorder %s182, %s198
      %p200 = scmp.eq.s32.totalorder %s22, 0
      %p201 = por %p199, %p200
      %p202 = scmp.le.s32.totalorder 1, %s16
      %p203 = scmp.lt.s32.totalorder %s16, 5
      %p204 = pnand %p202, %p203
      %p205 = pneg %p204
      // Predicated region
      $region9: #{layer_forward.3} parent=5 // pred_check
        _
      $region10: #{layer_forward.3} parent=5 // pred_check_branch
        %207 = sbr.rel (%p204) target = $region12
      $region11: #{layer_forward.3} parent=5 // pred_region
        %s208 = ssub.s32 %s16, 1
        // Predicated region
        $region13: #{layer_forward.3} parent=11 // pred_check
          %p209 = pneg %p63
        $region14: #{layer_forward.3} parent=11 // pred_check_branch
          %211 = sbr.rel (%p209) target = $region16
        $region15: #{layer_forward.3} parent=11 // pred_region
          _
        $region16: #{layer_forward.3} parent=11 // pred_fallthru
          _
        // Predicated region
        $region17: #{layer_forward.3} parent=11 // pred_check
          %p212 = pneg %p84
        $region18: #{layer_forward.3} parent=11 // pred_check_branch
          %214 = sbr.rel (%p212) target = $region20
        $region19: #{layer_forward.3} parent=11 // pred_region
          _
        $region20: #{layer_forward.3} parent=11 // pred_fallthru
          _
        // Predicated region
        $region21: #{layer_forward.3} parent=11 // pred_check
          %p215 = pneg %p105
        $region22: #{layer_forward.3} parent=11 // pred_check_branch
          %217 = sbr.rel (%p215) target = $region24
        $region23: #{layer_forward.3} parent=11 // pred_region
          _
        $region24: #{layer_forward.3} parent=11 // pred_fallthru
          _
        // Predicated region
        $region25: #{layer_forward.3} parent=11 // pred_check
          %p218 = pneg %p126
        $region26: #{layer_forward.3} parent=11 // pred_check_branch
          %220 = sbr.rel (%p218) target = $region28
        $region27: #{layer_forward.3} parent=11 // pred_region
          _
        $region28: #{layer_forward.3} parent=11 // pred_fallthru
          _
        // Predicated region
        $region29: #{layer_forward.3} parent=11 // pred_check
          %p221 = pneg %p147
        $region30: #{layer_forward.3} parent=11 // pred_check_branch
          %223 = sbr.rel (%p221) target = $region32
        $region31: #{layer_forward.3} parent=11 // pred_region
          _
        $region32: #{layer_forward.3} parent=11 // pred_fallthru
          _
        // Predicated region
        $region33: #{layer_forward.3} parent=11 // pred_check
          %p224 = pneg %p168
        $region34: #{layer_forward.3} parent=11 // pred_check_branch
          %226 = sbr.rel (%p224) target = $region36
        $region35: #{layer_forward.3} parent=11 // pred_region
          _
        $region36: #{layer_forward.3} parent=11 // pred_fallthru
          _
      $region12: #{layer_forward.3} parent=5 // pred_fallthru
        _
      %p227 = scmp.lt.s32.totalorder %s16, 4
      // Predicated region
      $region37: #{layer_forward.3} parent=5 // pred_check
        %p228 = pneg %p227
      $region38: #{layer_forward.3} parent=5 // pred_check_branch
        %230 = sbr.rel (%p228) target = $region40
      $region39: #{layer_forward.3} parent=5 // pred_region
        // Predicated region
        $region41: #{layer_forward.3} parent=39 // pred_check
          %p231 = pneg %p36
        $region42: #{layer_forward.3} parent=39 // pred_check_branch
          %233 = sbr.rel (%p231) target = $region44
        $region43: #{layer_forward.3} parent=39 // pred_region
          %s234 = smul.u32 64, %s16
          %p235 = scmp.lt.s32.totalorder %s234, 255
          %s236 = scalar_select %p235, %s234, 255
          %s237 = smul.addr %s236, 4
          %s238 = scalar_lea.vmem %s0, %s237
          %s239 = smul.u32 64, %s16
        $region44: #{layer_forward.3} parent=39 // pred_fallthru
          _
      $region40: #{layer_forward.3} parent=5 // pred_fallthru
        _
      %p240 = scmp.le.s32.totalorder 1, %s16
      %p241 = scmp.lt.s32.totalorder %s16, 5
      %p242 = pnand %p240, %p241
      %p243 = pneg %p242
      // Predicated region
      $region45: #{layer_forward.3} parent=5 // pred_check
        _
      $region46: #{layer_forward.3} parent=5 // pred_check_branch
        %245 = sbr.rel (%p242) target = $region48
      $region47: #{layer_forward.3} parent=5 // pred_region
        %s246 = ssub.s32 %s16, 1
        %s247 = smul.u32 64, %s21
        %p248 = scmp.lt.s32.totalorder %s247, 255
        %s249 = scalar_select %p248, %s247, 255
        %s250 = smul.addr %s249, 4
        %s251 = scalar_lea.vmem %s0, %s250
        %p252 = pneg %p42
        %p253 = pneg %p39
        %p254 = pneg %p63
        %p255 = pneg %p60
        %p256 = pneg %p84
        %p257 = pneg %p81
        %p258 = pneg %p105
        %p259 = pneg %p102
        %p260 = pneg %p126
        %p261 = pneg %p123
        %p262 = pneg %p147
        %p263 = pneg %p144
        %p264 = pneg %p168
        %p265 = pneg %p165
        %p266 = pneg %p194
        %p267 = pneg %p191
        %s268 = sand.u32 %s181, 1
        %s269 = scalar_lea.sflag [#allocation3], %s268
        %s270 = sand.u32 %s181, 1
        %s271 = smul.addr %s270, 1024
        %s272 = scalar_lea.vmem [#allocation2], %s271
        %s273 = smul.u32 64, %s21
        %p274 = scmp.lt.s32.totalorder %s273, 255
        %s275 = scalar_select %p274, %s273, 255
        %s276 = smul.addr %s275, 4
        %s277 = scalar_lea.vmem %s0, %s276
        %s278 = smul.u32 64, %s21
        %s279 = smul.u32 64, %s21
        %v281 = vld [vmem:[%s1] sm:$0xff]
        %v282 = vld [vmem:[%s1 + $0x8] sm:$0xff]
        %v283 = vadd.f32 %v281, %v282
        %v284 = vrot.slane %v283, 4
        %v285 = vadd.f32 %v283, %v284
        %v286 = vrot.slane %v285, 2
        %v287 = vadd.f32 %v285, %v286
        %v288 = vrot.slane %v287, 1
        %v289 = vadd.f32 %v287, %v288
        %v290 = vmul.f32 %v289, 0.00048828125
        %v291 = vld [vmem:[%s2] sm:$0xff]
        %v292 = vld [vmem:[%s2 + $0x8] sm:$0xff]
        %v293 = vadd.f32 %v291, %v292
        %v294 = vrot.slane %v293, 4
        %v295 = vadd.f32 %v293, %v294
        %v296 = vrot.slane %v295, 2
        %v297 = vadd.f32 %v295, %v296
        %v298 = vrot.slane %v297, 1
        %v299 = vadd.f32 %v297, %v298
        %v300 = vmul.f32 %v299, 0.00048828125
        %v301 = vmul.f32 %v290, %v290
        %v302 = vsub.f32 %v300, %v301
        %v303 = vmax.f32 %v302, 0.0
        %v304 = vadd.f32 %v303, 1e-05
        %v305 = vrsqrt.pop %v304
        %v306 = vld [vmem:[%s3] sm:$0x1]
        %v307 = vmul.f32 %v306, %v305
        %v308 = vld [vmem:[%s4] sm:$0x1]
        %v309 = vmul.f32 %v290, %v307
        %v310 = vsub.f32 %v308, %v309
        %v311 = vld [vmem:[%s277] sm:$0xf]
        %v312 = vld [vmem:[%s277 + $0x4] sm:$0xf]
        %v313 = vld [vmem:[%s277 + $0x8] sm:$0xf]
        %v314 = vld [vmem:[%s277 + $0xc] sm:$0xf]
        %v315 = vld [vmem:[%s277 + $0x10] sm:$0xf]
        %v316 = vld [vmem:[%s277 + $0x14] sm:$0xf]
        %v317 = vld [vmem:[%s277 + $0x18] sm:$0xf]
        %v318 = vld [vmem:[%s277 + $0x1c] sm:$0xf]
        %v319 = vld [vmem:[%s277 + $0x20] sm:$0xf]
        %v320 = vld [vmem:[%s277 + $0x24] sm:$0xf]
        %v321 = vld [vmem:[%s277 + $0x28] sm:$0xf]
        %v322 = vld [vmem:[%s277 + $0x2c] sm:$0xf]
        %v323 = vld [vmem:[%s277 + $0x30] sm:$0xf]
        %v324 = vld [vmem:[%s277 + $0x34] sm:$0xf]
        %v325 = vld [vmem:[%s277 + $0x38] sm:$0xf]
        %v326 = vld [vmem:[%s277 + $0x3c] sm:$0xf]
        %v327 = vld [vmem:[%s277 + $0x40] sm:$0xf]
        %v328 = vld [vmem:[%s277 + $0x44] sm:$0xf]
        %v329 = vld [vmem:[%s277 + $0x48] sm:$0xf]
        %v330 = vld [vmem:[%s277 + $0x4c] sm:$0xf]
        %v331 = vld [vmem:[%s277 + $0x50] sm:$0xf]
        %v332 = vld [vmem:[%s277 + $0x54] sm:$0xf]
        %v333 = vld [vmem:[%s277 + $0x58] sm:$0xf]
        %v334 = vld [vmem:[%s277 + $0x5c] sm:$0xf]
        %v335 = vld [vmem:[%s277 + $0x60] sm:$0xf]
        %v336 = vld [vmem:[%s277 + $0x64] sm:$0xf]
        %v337 = vld [vmem:[%s277 + $0x68] sm:$0xf]
        %v338 = vld [vmem:[%s277 + $0x6c] sm:$0xf]
        %v339 = vld [vmem:[%s277 + $0x70] sm:$0xf]
        %v340 = vld [vmem:[%s277 + $0x74] sm:$0xf]
        %v341 = vld [vmem:[%s277 + $0x78] sm:$0xf]
        %v342 = vld [vmem:[%s277 + $0x7c] sm:$0xf]
        %v343 = vld [vmem:[%s277 + $0x80] sm:$0xf]
        %v344 = vld [vmem:[%s277 + $0x84] sm:$0xf]
        %v345 = vld [vmem:[%s277 + $0x88] sm:$0xf]
        %v346 = vld [vmem:[%s277 + $0x8c] sm:$0xf]
        %v347 = vld [vmem:[%s277 + $0x90] sm:$0xf]
        %v348 = vld [vmem:[%s277 + $0x94] sm:$0xf]
        %v349 = vld [vmem:[%s277 + $0x98] sm:$0xf]
        %v350 = vld [vmem:[%s277 + $0x9c] sm:$0xf]
        %v351 = vld [vmem:[%s277 + $0xa0] sm:$0xf]
        %v352 = vld [vmem:[%s277 + $0xa4] sm:$0xf]
        %v353 = vld [vmem:[%s277 + $0xa8] sm:$0xf]
        %v354 = vld [vmem:[%s277 + $0xac] sm:$0xf]
        %v355 = vld [vmem:[%s277 + $0xb0] sm:$0xf]
        %v356 = vld [vmem:[%s277 + $0xb4] sm:$0xf]
        %v357 = vld [vmem:[%s277 + $0xb8] sm:$0xf]
        %v358 = vld [vmem:[%s277 + $0xbc] sm:$0xf]
        %v359 = vld [vmem:[%s277 + $0xc0] sm:$0xf]
        %v360 = vld [vmem:[%s277 + $0xc4] sm:$0xf]
        %v361 = vld [vmem:[%s277 + $0xc8] sm:$0xf]
        %v362 = vld [vmem:[%s277 + $0xcc] sm:$0xf]
        %v363 = vld [vmem:[%s277 + $0xd0] sm:$0xf]
        %v364 = vld [vmem:[%s277 + $0xd4] sm:$0xf]
        %v365 = vld [vmem:[%s277 + $0xd8] sm:$0xf]
        %v366 = vld [vmem:[%s277 + $0xdc] sm:$0xf]
        %v367 = vld [vmem:[%s277 + $0xe0] sm:$0xf]
        %v368 = vld [vmem:[%s277 + $0xe4] sm:$0xf]
        %v369 = vld [vmem:[%s277 + $0xe8] sm:$0xf]
        %v370 = vld [vmem:[%s277 + $0xec] sm:$0xf]
        %v371 = vld [vmem:[%s277 + $0xf0] sm:$0xf]
        %v372 = vld [vmem:[%s277 + $0xf4] sm:$0xf]
        %v373 = vld [vmem:[%s277 + $0xf8] sm:$0xf]
        %v374 = vld [vmem:[%s277 + $0xfc] sm:$0xf]
        %v375 = vunpack.c.l.bf16 %v311
        %v376 = vunpack.c.l.bf16 %v312
        %v377 = vunpack.c.l.bf16 %v313
        %v378 = vunpack.c.l.bf16 %v314
        %v379 = vunpack.c.l.bf16 %v315
        %v380 = vunpack.c.l.bf16 %v316
        %v381 = vunpack.c.l.bf16 %v317
        %v382 = vunpack.c.l.bf16 %v318
        %v383 = vunpack.c.l.bf16 %v319
        %v384 = vunpack.c.l.bf16 %v320
        %v385 = vunpack.c.l.bf16 %v321
        %v386 = vunpack.c.l.bf16 %v322
        %v387 = vunpack.c.l.bf16 %v323
        %v388 = vunpack.c.l.bf16 %v324
        %v389 = vunpack.c.l.bf16 %v325
        %v390 = vunpack.c.l.bf16 %v326
        %v391 = vunpack.c.l.bf16 %v327
        %v392 = vunpack.c.l.bf16 %v328
        %v393 = vunpack.c.l.bf16 %v329
        %v394 = vunpack.c.l.bf16 %v330
        %v395 = vunpack.c.l.bf16 %v331
        %v396 = vunpack.c.l.bf16 %v332
        %v397 = vunpack.c.l.bf16 %v333
        %v398 = vunpack.c.l.bf16 %v334
        %v399 = vunpack.c.l.bf16 %v335
        %v400 = vunpack.c.l.bf16 %v336
        %v401 = vunpack.c.l.bf16 %v337
        %v402 = vunpack.c.l.bf16 %v338
        %v403 = vunpack.c.l.bf16 %v339
        %v404 = vunpack.c.l.bf16 %v340
        %v405 = vunpack.c.l.bf16 %v341
        %v406 = vunpack.c.l.bf16 %v342
        %v407 = vunpack.c.l.bf16 %v343
        %v408 = vunpack.c.l.bf16 %v344
        %v409 = vunpack.c.l.bf16 %v345
        %v410 = vunpack.c.l.bf16 %v346
        %v411 = vunpack.c.l.bf16 %v347
        %v412 = vunpack.c.l.bf16 %v348
        %v413 = vunpack.c.l.bf16 %v349
        %v414 = vunpack.c.l.bf16 %v350
        %v415 = vunpack.c.l.bf16 %v351
        %v416 = vunpack.c.l.bf16 %v352
        %v417 = vunpack.c.l.bf16 %v353
        %v418 = vunpack.c.l.bf16 %v354
        %v419 = vunpack.c.l.bf16 %v355
        %v420 = vunpack.c.l.bf16 %v356
        %v421 = vunpack.c.l.bf16 %v357
        %v422 = vunpack.c.l.bf16 %v358
        %v423 = vunpack.c.l.bf16 %v359
        %v424 = vunpack.c.l.bf16 %v360
        %v425 = vunpack.c.l.bf16 %v361
        %v426 = vunpack.c.l.bf16 %v362
        %v427 = vunpack.c.l.bf16 %v363
        %v428 = vunpack.c.l.bf16 %v364
        %v429 = vunpack.c.l.bf16 %v365
        %v430 = vunpack.c.l.bf16 %v366
        %v431 = vunpack.c.l.bf16 %v367
        %v432 = vunpack.c.l.bf16 %v368
        %v433 = vunpack.c.l.bf16 %v369
        %v434 = vunpack.c.l.bf16 %v370
        %v435 = vunpack.c.l.bf16 %v371
        %v436 = vunpack.c.l.bf16 %v372
        %v437 = vunpack.c.l.bf16 %v373
        %v438 = vunpack.c.l.bf16 %v374
        %v440 = vlaneseq
        %v441 = vshrl.u32 %v440, 7
        %v442 = vsub.s32 0, %v441
        %v443 = vrot.slane %v307, %v442
        %v445 = vmul.f32 %v375, %v443
        %v446 = vmul.f32 %v376, %v443
        %v447 = vmul.f32 %v377, %v443
        %v448 = vmul.f32 %v378, %v443
        %v449 = vmul.f32 %v379, %v443
        %v450 = vmul.f32 %v380, %v443
        %v451 = vmul.f32 %v381, %v443
        %v452 = vmul.f32 %v382, %v443
        %v453 = vmul.f32 %v383, %v443
        %v454 = vmul.f32 %v384, %v443
        %v455 = vmul.f32 %v385, %v443
        %v456 = vmul.f32 %v386, %v443
        %v457 = vmul.f32 %v387, %v443
        %v458 = vmul.f32 %v388, %v443
        %v459 = vmul.f32 %v389, %v443
        %v460 = vmul.f32 %v390, %v443
        %v461 = vmul.f32 %v391, %v443
        %v462 = vmul.f32 %v392, %v443
        %v463 = vmul.f32 %v393, %v443
        %v464 = vmul.f32 %v394, %v443
        %v465 = vmul.f32 %v395, %v443
        %v466 = vmul.f32 %v396, %v443
        %v467 = vmul.f32 %v397, %v443
        %v468 = vmul.f32 %v398, %v443
        %v469 = vmul.f32 %v399, %v443
        %v470 = vmul.f32 %v400, %v443
        %v471 = vmul.f32 %v401, %v443
        %v472 = vmul.f32 %v402, %v443
        %v473 = vmul.f32 %v403, %v443
        %v474 = vmul.f32 %v404, %v443
        %v475 = vmul.f32 %v405, %v443
        %v476 = vmul.f32 %v406, %v443
        %v477 = vmul.f32 %v407, %v443
        %v478 = vmul.f32 %v408, %v443
        %v479 = vmul.f32 %v409, %v443
        %v480 = vmul.f32 %v410, %v443
        %v481 = vmul.f32 %v411, %v443
        %v482 = vmul.f32 %v412, %v443
        %v483 = vmul.f32 %v413, %v443
        %v484 = vmul.f32 %v414, %v443
        %v485 = vmul.f32 %v415, %v443
        %v486 = vmul.f32 %v416, %v443
        %v487 = vmul.f32 %v417, %v443
        %v488 = vmul.f32 %v418, %v443
        %v489 = vmul.f32 %v419, %v443
        %v490 = vmul.f32 %v420, %v443
        %v491 = vmul.f32 %v421, %v443
        %v492 = vmul.f32 %v422, %v443
        %v493 = vmul.f32 %v423, %v443
        %v494 = vmul.f32 %v424, %v443
        %v495 = vmul.f32 %v425, %v443
        %v496 = vmul.f32 %v426, %v443
        %v497 = vmul.f32 %v427, %v443
        %v498 = vmul.f32 %v428, %v443
        %v499 = vmul.f32 %v429, %v443
        %v500 = vmul.f32 %v430, %v443
        %v501 = vmul.f32 %v431, %v443
        %v502 = vmul.f32 %v432, %v443
        %v503 = vmul.f32 %v433, %v443
        %v504 = vmul.f32 %v434, %v443
        %v505 = vmul.f32 %v435, %v443
        %v506 = vmul.f32 %v436, %v443
        %v507 = vmul.f32 %v437, %v443
        %v508 = vmul.f32 %v438, %v443
        %v510 = vlaneseq
        %v511 = vshrl.u32 %v510, 7
        %v512 = vsub.s32 0, %v511
        %v513 = vrot.slane %v310, %v512
        %v515 = vadd.f32 %v445, %v513
        %v516 = vadd.f32 %v446, %v513
        %v517 = vadd.f32 %v447, %v513
        %v518 = vadd.f32 %v448, %v513
        %v519 = vadd.f32 %v449, %v513
        %v520 = vadd.f32 %v450, %v513
        %v521 = vadd.f32 %v451, %v513
        %v522 = vadd.f32 %v452, %v513
        %v523 = vadd.f32 %v453, %v513
        %v524 = vadd.f32 %v454, %v513
        %v525 = vadd.f32 %v455, %v513
        %v526 = vadd.f32 %v456, %v513
        %v527 = vadd.f32 %v457, %v513
        %v528 = vadd.f32 %v458, %v513
        %v529 = vadd.f32 %v459, %v513
        %v530 = vadd.f32 %v460, %v513
        %v531 = vadd.f32 %v461, %v513
        %v532 = vadd.f32 %v462, %v513
        %v533 = vadd.f32 %v463, %v513
        %v534 = vadd.f32 %v464, %v513
        %v535 = vadd.f32 %v465, %v513
        %v536 = vadd.f32 %v466, %v513
        %v537 = vadd.f32 %v467, %v513
        %v538 = vadd.f32 %v468, %v513
        %v539 = vadd.f32 %v469, %v513
        %v540 = vadd.f32 %v470, %v513
        %v541 = vadd.f32 %v471, %v513
        %v542 = vadd.f32 %v472, %v513
        %v543 = vadd.f32 %v473, %v513
        %v544 = vadd.f32 %v474, %v513
        %v545 = vadd.f32 %v475, %v513
        %v546 = vadd.f32 %v476, %v513
        %v547 = vadd.f32 %v477, %v513
        %v548 = vadd.f32 %v478, %v513
        %v549 = vadd.f32 %v479, %v513
        %v550 = vadd.f32 %v480, %v513
        %v551 = vadd.f32 %v481, %v513
        %v552 = vadd.f32 %v482, %v513
        %v553 = vadd.f32 %v483, %v513
        %v554 = vadd.f32 %v484, %v513
        %v555 = vadd.f32 %v485, %v513
        %v556 = vadd.f32 %v486, %v513
        %v557 = vadd.f32 %v487, %v513
        %v558 = vadd.f32 %v488, %v513
        %v559 = vadd.f32 %v489, %v513
        %v560 = vadd.f32 %v490, %v513
        %v561 = vadd.f32 %v491, %v513
        %v562 = vadd.f32 %v492, %v513
        %v563 = vadd.f32 %v493, %v513
        %v564 = vadd.f32 %v494, %v513
        %v565 = vadd.f32 %v495, %v513
        %v566 = vadd.f32 %v496, %v513
        %v567 = vadd.f32 %v497, %v513
        %v568 = vadd.f32 %v498, %v513
        %v569 = vadd.f32 %v499, %v513
        %v570 = vadd.f32 %v500, %v513
        %v571 = vadd.f32 %v501, %v513
        %v572 = vadd.f32 %v502, %v513
        %v573 = vadd.f32 %v503, %v513
        %v574 = vadd.f32 %v504, %v513
        %v575 = vadd.f32 %v505, %v513
        %v576 = vadd.f32 %v506, %v513
        %v577 = vadd.f32 %v507, %v513
        %v578 = vadd.f32 %v508, %v513
        %vm579 = vcmp.gt.f32.partialorder %v515, 0.0
        %vm580 = vcmp.gt.f32.partialorder %v516, 0.0
        %vm581 = vcmp.gt.f32.partialorder %v517, 0.0
        %vm582 = vcmp.gt.f32.partialorder %v518, 0.0
        %vm583 = vcmp.gt.f32.partialorder %v519, 0.0
        %vm584 = vcmp.gt.f32.partialorder %v520, 0.0
        %vm585 = vcmp.gt.f32.partialorder %v521, 0.0
        %vm586 = vcmp.gt.f32.partialorder %v522, 0.0
        %vm587 = vcmp.gt.f32.partialorder %v523, 0.0
        %vm588 = vcmp.gt.f32.partialorder %v524, 0.0
        %vm589 = vcmp.gt.f32.partialorder %v525, 0.0
        %vm590 = vcmp.gt.f32.partialorder %v526, 0.0
        %vm591 = vcmp.gt.f32.partialorder %v527, 0.0
        %vm592 = vcmp.gt.f32.partialorder %v528, 0.0
        %vm593 = vcmp.gt.f32.partialorder %v529, 0.0
        %vm594 = vcmp.gt.f32.partialorder %v530, 0.0
        %vm595 = vcmp.gt.f32.partialorder %v531, 0.0
        %vm596 = vcmp.gt.f32.partialorder %v532, 0.0
        %vm597 = vcmp.gt.f32.partialorder %v533, 0.0
        %vm598 = vcmp.gt.f32.partialorder %v534, 0.0
        %vm599 = vcmp.gt.f32.partialorder %v535, 0.0
        %vm600 = vcmp.gt.f32.partialorder %v536, 0.0
        %vm601 = vcmp.gt.f32.partialorder %v537, 0.0
        %vm602 = vcmp.gt.f32.partialorder %v538, 0.0
        %vm603 = vcmp.gt.f32.partialorder %v539, 0.0
        %vm604 = vcmp.gt.f32.partialorder %v540, 0.0
        %vm605 = vcmp.gt.f32.partialorder %v541, 0.0
        %vm606 = vcmp.gt.f32.partialorder %v542, 0.0
        %vm607 = vcmp.gt.f32.partialorder %v543, 0.0
        %vm608 = vcmp.gt.f32.partialorder %v544, 0.0
        %vm609 = vcmp.gt.f32.partialorder %v545, 0.0
        %vm610 = vcmp.gt.f32.partialorder %v546, 0.0
        %vm611 = vcmp.gt.f32.partialorder %v547, 0.0
        %vm612 = vcmp.gt.f32.partialorder %v548, 0.0
        %vm613 = vcmp.gt.f32.partialorder %v549, 0.0
        %vm614 = vcmp.gt.f32.partialorder %v550, 0.0
        %vm615 = vcmp.gt.f32.partialorder %v551, 0.0
        %vm616 = vcmp.gt.f32.partialorder %v552, 0.0
        %vm617 = vcmp.gt.f32.partialorder %v553, 0.0
        %vm618 = vcmp.gt.f32.partialorder %v554, 0.0
        %vm619 = vcmp.gt.f32.partialorder %v555, 0.0
        %vm620 = vcmp.gt.f32.partialorder %v556, 0.0
        %vm621 = vcmp.gt.f32.partialorder %v557, 0.0
        %vm622 = vcmp.gt.f32.partialorder %v558, 0.0
        %vm623 = vcmp.gt.f32.partialorder %v559, 0.0
        %vm624 = vcmp.gt.f32.partialorder %v560, 0.0
        %vm625 = vcmp.gt.f32.partialorder %v561, 0.0
        %vm626 = vcmp.gt.f32.partialorder %v562, 0.0
        %vm627 = vcmp.gt.f32.partialorder %v563, 0.0
        %vm628 = vcmp.gt.f32.partialorder %v564, 0.0
        %vm629 = vcmp.gt.f32.partialorder %v565, 0.0
        %vm630 = vcmp.gt.f32.partialorder %v566, 0.0
        %vm631 = vcmp.gt.f32.partialorder %v567, 0.0
        %vm632 = vcmp.gt.f32.partialorder %v568, 0.0
        %vm633 = vcmp.gt.f32.partialorder %v569, 0.0
        %vm634 = vcmp.gt.f32.partialorder %v570, 0.0
        %vm635 = vcmp.gt.f32.partialorder %v571, 0.0
        %vm636 = vcmp.gt.f32.partialorder %v572, 0.0
        %vm637 = vcmp.gt.f32.partialorder %v573, 0.0
        %vm638 = vcmp.gt.f32.partialorder %v574, 0.0
        %vm639 = vcmp.gt.f32.partialorder %v575, 0.0
        %vm640 = vcmp.gt.f32.partialorder %v576, 0.0
        %vm641 = vcmp.gt.f32.partialorder %v577, 0.0
        %vm642 = vcmp.gt.f32.partialorder %v578, 0.0
        %v643 = vmul.f32 %v515, 0.2
        %v644 = vmul.f32 %v516, 0.2
        %v645 = vmul.f32 %v517, 0.2
        %v646 = vmul.f32 %v518, 0.2
        %v647 = vmul.f32 %v519, 0.2
        %v648 = vmul.f32 %v520, 0.2
        %v649 = vmul.f32 %v521, 0.2
        %v650 = vmul.f32 %v522, 0.2
        %v651 = vmul.f32 %v523, 0.2
        %v652 = vmul.f32 %v524, 0.2
        %v653 = vmul.f32 %v525, 0.2
        %v654 = vmul.f32 %v526, 0.2
        %v655 = vmul.f32 %v527, 0.2
        %v656 = vmul.f32 %v528, 0.2
        %v657 = vmul.f32 %v529, 0.2
        %v658 = vmul.f32 %v530, 0.2
        %v659 = vmul.f32 %v531, 0.2
        %v660 = vmul.f32 %v532, 0.2
        %v661 = vmul.f32 %v533, 0.2
        %v662 = vmul.f32 %v534, 0.2
        %v663 = vmul.f32 %v535, 0.2
        %v664 = vmul.f32 %v536, 0.2
        %v665 = vmul.f32 %v537, 0.2
        %v666 = vmul.f32 %v538, 0.2
        %v667 = vmul.f32 %v539, 0.2
        %v668 = vmul.f32 %v540, 0.2
        %v669 = vmul.f32 %v541, 0.2
        %v670 = vmul.f32 %v542, 0.2
        %v671 = vmul.f32 %v543, 0.2
        %v672 = vmul.f32 %v544, 0.2
        %v673 = vmul.f32 %v545, 0.2
        %v674 = vmul.f32 %v546, 0.2
        %v675 = vmul.f32 %v547, 0.2
        %v676 = vmul.f32 %v548, 0.2
        %v677 = vmul.f32 %v549, 0.2
        %v678 = vmul.f32 %v550, 0.2
        %v679 = vmul.f32 %v551, 0.2
        %v680 = vmul.f32 %v552, 0.2
        %v681 = vmul.f32 %v553, 0.2
        %v682 = vmul.f32 %v554, 0.2
        %v683 = vmul.f32 %v555, 0.2
        %v684 = vmul.f32 %v556, 0.2
        %v685 = vmul.f32 %v557, 0.2
        %v686 = vmul.f32 %v558, 0.2
        %v687 = vmul.f32 %v559, 0.2
        %v688 = vmul.f32 %v560, 0.2
        %v689 = vmul.f32 %v561, 0.2
        %v690 = vmul.f32 %v562, 0.2
        %v691 = vmul.f32 %v563, 0.2
        %v692 = vmul.f32 %v564, 0.2
        %v693 = vmul.f32 %v565, 0.2
        %v694 = vmul.f32 %v566, 0.2
        %v695 = vmul.f32 %v567, 0.2
        %v696 = vmul.f32 %v568, 0.2
        %v697 = vmul.f32 %v569, 0.2
        %v698 = vmul.f32 %v570, 0.2
        %v699 = vmul.f32 %v571, 0.2
        %v700 = vmul.f32 %v572, 0.2
        %v701 = vmul.f32 %v573, 0.2
        %v702 = vmul.f32 %v574, 0.2
        %v703 = vmul.f32 %v575, 0.2
        %v704 = vmul.f32 %v576, 0.2
        %v705 = vmul.f32 %v577, 0.2
        %v706 = vmul.f32 %v578, 0.2
        %v707 = vsel %vm579, %v515, %v643
        %v708 = vsel %vm580, %v516, %v644
        %v709 = vsel %vm581, %v517, %v645
        %v710 = vsel %vm582, %v518, %v646
        %v711 = vsel %vm583, %v519, %v647
        %v712 = vsel %vm584, %v520, %v648
        %v713 = vsel %vm585, %v521, %v649
        %v714 = vsel %vm586, %v522, %v650
        %v715 = vsel %vm587, %v523, %v651
        %v716 = vsel %vm588, %v524, %v652
        %v717 = vsel %vm589, %v525, %v653
        %v718 = vsel %vm590, %v526, %v654
        %v719 = vsel %vm591, %v527, %v655
        %v720 = vsel %vm592, %v528, %v656
        %v721 = vsel %vm593, %v529, %v657
        %v722 = vsel %vm594, %v530, %v658
        %v723 = vsel %vm595, %v531, %v659
        %v724 = vsel %vm596, %v532, %v660
        %v725 = vsel %vm597, %v533, %v661
        %v726 = vsel %vm598, %v534, %v662
        %v727 = vsel %vm599, %v535, %v663
        %v728 = vsel %vm600, %v536, %v664
        %v729 = vsel %vm601, %v537, %v665
        %v730 = vsel %vm602, %v538, %v666
        %v731 = vsel %vm603, %v539, %v667
        %v732 = vsel %vm604, %v540, %v668
        %v733 = vsel %vm605, %v541, %v669
        %v734 = vsel %vm606, %v542, %v670
        %v735 = vsel %vm607, %v543, %v671
        %v736 = vsel %vm608, %v544, %v672
        %v737 = vsel %vm609, %v545, %v673
        %v738 = vsel %vm610, %v546, %v674
        %v739 = vsel %vm611, %v547, %v675
        %v740 = vsel %vm612, %v548, %v676
        %v741 = vsel %vm613, %v549, %v677
        %v742 = vsel %vm614, %v550, %v678
        %v743 = vsel %vm615, %v551, %v679
        %v744 = vsel %vm616, %v552, %v680
        %v745 = vsel %vm617, %v553, %v681
        %v746 = vsel %vm618, %v554, %v682
        %v747 = vsel %vm619, %v555, %v683
        %v748 = vsel %vm620, %v556, %v684
        %v749 = vsel %vm621, %v557, %v685
        %v750 = vsel %vm622, %v558, %v686
        %v751 = vsel %vm623, %v559, %v687
        %v752 = vsel %vm624, %v560, %v688
        %v753 = vsel %vm625, %v561, %v689
        %v754 = vsel %vm626, %v562, %v690
        %v755 = vsel %vm627, %v563, %v691
        %v756 = vsel %vm628, %v564, %v692
        %v757 = vsel %vm629, %v565, %v693
        %v758 = vsel %vm630, %v566, %v694
        %v759 = vsel %vm631, %v567, %v695
        %v760 = vsel %vm632, %v568, %v696
        %v761 = vsel %vm633, %v569, %v697
        %v762 = vsel %vm634, %v570, %v698
        %v763 = vsel %vm635, %v571, %v699
        %v764 = vsel %vm636, %v572, %v700
        %v765 = vsel %vm637, %v573, %v701
        %v766 = vsel %vm638, %v574, %v702
        %v767 = vsel %vm639, %v575, %v703
        %v768 = vsel %vm640, %v576, %v704
        %v769 = vsel %vm641, %v577, %v705
        %v770 = vsel %vm642, %v578, %v706
        %v771 = vpack.c.bf16 %v708, %v707
        %v772 = vpack.c.bf16 %v710, %v709
        %v773 = vpack.c.bf16 %v712, %v711
        %v774 = vpack.c.bf16 %v714, %v713
        %v775 = vpack.c.bf16 %v716, %v715
        %v776 = vpack.c.bf16 %v718, %v717
        %v777 = vpack.c.bf16 %v720, %v719
        %v778 = vpack.c.bf16 %v722, %v721
        %v779 = vpack.c.bf16 %v724, %v723
        %v780 = vpack.c.bf16 %v726, %v725
        %v781 = vpack.c.bf16 %v728, %v727
        %v782 = vpack.c.bf16 %v730, %v729
        %v783 = vpack.c.bf16 %v732, %v731
        %v784 = vpack.c.bf16 %v734, %v733
        %v785 = vpack.c.bf16 %v736, %v735
        %v786 = vpack.c.bf16 %v738, %v737
        %v787 = vpack.c.bf16 %v740, %v739
        %v788 = vpack.c.bf16 %v742, %v741
        %v789 = vpack.c.bf16 %v744, %v743
        %v790 = vpack.c.bf16 %v746, %v745
        %v791 = vpack.c.bf16 %v748, %v747
        %v792 = vpack.c.bf16 %v750, %v749
        %v793 = vpack.c.bf16 %v752, %v751
        %v794 = vpack.c.bf16 %v754, %v753
        %v795 = vpack.c.bf16 %v756, %v755
        %v796 = vpack.c.bf16 %v758, %v757
        %v797 = vpack.c.bf16 %v760, %v759
        %v798 = vpack.c.bf16 %v762, %v761
        %v799 = vpack.c.bf16 %v764, %v763
        %v800 = vpack.c.bf16 %v766, %v765
        %v801 = vpack.c.bf16 %v768, %v767
        %v802 = vpack.c.bf16 %v770, %v769
        %v803 = vld [vmem:[%s5] sm:$0xff]
        %v804 = vld [vmem:[%s5 + $0x8] sm:$0xff]
        %v805 = vld [vmem:[%s5 + $0x10] sm:$0xff]
        %v806 = vld [vmem:[%s5 + $0x18] sm:$0xff]
        %v807 = vld [vmem:[%s5 + $0x20] sm:$0xff]
        %v808 = vld [vmem:[%s5 + $0x28] sm:$0xff]
        %v809 = vld [vmem:[%s5 + $0x30] sm:$0xff]
        %v810 = vld [vmem:[%s5 + $0x38] sm:$0xff]
        %v811 = vld [vmem:[%s5 + $0x40] sm:$0xff]
        %v812 = vld [vmem:[%s5 + $0x48] sm:$0xff]
        %v813 = vld [vmem:[%s5 + $0x50] sm:$0xff]
        %v814 = vld [vmem:[%s5 + $0x58] sm:$0xff]
        %v815 = vld [vmem:[%s5 + $0x60] sm:$0xff]
        %v816 = vld [vmem:[%s5 + $0x68] sm:$0xff]
        %v817 = vld [vmem:[%s5 + $0x70] sm:$0xff]
        %v818 = vld [vmem:[%s5 + $0x78] sm:$0xff]
        %v819 = vld [vmem:[%s6] sm:$0x3]
        %v821 = vlaneseq
        %v822 = vshrl.u32 %v821, 7
        %v823 = vsub.s32 0, %v822
        %v824 = vrot.slane %v819, %v823
        %v825 = vlaneseq
        %v826 = vshrl.u32 %v825, 7
        %v827 = vsub.s32 1, %v826
        %v828 = vrot.slane %v819, %v827
        %v847 = vunpack.c.l.b16 %v803
        %v848 = vunpack.c.h.b16 %v803
        %v849 = vunpack.c.l.b16 %v804
        %v850 = vunpack.c.h.b16 %v804
        %v851 = vunpack.c.l.b16 %v805
        %v852 = vunpack.c.h.b16 %v805
        %v853 = vunpack.c.l.b16 %v806
        %v854 = vunpack.c.h.b16 %v806
        %v855 = vunpack.c.l.b16 %v807
        %v856 = vunpack.c.h.b16 %v807
        %v857 = vunpack.c.l.b16 %v808
        %v858 = vunpack.c.h.b16 %v808
        %v859 = vunpack.c.l.b16 %v809
        %v860 = vunpack.c.h.b16 %v809
        %v861 = vunpack.c.l.b16 %v810
        %v862 = vunpack.c.h.b16 %v810
        %v863 = vunpack.c.l.b16 %v811
        %v864 = vunpack.c.h.b16 %v811
        %v865 = vunpack.c.l.b16 %v812
        %v866 = vunpack.c.h.b16 %v812
        %v867 = vunpack.c.l.b16 %v813
        %v868 = vunpack.c.h.b16 %v813
        %v869 = vunpack.c.l.b16 %v814
        %v870 = vunpack.c.h.b16 %v814
        %v871 = vunpack.c.l.b16 %v815
        %v872 = vunpack.c.h.b16 %v815
        %v873 = vunpack.c.l.b16 %v816
        %v874 = vunpack.c.h.b16 %v816
        %v875 = vunpack.c.l.b16 %v817
        %v876 = vunpack.c.h.b16 %v817
        %v877 = vunpack.c.l.b16 %v818
        %v878 = vunpack.c.h.b16 %v818
        %v879 = vpack.c.b16 %v849, %v847
        %v880 = vpack.c.b16 %v850, %v848
        %v881 = vpack.c.b16 %v853, %v851
        %v882 = vpack.c.b16 %v854, %v852
        %v883 = vpack.c.b16 %v857, %v855
        %v884 = vpack.c.b16 %v858, %v856
        %v885 = vpack.c.b16 %v861, %v859
        %v886 = vpack.c.b16 %v862, %v860
        %v887 = vpack.c.b16 %v865, %v863
        %v888 = vpack.c.b16 %v866, %v864
        %v889 = vpack.c.b16 %v869, %v867
        %v890 = vpack.c.b16 %v870, %v868
        %v891 = vpack.c.b16 %v873, %v871
        %v892 = vpack.c.b16 %v874, %v872
        %v893 = vpack.c.b16 %v877, %v875
        %v894 = vpack.c.b16 %v878, %v876
        %911 = vmatprep.subr.bf16.mxu0 %v880
        %912 = vmatpush1.bf16.msra.mxu0 %v879
        %913 = vmatprep.subr.bf16.mxu0 %v882
        %914 = vmatpush1.bf16.msra.mxu0 %v881
        %915 = vmatprep.subr.bf16.mxu0 %v884
        %916 = vmatpush1.bf16.msra.mxu0 %v883
        %917 = vmatprep.subr.bf16.mxu0 %v886
        %918 = vmatpush1.bf16.msra.mxu0 %v885
        %919 = vmatprep.subr.bf16.mxu0 %v888
        %920 = vmatpush1.bf16.msra.mxu0 %v887
        %921 = vmatprep.subr.bf16.mxu0 %v890
        %922 = vmatpush1.bf16.msra.mxu0 %v889
        %923 = vmatprep.subr.bf16.mxu0 %v892
        %924 = vmatpush1.bf16.msra.mxu0 %v891
        %925 = vmatprep.subr.bf16.mxu0 %v894
        %926 = vmatpush1.bf16.msra.mxu0 %v893
        %927 = vmatprep.subr.bf16.mxu0 0
        %928 = vmatpush1.bf16.msra.mxu0 0
        %929 = vmatprep.subr.bf16.mxu0 0
        %930 = vmatpush1.bf16.msra.mxu0 0
        %931 = vmatprep.subr.bf16.mxu0 0
        %932 = vmatpush1.bf16.msra.mxu0 0
        %933 = vmatprep.subr.bf16.mxu0 0
        %934 = vmatpush1.bf16.msra.mxu0 0
        %935 = vmatprep.subr.bf16.mxu0 0
        %936 = vmatpush1.bf16.msra.mxu0 0
        %937 = vmatprep.subr.bf16.mxu0 0
        %938 = vmatpush1.bf16.msra.mxu0 0
        %939 = vmatprep.subr.bf16.mxu0 0
        %940 = vmatpush1.bf16.msra.mxu0 0
        %941 = vmatprep.subr.bf16.mxu0 0
        %942 = vmatpush1.bf16.msra.mxu0 0
        %943 = vmatprep.mubr.bf16.mxu0 0
        %944 = vmatmul.mubr.bf16.gmra.mrb[0].mxu0 %v771
        %v945 = vpop.f32.mrb[0].mxu0
        %v946 = vadd.f32 %v824, %v945
        %v947 = vpop.f32.mrb[0].mxu0
        %v948 = vadd.f32 %v828, %v947
        %v949 = vpop.f32.mrb[0].mxu0
        %v950 = vadd.f32 %v824, %v949
        %v951 = vpop.f32.mrb[0].mxu0
        %v952 = vadd.f32 %v828, %v951
        %953 = vmatprep.mubr.bf16.mxu0 0
        %954 = vmatmul.mubr.bf16.gmra.mrb[0].mxu0 %v772
        %v955 = vpop.f32.mrb[0].mxu0
        %v956 = vadd.f32 %v824, %v955
        %v957 = vpop.f32.mrb[0].mxu0
        %v958 = vadd.f32 %v828, %v957
        %v959 = vpop.f32.mrb[0].mxu0
        %v960 = vadd.f32 %v824, %v959
        %v961 = vpop.f32.mrb[0].mxu0
        %v962 = vadd.f32 %v828, %v961
        %963 = vmatprep.mubr.bf16.mxu0 0
        %964 = vmatmul.mubr.bf16.gmra.mrb[0].mxu0 %v773
        %v965 = vpop.f32.mrb[0].mxu0
        %v966 = vadd.f32 %v824, %v965
        %v967 = vpop.f32.mrb[0].mxu0
        %v968 = vadd.f32 %v828, %v967
        %v969 = vpop.f32.mrb[0].mxu0
        %v970 = vadd.f32 %v824, %v969
        %v971 = vpop.f32.mrb[0].mxu0
        %v972 = vadd.f32 %v828, %v971
        %973 = vmatprep.mubr.bf16.mxu0 0
        %974 = vmatmul.mubr.bf16.gmra.mrb[0].mxu0 %v774
        %v975 = vpop.f32.mrb[0].mxu0
        %v976 = vadd.f32 %v824, %v975
        %v977 = vpop.f32.mrb[0].mxu0
        %v978 = vadd.f32 %v828, %v977
        %v979 = vpop.f32.mrb[0].mxu0
        %v980 = vadd.f32 %v824, %v979
        %v981 = vpop.f32.mrb[0].mxu0
        %v982 = vadd.f32 %v828, %v981
        %983 = vmatprep.mubr.bf16.mxu0 0
        %984 = vmatmul.mubr.bf16.gmra.mrb[0].mxu0 %v775
        %v985 = vpop.f32.mrb[0].mxu0
        %v986 = vadd.f32 %v824, %v985
        %v987 = vpop.f32.mrb[0].mxu0
        %v988 = vadd.f32 %v828, %v987
        %v989 = vpop.f32.mrb[0].mxu0
        %v990 = vadd.f32 %v824, %v989
        %v991 = vpop.f32.mrb[0].mxu0
        %v992 = vadd.f32 %v828, %v991
        %993 = vmatprep.mubr.bf16.mxu0 0
        %994 = vmatmul.mubr.bf16.gmra.mrb[0].mxu0 %v776
        %v995 = vpop.f32.mrb[0].mxu0
        %v996 = vadd.f32 %v824, %v995
        %v997 = vpop.f32.mrb[0].mxu0
        %v998 = vadd.f32 %v828, %v997
        %v999 = vpop.f32.mrb[0].mxu0
        %v1000 = vadd.f32 %v824, %v999
        %v1001 = vpop.f32.mrb[0].mxu0
        %v1002 = vadd.f32 %v828, %v1001
        %1003 = vmatprep.mubr.bf16.mxu0 0
        %1004 = vmatmul.mubr.bf16.gmra.mrb[0].mxu0 %v777
        %v1005 = vpop.f32.mrb[0].mxu0
        %v1006 = vadd.f32 %v824, %v1005
        %v1007 = vpop.f32.mrb[0].mxu0
        %v1008 = vadd.f32 %v828, %v1007
        %v1009 = vpop.f32.mrb[0].mxu0
        %v1010 = vadd.f32 %v824, %v1009
        %v1011 = vpop.f32.mrb[0].mxu0
        %v1012 = vadd.f32 %v828, %v1011
        %1013 = vmatprep.mubr.bf16.mxu0 0
        %1014 = vmatmul.mubr.bf16.gmra.mrb[0].mxu0 %v778
        %v1015 = vpop.f32.mrb[0].mxu0
        %v1016 = vadd.f32 %v824, %v1015
        %v1017 = vpop.f32.mrb[0].mxu0
        %v1018 = vadd.f32 %v828, %v1017
        %v1019 = vpop.f32.mrb[0].mxu0
        %v1020 = vadd.f32 %v824, %v1019
        %v1021 = vpop.f32.mrb[0].mxu0
        %v1022 = vadd.f32 %v828, %v1021
        %1023 = vmatprep.mubr.bf16.mxu0 0
        %1024 = vmatmul.mubr.bf16.gmra.mrb[0].mxu0 %v779
        %v1025 = vpop.f32.mrb[0].mxu0
        %v1026 = vadd.f32 %v824, %v1025
        %v1027 = vpop.f32.mrb[0].mxu0
        %v1028 = vadd.f32 %v828, %v1027
        %v1029 = vpop.f32.mrb[0].mxu0
        %v1030 = vadd.f32 %v824, %v1029
        %v1031 = vpop.f32.mrb[0].mxu0
        %v1032 = vadd.f32 %v828, %v1031
        %1033 = vmatprep.mubr.bf16.mxu0 0
        %1034 = vmatmul.mubr.bf16.gmra.mrb[0].mxu0 %v780
        %v1035 = vpop.f32.mrb[0].mxu0
        %v1036 = vadd.f32 %v824, %v1035
        %v1037 = vpop.f32.mrb[0].mxu0
        %v1038 = vadd.f32 %v828, %v1037
        %v1039 = vpop.f32.mrb[0].mxu0
        %v1040 = vadd.f32 %v824, %v1039
        %v1041 = vpop.f32.mrb[0].mxu0
        %v1042 = vadd.f32 %v828, %v1041
        %1043 = vmatprep.mubr.bf16.mxu0 0
        %1044 = vmatmul.mubr.bf16.gmra.mrb[0].mxu0 %v781
        %v1045 = vpop.f32.mrb[0].mxu0
        %v1046 = vadd.f32 %v824, %v1045
        %v1047 = vpop.f32.mrb[0].mxu0
        %v1048 = vadd.f32 %v828, %v1047
        %v1049 = vpop.f32.mrb[0].mxu0
        %v1050 = vadd.f32 %v824, %v1049
        %v1051 = vpop.f32.mrb[0].mxu0
        %v1052 = vadd.f32 %v828, %v1051
        %1053 = vmatprep.mubr.bf16.mxu0 0
        %1054 = vmatmul.mubr.bf16.gmra.mrb[0].mxu0 %v782
        %v1055 = vpop.f32.mrb[0].mxu0
        %v1056 = vadd.f32 %v824, %v1055
        %v1057 = vpop.f32.mrb[0].mxu0
        %v1058 = vadd.f32 %v828, %v1057
        %v1059 = vpop.f32.mrb[0].mxu0
        %v1060 = vadd.f32 %v824, %v1059
        %v1061 = vpop.f32.mrb[0].mxu0
        %v1062 = vadd.f32 %v828, %v1061
        %1063 = vmatprep.mubr.bf16.mxu0 0
        %1064 = vmatmul.mubr.bf16.gmra.mrb[0].mxu0 %v783
        %v1065 = vpop.f32.mrb[0].mxu0
        %v1066 = vadd.f32 %v824, %v1065
        %v1067 = vpop.f32.mrb[0].mxu0
        %v1068 = vadd.f32 %v828, %v1067
        %v1069 = vpop.f32.mrb[0].mxu0
        %v1070 = vadd.f32 %v824, %v1069
        %v1071 = vpop.f32.mrb[0].mxu0
        %v1072 = vadd.f32 %v828, %v1071
        %1073 = vmatprep.mubr.bf16.mxu0 0
        %1074 = vmatmul.mubr.bf16.gmra.mrb[0].mxu0 %v784
        %v1075 = vpop.f32.mrb[0].mxu0
        %v1076 = vadd.f32 %v824, %v1075
        %v1077 = vpop.f32.mrb[0].mxu0
        %v1078 = vadd.f32 %v828, %v1077
        %v1079 = vpop.f32.mrb[0].mxu0
        %v1080 = vadd.f32 %v824, %v1079
        %v1081 = vpop.f32.mrb[0].mxu0
        %v1082 = vadd.f32 %v828, %v1081
        %1083 = vmatprep.mubr.bf16.mxu0 0
        %1084 = vmatmul.mubr.bf16.gmra.mrb[0].mxu0 %v785
        %v1085 = vpop.f32.mrb[0].mxu0
        %v1086 = vadd.f32 %v824, %v1085
        %v1087 = vpop.f32.mrb[0].mxu0
        %v1088 = vadd.f32 %v828, %v1087
        %v1089 = vpop.f32.mrb[0].mxu0
        %v1090 = vadd.f32 %v824, %v1089
        %v1091 = vpop.f32.mrb[0].mxu0
        %v1092 = vadd.f32 %v828, %v1091
        %1093 = vmatprep.mubr.bf16.mxu0 0
        %1094 = vmatmul.mubr.bf16.gmra.mrb[0].mxu0 %v786
        %v1095 = vpop.f32.mrb[0].mxu0
        %v1096 = vadd.f32 %v824, %v1095
        %v1097 = vpop.f32.mrb[0].mxu0
        %v1098 = vadd.f32 %v828, %v1097
        %v1099 = vpop.f32.mrb[0].mxu0
        %v1100 = vadd.f32 %v824, %v1099
        %v1101 = vpop.f32.mrb[0].mxu0
        %v1102 = vadd.f32 %v828, %v1101
        %1103 = vmatprep.mubr.bf16.mxu0 0
        %1104 = vmatmul.mubr.bf16.gmra.mrb[0].mxu0 %v787
        %v1105 = vpop.f32.mrb[0].mxu0
        %v1106 = vadd.f32 %v824, %v1105
        %v1107 = vpop.f32.mrb[0].mxu0
        %v1108 = vadd.f32 %v828, %v1107
        %v1109 = vpop.f32.mrb[0].mxu0
        %v1110 = vadd.f32 %v824, %v1109
        %v1111 = vpop.f32.mrb[0].mxu0
        %v1112 = vadd.f32 %v828, %v1111
        %1113 = vmatprep.mubr.bf16.mxu0 0
        %1114 = vmatmul.mubr.bf16.gmra.mrb[0].mxu0 %v788
        %v1115 = vpop.f32.mrb[0].mxu0
        %v1116 = vadd.f32 %v824, %v1115
        %v1117 = vpop.f32.mrb[0].mxu0
        %v1118 = vadd.f32 %v828, %v1117
        %v1119 = vpop.f32.mrb[0].mxu0
        %v1120 = vadd.f32 %v824, %v1119
        %v1121 = vpop.f32.mrb[0].mxu0
        %v1122 = vadd.f32 %v828, %v1121
        %1123 = vmatprep.mubr.bf16.mxu0 0
        %1124 = vmatmul.mubr.bf16.gmra.mrb[0].mxu0 %v789
        %v1125 = vpop.f32.mrb[0].mxu0
        %v1126 = vadd.f32 %v824, %v1125
        %v1127 = vpop.f32.mrb[0].mxu0
        %v1128 = vadd.f32 %v828, %v1127
        %v1129 = vpop.f32.mrb[0].mxu0
        %v1130 = vadd.f32 %v824, %v1129
        %v1131 = vpop.f32.mrb[0].mxu0
        %v1132 = vadd.f32 %v828, %v1131
        %1133 = vmatprep.mubr.bf16.mxu0 0
        %1134 = vmatmul.mubr.bf16.gmra.mrb[0].mxu0 %v790
        %v1135 = vpop.f32.mrb[0].mxu0
        %v1136 = vadd.f32 %v824, %v1135
        %v1137 = vpop.f32.mrb[0].mxu0
        %v1138 = vadd.f32 %v828, %v1137
        %v1139 = vpop.f32.mrb[0].mxu0
        %v1140 = vadd.f32 %v824, %v1139
        %v1141 = vpop.f32.mrb[0].mxu0
        %v1142 = vadd.f32 %v828, %v1141
        %1143 = vmatprep.mubr.bf16.mxu0 0
        %1144 = vmatmul.mubr.bf16.gmra.mrb[0].mxu0 %v791
        %v1145 = vpop.f32.mrb[0].mxu0
        %v1146 = vadd.f32 %v824, %v1145
        %v1147 = vpop.f32.mrb[0].mxu0
        %v1148 = vadd.f32 %v828, %v1147
        %v1149 = vpop.f32.mrb[0].mxu0
        %v1150 = vadd.f32 %v824, %v1149
        %v1151 = vpop.f32.mrb[0].mxu0
        %v1152 = vadd.f32 %v828, %v1151
        %1153 = vmatprep.mubr.bf16.mxu0 0
        %1154 = vmatmul.mubr.bf16.gmra.mrb[0].mxu0 %v792
        %v1155 = vpop.f32.mrb[0].mxu0
        %v1156 = vadd.f32 %v824, %v1155
        %v1157 = vpop.f32.mrb[0].mxu0
        %v1158 = vadd.f32 %v828, %v1157
        %v1159 = vpop.f32.mrb[0].mxu0
        %v1160 = vadd.f32 %v824, %v1159
        %v1161 = vpop.f32.mrb[0].mxu0
        %v1162 = vadd.f32 %v828, %v1161
        %1163 = vmatprep.mubr.bf16.mxu0 0
        %1164 = vmatmul.mubr.bf16.gmra.mrb[0].mxu0 %v793
        %v1165 = vpop.f32.mrb[0].mxu0
        %v1166 = vadd.f32 %v824, %v1165
        %v1167 = vpop.f32.mrb[0].mxu0
        %v1168 = vadd.f32 %v828, %v1167
        %v1169 = vpop.f32.mrb[0].mxu0
        %v1170 = vadd.f32 %v824, %v1169
        %v1171 = vpop.f32.mrb[0].mxu0
        %v1172 = vadd.f32 %v828, %v1171
        %1173 = vmatprep.mubr.bf16.mxu0 0
        %1174 = vmatmul.mubr.bf16.gmra.mrb[0].mxu0 %v794
        %v1175 = vpop.f32.mrb[0].mxu0
        %v1176 = vadd.f32 %v824, %v1175
        %v1177 = vpop.f32.mrb[0].mxu0
        %v1178 = vadd.f32 %v828, %v1177
        %v1179 = vpop.f32.mrb[0].mxu0
        %v1180 = vadd.f32 %v824, %v1179
        %v1181 = vpop.f32.mrb[0].mxu0
        %v1182 = vadd.f32 %v828, %v1181
        %1183 = vmatprep.mubr.bf16.mxu0 0
        %1184 = vmatmul.mubr.bf16.gmra.mrb[0].mxu0 %v795
        %v1185 = vpop.f32.mrb[0].mxu0
        %v1186 = vadd.f32 %v824, %v1185
        %v1187 = vpop.f32.mrb[0].mxu0
        %v1188 = vadd.f32 %v828, %v1187
        %v1189 = vpop.f32.mrb[0].mxu0
        %v1190 = vadd.f32 %v824, %v1189
        %v1191 = vpop.f32.mrb[0].mxu0
        %v1192 = vadd.f32 %v828, %v1191
        %1193 = vmatprep.mubr.bf16.mxu0 0
        %1194 = vmatmul.mubr.bf16.gmra.mrb[0].mxu0 %v796
        %v1195 = vpop.f32.mrb[0].mxu0
        %v1196 = vadd.f32 %v824, %v1195
        %v1197 = vpop.f32.mrb[0].mxu0
        %v1198 = vadd.f32 %v828, %v1197
        %v1199 = vpop.f32.mrb[0].mxu0
        %v1200 = vadd.f32 %v824, %v1199
        %v1201 = vpop.f32.mrb[0].mxu0
        %v1202 = vadd.f32 %v828, %v1201
        %1203 = vmatprep.mubr.bf16.mxu0 0
        %1204 = vmatmul.mubr.bf16.gmra.mrb[0].mxu0 %v797
        %v1205 = vpop.f32.mrb[0].mxu0
        %v1206 = vadd.f32 %v824, %v1205
        %v1207 = vpop.f32.mrb[0].mxu0
        %v1208 = vadd.f32 %v828, %v1207
        %v1209 = vpop.f32.mrb[0].mxu0
        %v1210 = vadd.f32 %v824, %v1209
        %v1211 = vpop.f32.mrb[0].mxu0
        %v1212 = vadd.f32 %v828, %v1211
        %1213 = vmatprep.mubr.bf16.mxu0 0
        %1214 = vmatmul.mubr.bf16.gmra.mrb[0].mxu0 %v798
        %v1215 = vpop.f32.mrb[0].mxu0
        %v1216 = vadd.f32 %v824, %v1215
        %v1217 = vpop.f32.mrb[0].mxu0
        %v1218 = vadd.f32 %v828, %v1217
        %v1219 = vpop.f32.mrb[0].mxu0
        %v1220 = vadd.f32 %v824, %v1219
        %v1221 = vpop.f32.mrb[0].mxu0
        %v1222 = vadd.f32 %v828, %v1221
        %1223 = vmatprep.mubr.bf16.mxu0 0
        %1224 = vmatmul.mubr.bf16.gmra.mrb[0].mxu0 %v799
        %v1225 = vpop.f32.mrb[0].mxu0
        %v1226 = vadd.f32 %v824, %v1225
        %v1227 = vpop.f32.mrb[0].mxu0
        %v1228 = vadd.f32 %v828, %v1227
        %v1229 = vpop.f32.mrb[0].mxu0
        %v1230 = vadd.f32 %v824, %v1229
        %v1231 = vpop.f32.mrb[0].mxu0
        %v1232 = vadd.f32 %v828, %v1231
        %1233 = vmatprep.mubr.bf16.mxu0 0
        %1234 = vmatmul.mubr.bf16.gmra.mrb[0].mxu0 %v800
        %v1235 = vpop.f32.mrb[0].mxu0
        %v1236 = vadd.f32 %v824, %v1235
        %v1237 = vpop.f32.mrb[0].mxu0
        %v1238 = vadd.f32 %v828, %v1237
        %v1239 = vpop.f32.mrb[0].mxu0
        %v1240 = vadd.f32 %v824, %v1239
        %v1241 = vpop.f32.mrb[0].mxu0
        %v1242 = vadd.f32 %v828, %v1241
        %1243 = vmatprep.mubr.bf16.mxu0 0
        %1244 = vmatmul.mubr.bf16.gmra.mrb[0].mxu0 %v801
        %v1245 = vpop.f32.mrb[0].mxu0
        %v1246 = vadd.f32 %v824, %v1245
        %v1247 = vpop.f32.mrb[0].mxu0
        %v1248 = vadd.f32 %v828, %v1247
        %v1249 = vpop.f32.mrb[0].mxu0
        %v1250 = vadd.f32 %v824, %v1249
        %v1251 = vpop.f32.mrb[0].mxu0
        %v1252 = vadd.f32 %v828, %v1251
        %1253 = vmatprep.mubr.bf16.mxu0 0
        %1254 = vmatmul.mubr.bf16.gmra.mrb[0].mxu0 %v802
        %v1255 = vpop.f32.mrb[0].mxu0
        %v1256 = vadd.f32 %v824, %v1255
        %v1257 = vpop.f32.mrb[0].mxu0
        %v1258 = vadd.f32 %v828, %v1257
        %v1259 = vpop.f32.mrb[0].mxu0
        %v1260 = vadd.f32 %v824, %v1259
        %v1261 = vpop.f32.mrb[0].mxu0
        %v1262 = vadd.f32 %v828, %v1261
        %1263 = vdwg.mxu0
        %vm1264 = vcmp.gt.f32.partialorder %v946, 0.0
        %vm1265 = vcmp.gt.f32.partialorder %v948, 0.0
        %vm1266 = vcmp.gt.f32.partialorder %v950, 0.0
        %vm1267 = vcmp.gt.f32.partialorder %v952, 0.0
        %vm1268 = vcmp.gt.f32.partialorder %v956, 0.0
        %vm1269 = vcmp.gt.f32.partialorder %v958, 0.0
        %vm1270 = vcmp.gt.f32.partialorder %v960, 0.0
        %vm1271 = vcmp.gt.f32.partialorder %v962, 0.0
        %vm1272 = vcmp.gt.f32.partialorder %v966, 0.0
        %vm1273 = vcmp.gt.f32.partialorder %v968, 0.0
        %vm1274 = vcmp.gt.f32.partialorder %v970, 0.0
        %vm1275 = vcmp.gt.f32.partialorder %v972, 0.0
        %vm1276 = vcmp.gt.f32.partialorder %v976, 0.0
        %vm1277 = vcmp.gt.f32.partialorder %v978, 0.0
        %vm1278 = vcmp.gt.f32.partialorder %v980, 0.0
        %vm1279 = vcmp.gt.f32.partialorder %v982, 0.0
        %vm1280 = vcmp.gt.f32.partialorder %v986, 0.0
        %vm1281 = vcmp.gt.f32.partialorder %v988, 0.0
        %vm1282 = vcmp.gt.f32.partialorder %v990, 0.0
        %vm1283 = vcmp.gt.f32.partialorder %v992, 0.0
        %vm1284 = vcmp.gt.f32.partialorder %v996, 0.0
        %vm1285 = vcmp.gt.f32.partialorder %v998, 0.0
        %vm1286 = vcmp.gt.f32.partialorder %v1000, 0.0
        %vm1287 = vcmp.gt.f32.partialorder %v1002, 0.0
        %vm1288 = vcmp.gt.f32.partialorder %v1006, 0.0
        %vm1289 = vcmp.gt.f32.partialorder %v1008, 0.0
        %vm1290 = vcmp.gt.f32.partialorder %v1010, 0.0
        %vm1291 = vcmp.gt.f32.partialorder %v1012, 0.0
        %vm1292 = vcmp.gt.f32.partialorder %v1016, 0.0
        %vm1293 = vcmp.gt.f32.partialorder %v1018, 0.0
        %vm1294 = vcmp.gt.f32.partialorder %v1020, 0.0
        %vm1295 = vcmp.gt.f32.partialorder %v1022, 0.0
        %vm1296 = vcmp.gt.f32.partialorder %v1026, 0.0
        %vm1297 = vcmp.gt.f32.partialorder %v1028, 0.0
        %vm1298 = vcmp.gt.f32.partialorder %v1030, 0.0
        %vm1299 = vcmp.gt.f32.partialorder %v1032, 0.0
        %vm1300 = vcmp.gt.f32.partialorder %v1036, 0.0
        %vm1301 = vcmp.gt.f32.partialorder %v1038, 0.0
        %vm1302 = vcmp.gt.f32.partialorder %v1040, 0.0
        %vm1303 = vcmp.gt.f32.partialorder %v1042, 0.0
        %vm1304 = vcmp.gt.f32.partialorder %v1046, 0.0
        %vm1305 = vcmp.gt.f32.partialorder %v1048, 0.0
        %vm1306 = vcmp.gt.f32.partialorder %v1050, 0.0
        %vm1307 = vcmp.gt.f32.partialorder %v1052, 0.0
        %vm1308 = vcmp.gt.f32.partialorder %v1056, 0.0
        %vm1309 = vcmp.gt.f32.partialorder %v1058, 0.0
        %vm1310 = vcmp.gt.f32.partialorder %v1060, 0.0
        %vm1311 = vcmp.gt.f32.partialorder %v1062, 0.0
        %vm1312 = vcmp.gt.f32.partialorder %v1066, 0.0
        %vm1313 = vcmp.gt.f32.partialorder %v1068, 0.0
        %vm1314 = vcmp.gt.f32.partialorder %v1070, 0.0
        %vm1315 = vcmp.gt.f32.partialorder %v1072, 0.0
        %vm1316 = vcmp.gt.f32.partialorder %v1076, 0.0
        %vm1317 = vcmp.gt.f32.partialorder %v1078, 0.0
        %vm1318 = vcmp.gt.f32.partialorder %v1080, 0.0
        %vm1319 = vcmp.gt.f32.partialorder %v1082, 0.0
        %vm1320 = vcmp.gt.f32.partialorder %v1086, 0.0
        %vm1321 = vcmp.gt.f32.partialorder %v1088, 0.0
        %vm1322 = vcmp.gt.f32.partialorder %v1090, 0.0
        %vm1323 = vcmp.gt.f32.partialorder %v1092, 0.0
        %vm1324 = vcmp.gt.f32.partialorder %v1096, 0.0
        %vm1325 = vcmp.gt.f32.partialorder %v1098, 0.0
        %vm1326 = vcmp.gt.f32.partialorder %v1100, 0.0
        %vm1327 = vcmp.gt.f32.partialorder %v1102, 0.0
        %vm1328 = vcmp.gt.f32.partialorder %v1106, 0.0
        %vm1329 = vcmp.gt.f32.partialorder %v1108, 0.0
        %vm1330 = vcmp.gt.f32.partialorder %v1110, 0.0
        %vm1331 = vcmp.gt.f32.partialorder %v1112, 0.0
        %vm1332 = vcmp.gt.f32.partialorder %v1116, 0.0
        %vm1333 = vcmp.gt.f32.partialorder %v1118, 0.0
        %vm1334 = vcmp.gt.f32.partialorder %v1120, 0.0
        %vm1335 = vcmp.gt.f32.partialorder %v1122, 0.0
        %vm1336 = vcmp.gt.f32.partialorder %v1126, 0.0
        %vm1337 = vcmp.gt.f32.partialorder %v1128, 0.0
        %vm1338 = vcmp.gt.f32.partialorder %v1130, 0.0
        %vm1339 = vcmp.gt.f32.partialorder %v1132, 0.0
        %vm1340 = vcmp.gt.f32.partialorder %v1136, 0.0
        %vm1341 = vcmp.gt.f32.partialorder %v1138, 0.0
        %vm1342 = vcmp.gt.f32.partialorder %v1140, 0.0
        %vm1343 = vcmp.gt.f32.partialorder %v1142, 0.0
        %vm1344 = vcmp.gt.f32.partialorder %v1146, 0.0
        %vm1345 = vcmp.gt.f32.partialorder %v1148, 0.0
        %vm1346 = vcmp.gt.f32.partialorder %v1150, 0.0
        %vm1347 = vcmp.gt.f32.partialorder %v1152, 0.0
        %vm1348 = vcmp.gt.f32.partialorder %v1156, 0.0
        %vm1349 = vcmp.gt.f32.partialorder %v1158, 0.0
        %vm1350 = vcmp.gt.f32.partialorder %v1160, 0.0
        %vm1351 = vcmp.gt.f32.partialorder %v1162, 0.0
        %vm1352 = vcmp.gt.f32.partialorder %v1166, 0.0
        %vm1353 = vcmp.gt.f32.partialorder %v1168, 0.0
        %vm1354 = vcmp.gt.f32.partialorder %v1170, 0.0
        %vm1355 = vcmp.gt.f32.partialorder %v1172, 0.0
        %vm1356 = vcmp.gt.f32.partialorder %v1176, 0.0
        %vm1357 = vcmp.gt.f32.partialorder %v1178, 0.0
        %vm1358 = vcmp.gt.f32.partialorder %v1180, 0.0
        %vm1359 = vcmp.gt.f32.partialorder %v1182, 0.0
        %vm1360 = vcmp.gt.f32.partialorder %v1186, 0.0
        %vm1361 = vcmp.gt.f32.partialorder %v1188, 0.0
        %vm1362 = vcmp.gt.f32.partialorder %v1190, 0.0
        %vm1363 = vcmp.gt.f32.partialorder %v1192, 0.0
        %vm1364 = vcmp.gt.f32.partialorder %v1196, 0.0
        %vm1365 = vcmp.gt.f32.partialorder %v1198, 0.0
        %vm1366 = vcmp.gt.f32.partialorder %v1200, 0.0
        %vm1367 = vcmp.gt.f32.partialorder %v1202, 0.0
        %vm1368 = vcmp.gt.f32.partialorder %v1206, 0.0
        %vm1369 = vcmp.gt.f32.partialorder %v1208, 0.0
        %vm1370 = vcmp.gt.f32.partialorder %v1210, 0.0
        %vm1371 = vcmp.gt.f32.partialorder %v1212, 0.0
        %vm1372 = vcmp.gt.f32.partialorder %v1216, 0.0
        %vm1373 = vcmp.gt.f32.partialorder %v1218, 0.0
        %vm1374 = vcmp.gt.f32.partialorder %v1220, 0.0
        %vm1375 = vcmp.gt.f32.partialorder %v1222, 0.0
        %vm1376 = vcmp.gt.f32.partialorder %v1226, 0.0
        %vm1377 = vcmp.gt.f32.partialorder %v1228, 0.0
        %vm1378 = vcmp.gt.f32.partialorder %v1230, 0.0
        %vm1379 = vcmp.gt.f32.partialorder %v1232, 0.0
        %vm1380 = vcmp.gt.f32.partialorder %v1236, 0.0
        %vm1381 = vcmp.gt.f32.partialorder %v1238, 0.0
        %vm1382 = vcmp.gt.f32.partialorder %v1240, 0.0
        %vm1383 = vcmp.gt.f32.partialorder %v1242, 0.0
        %vm1384 = vcmp.gt.f32.partialorder %v1246, 0.0
        %vm1385 = vcmp.gt.f32.partialorder %v1248, 0.0
        %vm1386 = vcmp.gt.f32.partialorder %v1250, 0.0
        %vm1387 = vcmp.gt.f32.partialorder %v1252, 0.0
        %vm1388 = vcmp.gt.f32.partialorder %v1256, 0.0
        %vm1389 = vcmp.gt.f32.partialorder %v1258, 0.0
        %vm1390 = vcmp.gt.f32.partialorder %v1260, 0.0
        %vm1391 = vcmp.gt.f32.partialorder %v1262, 0.0
        %v1392 = vmul.f32 %v946, 0.2
        %v1393 = vmul.f32 %v948, 0.2
        %v1394 = vmul.f32 %v950, 0.2
        %v1395 = vmul.f32 %v952, 0.2
        %v1396 = vmul.f32 %v956, 0.2
        %v1397 = vmul.f32 %v958, 0.2
        %v1398 = vmul.f32 %v960, 0.2
        %v1399 = vmul.f32 %v962, 0.2
        %v1400 = vmul.f32 %v966, 0.2
        %v1401 = vmul.f32 %v968, 0.2
        %v1402 = vmul.f32 %v970, 0.2
        %v1403 = vmul.f32 %v972, 0.2
        %v1404 = vmul.f32 %v976, 0.2
        %v1405 = vmul.f32 %v978, 0.2
        %v1406 = vmul.f32 %v980, 0.2
        %v1407 = vmul.f32 %v982, 0.2
        %v1408 = vmul.f32 %v986, 0.2
        %v1409 = vmul.f32 %v988, 0.2
        %v1410 = vmul.f32 %v990, 0.2
        %v1411 = vmul.f32 %v992, 0.2
        %v1412 = vmul.f32 %v996, 0.2
        %v1413 = vmul.f32 %v998, 0.2
        %v1414 = vmul.f32 %v1000, 0.2
        %v1415 = vmul.f32 %v1002, 0.2
        %v1416 = vmul.f32 %v1006, 0.2
        %v1417 = vmul.f32 %v1008, 0.2
        %v1418 = vmul.f32 %v1010, 0.2
        %v1419 = vmul.f32 %v1012, 0.2
        %v1420 = vmul.f32 %v1016, 0.2
        %v1421 = vmul.f32 %v1018, 0.2
        %v1422 = vmul.f32 %v1020, 0.2
        %v1423 = vmul.f32 %v1022, 0.2
        %v1424 = vmul.f32 %v1026, 0.2
        %v1425 = vmul.f32 %v1028, 0.2
        %v1426 = vmul.f32 %v1030, 0.2
        %v1427 = vmul.f32 %v1032, 0.2
        %v1428 = vmul.f32 %v1036, 0.2
        %v1429 = vmul.f32 %v1038, 0.2
        %v1430 = vmul.f32 %v1040, 0.2
        %v1431 = vmul.f32 %v1042, 0.2
        %v1432 = vmul.f32 %v1046, 0.2
        %v1433 = vmul.f32 %v1048, 0.2
        %v1434 = vmul.f32 %v1050, 0.2
        %v1435 = vmul.f32 %v1052, 0.2
        %v1436 = vmul.f32 %v1056, 0.2
        %v1437 = vmul.f32 %v1058, 0.2
        %v1438 = vmul.f32 %v1060, 0.2
        %v1439 = vmul.f32 %v1062, 0.2
        %v1440 = vmul.f32 %v1066, 0.2
        %v1441 = vmul.f32 %v1068, 0.2
        %v1442 = vmul.f32 %v1070, 0.2
        %v1443 = vmul.f32 %v1072, 0.2
        %v1444 = vmul.f32 %v1076, 0.2
        %v1445 = vmul.f32 %v1078, 0.2
        %v1446 = vmul.f32 %v1080, 0.2
        %v1447 = vmul.f32 %v1082, 0.2
        %v1448 = vmul.f32 %v1086, 0.2
        %v1449 = vmul.f32 %v1088, 0.2
        %v1450 = vmul.f32 %v1090, 0.2
        %v1451 = vmul.f32 %v1092, 0.2
        %v1452 = vmul.f32 %v1096, 0.2
        %v1453 = vmul.f32 %v1098, 0.2
        %v1454 = vmul.f32 %v1100, 0.2
        %v1455 = vmul.f32 %v1102, 0.2
        %v1456 = vmul.f32 %v1106, 0.2
        %v1457 = vmul.f32 %v1108, 0.2
        %v1458 = vmul.f32 %v1110, 0.2
        %v1459 = vmul.f32 %v1112, 0.2
        %v1460 = vmul.f32 %v1116, 0.2
        %v1461 = vmul.f32 %v1118, 0.2
        %v1462 = vmul.f32 %v1120, 0.2
        %v1463 = vmul.f32 %v1122, 0.2
        %v1464 = vmul.f32 %v1126, 0.2
        %v1465 = vmul.f32 %v1128, 0.2
        %v1466 = vmul.f32 %v1130, 0.2
        %v1467 = vmul.f32 %v1132, 0.2
        %v1468 = vmul.f32 %v1136, 0.2
        %v1469 = vmul.f32 %v1138, 0.2
        %v1470 = vmul.f32 %v1140, 0.2
        %v1471 = vmul.f32 %v1142, 0.2
        %v1472 = vmul.f32 %v1146, 0.2
        %v1473 = vmul.f32 %v1148, 0.2
        %v1474 = vmul.f32 %v1150, 0.2
        %v1475 = vmul.f32 %v1152, 0.2
        %v1476 = vmul.f32 %v1156, 0.2
        %v1477 = vmul.f32 %v1158, 0.2
        %v1478 = vmul.f32 %v1160, 0.2
        %v1479 = vmul.f32 %v1162, 0.2
        %v1480 = vmul.f32 %v1166, 0.2
        %v1481 = vmul.f32 %v1168, 0.2
        %v1482 = vmul.f32 %v1170, 0.2
        %v1483 = vmul.f32 %v1172, 0.2
        %v1484 = vmul.f32 %v1176, 0.2
        %v1485 = vmul.f32 %v1178, 0.2
        %v1486 = vmul.f32 %v1180, 0.2
        %v1487 = vmul.f32 %v1182, 0.2
        %v1488 = vmul.f32 %v1186, 0.2
        %v1489 = vmul.f32 %v1188, 0.2
        %v1490 = vmul.f32 %v1190, 0.2
        %v1491 = vmul.f32 %v1192, 0.2
        %v1492 = vmul.f32 %v1196, 0.2
        %v1493 = vmul.f32 %v1198, 0.2
        %v1494 = vmul.f32 %v1200, 0.2
        %v1495 = vmul.f32 %v1202, 0.2
        %v1496 = vmul.f32 %v1206, 0.2
        %v1497 = vmul.f32 %v1208, 0.2
        %v1498 = vmul.f32 %v1210, 0.2
        %v1499 = vmul.f32 %v1212, 0.2
        %v1500 = vmul.f32 %v1216, 0.2
        %v1501 = vmul.f32 %v1218, 0.2
        %v1502 = vmul.f32 %v1220, 0.2
        %v1503 = vmul.f32 %v1222, 0.2
        %v1504 = vmul.f32 %v1226, 0.2
        %v1505 = vmul.f32 %v1228, 0.2
        %v1506 = vmul.f32 %v1230, 0.2
        %v1507 = vmul.f32 %v1232, 0.2
        %v1508 = vmul.f32 %v1236, 0.2
        %v1509 = vmul.f32 %v1238, 0.2
        %v1510 = vmul.f32 %v1240, 0.2
        %v1511 = vmul.f32 %v1242, 0.2
        %v1512 = vmul.f32 %v1246, 0.2
        %v1513 = vmul.f32 %v1248, 0.2
        %v1514 = vmul.f32 %v1250, 0.2
        %v1515 = vmul.f32 %v1252, 0.2
        %v1516 = vmul.f32 %v1256, 0.2
        %v1517 = vmul.f32 %v1258, 0.2
        %v1518 = vmul.f32 %v1260, 0.2
        %v1519 = vmul.f32 %v1262, 0.2
        %v1520 = vsel %vm1264, %v946, %v1392
        %v1521 = vsel %vm1265, %v948, %v1393
        %v1522 = vsel %vm1266, %v950, %v1394
        %v1523 = vsel %vm1267, %v952, %v1395
        %v1524 = vsel %vm1268, %v956, %v1396
        %v1525 = vsel %vm1269, %v958, %v1397
        %v1526 = vsel %vm1270, %v960, %v1398
        %v1527 = vsel %vm1271, %v962, %v1399
        %v1528 = vsel %vm1272, %v966, %v1400
        %v1529 = vsel %vm1273, %v968, %v1401
        %v1530 = vsel %vm1274, %v970, %v1402
        %v1531 = vsel %vm1275, %v972, %v1403
        %v1532 = vsel %vm1276, %v976, %v1404
        %v1533 = vsel %vm1277, %v978, %v1405
        %v1534 = vsel %vm1278, %v980, %v1406
        %v1535 = vsel %vm1279, %v982, %v1407
        %v1536 = vsel %vm1280, %v986, %v1408
        %v1537 = vsel %vm1281, %v988, %v1409
        %v1538 = vsel %vm1282, %v990, %v1410
        %v1539 = vsel %vm1283, %v992, %v1411
        %v1540 = vsel %vm1284, %v996, %v1412
        %v1541 = vsel %vm1285, %v998, %v1413
        %v1542 = vsel %vm1286, %v1000, %v1414
        %v1543 = vsel %vm1287, %v1002, %v1415
        %v1544 = vsel %vm1288, %v1006, %v1416
        %v1545 = vsel %vm1289, %v1008, %v1417
        %v1546 = vsel %vm1290, %v1010, %v1418
        %v1547 = vsel %vm1291, %v1012, %v1419
        %v1548 = vsel %vm1292, %v1016, %v1420
        %v1549 = vsel %vm1293, %v1018, %v1421
        %v1550 = vsel %vm1294, %v1020, %v1422
        %v1551 = vsel %vm1295, %v1022, %v1423
        %v1552 = vsel %vm1296, %v1026, %v1424
        %v1553 = vsel %vm1297, %v1028, %v1425
        %v1554 = vsel %vm1298, %v1030, %v1426
        %v1555 = vsel %vm1299, %v1032, %v1427
        %v1556 = vsel %vm1300, %v1036, %v1428
        %v1557 = vsel %vm1301, %v1038, %v1429
        %v1558 = vsel %vm1302, %v1040, %v1430
        %v1559 = vsel %vm1303, %v1042, %v1431
        %v1560 = vsel %vm1304, %v1046, %v1432
        %v1561 = vsel %vm1305, %v1048, %v1433
        %v1562 = vsel %vm1306, %v1050, %v1434
        %v1563 = vsel %vm1307, %v1052, %v1435
        %v1564 = vsel %vm1308, %v1056, %v1436
        %v1565 = vsel %vm1309, %v1058, %v1437
        %v1566 = vsel %vm1310, %v1060, %v1438
        %v1567 = vsel %vm1311, %v1062, %v1439
        %v1568 = vsel %vm1312, %v1066, %v1440
        %v1569 = vsel %vm1313, %v1068, %v1441
        %v1570 = vsel %vm1314, %v1070, %v1442
        %v1571 = vsel %vm1315, %v1072, %v1443
        %v1572 = vsel %vm1316, %v1076, %v1444
        %v1573 = vsel %vm1317, %v1078, %v1445
        %v1574 = vsel %vm1318, %v1080, %v1446
        %v1575 = vsel %vm1319, %v1082, %v1447
        %v1576 = vsel %vm1320, %v1086, %v1448
        %v1577 = vsel %vm1321, %v1088, %v1449
        %v1578 = vsel %vm1322, %v1090, %v1450
        %v1579 = vsel %vm1323, %v1092, %v1451
        %v1580 = vsel %vm1324, %v1096, %v1452
        %v1581 = vsel %vm1325, %v1098, %v1453
        %v1582 = vsel %vm1326, %v1100, %v1454
        %v1583 = vsel %vm1327, %v1102, %v1455
        %v1584 = vsel %vm1328, %v1106, %v1456
        %v1585 = vsel %vm1329, %v1108, %v1457
        %v1586 = vsel %vm1330, %v1110, %v1458
        %v1587 = vsel %vm1331, %v1112, %v1459
        %v1588 = vsel %vm1332, %v1116, %v1460
        %v1589 = vsel %vm1333, %v1118, %v1461
        %v1590 = vsel %vm1334, %v1120, %v1462
        %v1591 = vsel %vm1335, %v1122, %v1463
        %v1592 = vsel %vm1336, %v1126, %v1464
        %v1593 = vsel %vm1337, %v1128, %v1465
        %v1594 = vsel %vm1338, %v1130, %v1466
        %v1595 = vsel %vm1339, %v1132, %v1467
        %v1596 = vsel %vm1340, %v1136, %v1468
        %v1597 = vsel %vm1341, %v1138, %v1469
        %v1598 = vsel %vm1342, %v1140, %v1470
        %v1599 = vsel %vm1343, %v1142, %v1471
        %v1600 = vsel %vm1344, %v1146, %v1472
        %v1601 = vsel %vm1345, %v1148, %v1473
        %v1602 = vsel %vm1346, %v1150, %v1474
        %v1603 = vsel %vm1347, %v1152, %v1475
        %v1604 = vsel %vm1348, %v1156, %v1476
        %v1605 = vsel %vm1349, %v1158, %v1477
        %v1606 = vsel %vm1350, %v1160, %v1478
        %v1607 = vsel %vm1351, %v1162, %v1479
        %v1608 = vsel %vm1352, %v1166, %v1480
        %v1609 = vsel %vm1353, %v1168, %v1481
        %v1610 = vsel %vm1354, %v1170, %v1482
        %v1611 = vsel %vm1355, %v1172, %v1483
        %v1612 = vsel %vm1356, %v1176, %v1484
        %v1613 = vsel %vm1357, %v1178, %v1485
        %v1614 = vsel %vm1358, %v1180, %v1486
        %v1615 = vsel %vm1359, %v1182, %v1487
        %v1616 = vsel %vm1360, %v1186, %v1488
        %v1617 = vsel %vm1361, %v1188, %v1489
        %v1618 = vsel %vm1362, %v1190, %v1490
        %v1619 = vsel %vm1363, %v1192, %v1491
        %v1620 = vsel %vm1364, %v1196, %v1492
        %v1621 = vsel %vm1365, %v1198, %v1493
        %v1622 = vsel %vm1366, %v1200, %v1494
        %v1623 = vsel %vm1367, %v1202, %v1495
        %v1624 = vsel %vm1368, %v1206, %v1496
        %v1625 = vsel %vm1369, %v1208, %v1497
        %v1626 = vsel %vm1370, %v1210, %v1498
        %v1627 = vsel %vm1371, %v1212, %v1499
        %v1628 = vsel %vm1372, %v1216, %v1500
        %v1629 = vsel %vm1373, %v1218, %v1501
        %v1630 = vsel %vm1374, %v1220, %v1502
        %v1631 = vsel %vm1375, %v1222, %v1503
        %v1632 = vsel %vm1376, %v1226, %v1504
        %v1633 = vsel %vm1377, %v1228, %v1505
        %v1634 = vsel %vm1378, %v1230, %v1506
        %v1635 = vsel %vm1379, %v1232, %v1507
        %v1636 = vsel %vm1380, %v1236, %v1508
        %v1637 = vsel %vm1381, %v1238, %v1509
        %v1638 = vsel %vm1382, %v1240, %v1510
        %v1639 = vsel %vm1383, %v1242, %v1511
        %v1640 = vsel %vm1384, %v1246, %v1512
        %v1641 = vsel %vm1385, %v1248, %v1513
        %v1642 = vsel %vm1386, %v1250, %v1514
        %v1643 = vsel %vm1387, %v1252, %v1515
        %v1644 = vsel %vm1388, %v1256, %v1516
        %v1645 = vsel %vm1389, %v1258, %v1517
        %v1646 = vsel %vm1390, %v1260, %v1518
        %v1647 = vsel %vm1391, %v1262, %v1519
        %1648 = vst [vmem:[%s272] sm:$0xff] %v1520
        %1649 = vst [vmem:[%s272 + $0x8] sm:$0xff] %v1521
        %1650 = vst [vmem:[%s272 + $0x10] sm:$0xff] %v1522
        %1651 = vst [vmem:[%s272 + $0x18] sm:$0xff] %v1523
        %1652 = vst [vmem:[%s272 + $0x20] sm:$0xff] %v1524
        %1653 = vst [vmem:[%s272 + $0x28] sm:$0xff] %v1525
        %1654 = vst [vmem:[%s272 + $0x30] sm:$0xff] %v1526
        %1655 = vst [vmem:[%s272 + $0x38] sm:$0xff] %v1527
        %1656 = vst [vmem:[%s272 + $0x40] sm:$0xff] %v1528
        %1657 = vst [vmem:[%s272 + $0x48] sm:$0xff] %v1529
        %1658 = vst [vmem:[%s272 + $0x50] sm:$0xff] %v1530
        %1659 = vst [vmem:[%s272 + $0x58] sm:$0xff] %v1531
        %1660 = vst [vmem:[%s272 + $0x60] sm:$0xff] %v1532
        %1661 = vst [vmem:[%s272 + $0x68] sm:$0xff] %v1533
        %1662 = vst [vmem:[%s272 + $0x70] sm:$0xff] %v1534
        %1663 = vst [vmem:[%s272 + $0x78] sm:$0xff] %v1535
        %1664 = vst [vmem:[%s272 + $0x80] sm:$0xff] %v1536
        %1665 = vst [vmem:[%s272 + $0x88] sm:$0xff] %v1537
        %1666 = vst [vmem:[%s272 + $0x90] sm:$0xff] %v1538
        %1667 = vst [vmem:[%s272 + $0x98] sm:$0xff] %v1539
        %1668 = vst [vmem:[%s272 + $0xa0] sm:$0xff] %v1540
        %1669 = vst [vmem:[%s272 + $0xa8] sm:$0xff] %v1541
        %1670 = vst [vmem:[%s272 + $0xb0] sm:$0xff] %v1542
        %1671 = vst [vmem:[%s272 + $0xb8] sm:$0xff] %v1543
        %1672 = vst [vmem:[%s272 + $0xc0] sm:$0xff] %v1544
        %1673 = vst [vmem:[%s272 + $0xc8] sm:$0xff] %v1545
        %1674 = vst [vmem:[%s272 + $0xd0] sm:$0xff] %v1546
        %1675 = vst [vmem:[%s272 + $0xd8] sm:$0xff] %v1547
        %1676 = vst [vmem:[%s272 + $0xe0] sm:$0xff] %v1548
        %1677 = vst [vmem:[%s272 + $0xe8] sm:$0xff] %v1549
        %1678 = vst [vmem:[%s272 + $0xf0] sm:$0xff] %v1550
        %1679 = vst [vmem:[%s272 + $0xf8] sm:$0xff] %v1551
        %1680 = vst [vmem:[%s272 + $0x100] sm:$0xff] %v1552
        %1681 = vst [vmem:[%s272 + $0x108] sm:$0xff] %v1553
        %1682 = vst [vmem:[%s272 + $0x110] sm:$0xff] %v1554
        %1683 = vst [vmem:[%s272 + $0x118] sm:$0xff] %v1555
        %1684 = vst [vmem:[%s272 + $0x120] sm:$0xff] %v1556
        %1685 = vst [vmem:[%s272 + $0x128] sm:$0xff] %v1557
        %1686 = vst [vmem:[%s272 + $0x130] sm:$0xff] %v1558
        %1687 = vst [vmem:[%s272 + $0x138] sm:$0xff] %v1559
        %1688 = vst [vmem:[%s272 + $0x140] sm:$0xff] %v1560
        %1689 = vst [vmem:[%s272 + $0x148] sm:$0xff] %v1561
        %1690 = vst [vmem:[%s272 + $0x150] sm:$0xff] %v1562
        %1691 = vst [vmem:[%s272 + $0x158] sm:$0xff] %v1563
        %1692 = vst [vmem:[%s272 + $0x160] sm:$0xff] %v1564
        %1693 = vst [vmem:[%s272 + $0x168] sm:$0xff] %v1565
        %1694 = vst [vmem:[%s272 + $0x170] sm:$0xff] %v1566
        %1695 = vst [vmem:[%s272 + $0x178] sm:$0xff] %v1567
        %1696 = vst [vmem:[%s272 + $0x180] sm:$0xff] %v1568
        %1697 = vst [vmem:[%s272 + $0x188] sm:$0xff] %v1569
        %1698 = vst [vmem:[%s272 + $0x190] sm:$0xff] %v1570
        %1699 = vst [vmem:[%s272 + $0x198] sm:$0xff] %v1571
        %1700 = vst [vmem:[%s272 + $0x1a0] sm:$0xff] %v1572
        %1701 = vst [vmem:[%s272 + $0x1a8] sm:$0xff] %v1573
        %1702 = vst [vmem:[%s272 + $0x1b0] sm:$0xff] %v1574
        %1703 = vst [vmem:[%s272 + $0x1b8] sm:$0xff] %v1575
        %1704 = vst [vmem:[%s272 + $0x1c0] sm:$0xff] %v1576
        %1705 = vst [vmem:[%s272 + $0x1c8] sm:$0xff] %v1577
        %1706 = vst [vmem:[%s272 + $0x1d0] sm:$0xff] %v1578
        %1707 = vst [vmem:[%s272 + $0x1d8] sm:$0xff] %v1579
        %1708 = vst [vmem:[%s272 + $0x1e0] sm:$0xff] %v1580
        %1709 = vst [vmem:[%s272 + $0x1e8] sm:$0xff] %v1581
        %1710 = vst [vmem:[%s272 + $0x1f0] sm:$0xff] %v1582
        %1711 = vst [vmem:[%s272 + $0x1f8] sm:$0xff] %v1583
        %1712 = vst [vmem:[%s272 + $0x200] sm:$0xff] %v1584
        %1713 = vst [vmem:[%s272 + $0x208] sm:$0xff] %v1585
        %1714 = vst [vmem:[%s272 + $0x210] sm:$0xff] %v1586
        %1715 = vst [vmem:[%s272 + $0x218] sm:$0xff] %v1587
        %1716 = vst [vmem:[%s272 + $0x220] sm:$0xff] %v1588
        %1717 = vst [vmem:[%s272 + $0x228] sm:$0xff] %v1589
        %1718 = vst [vmem:[%s272 + $0x230] sm:$0xff] %v1590
        %1719 = vst [vmem:[%s272 + $0x238] sm:$0xff] %v1591
        %1720 = vst [vmem:[%s272 + $0x240] sm:$0xff] %v1592
        %1721 = vst [vmem:[%s272 + $0x248] sm:$0xff] %v1593
        %1722 = vst [vmem:[%s272 + $0x250] sm:$0xff] %v1594
        %1723 = vst [vmem:[%s272 + $0x258] sm:$0xff] %v1595
        %1724 = vst [vmem:[%s272 + $0x260] sm:$0xff] %v1596
        %1725 = vst [vmem:[%s272 + $0x268] sm:$0xff] %v1597
        %1726 = vst [vmem:[%s272 + $0x270] sm:$0xff] %v1598
        %1727 = vst [vmem:[%s272 + $0x278] sm:$0xff] %v1599
        %1728 = vst [vmem:[%s272 + $0x280] sm:$0xff] %v1600
        %1729 = vst [vmem:[%s272 + $0x288] sm:$0xff] %v1601
        %1730 = vst [vmem:[%s272 + $0x290] sm:$0xff] %v1602
        %1731 = vst [vmem:[%s272 + $0x298] sm:$0xff] %v1603
        %1732 = vst [vmem:[%s272 + $0x2a0] sm:$0xff] %v1604
        %1733 = vst [vmem:[%s272 + $0x2a8] sm:$0xff] %v1605
        %1734 = vst [vmem:[%s272 + $0x2b0] sm:$0xff] %v1606
        %1735 = vst [vmem:[%s272 + $0x2b8] sm:$0xff] %v1607
        %1736 = vst [vmem:[%s272 + $0x2c0] sm:$0xff] %v1608
        %1737 = vst [vmem:[%s272 + $0x2c8] sm:$0xff] %v1609
        %1738 = vst [vmem:[%s272 + $0x2d0] sm:$0xff] %v1610
        %1739 = vst [vmem:[%s272 + $0x2d8] sm:$0xff] %v1611
        %1740 = vst [vmem:[%s272 + $0x2e0] sm:$0xff] %v1612
        %1741 = vst [vmem:[%s272 + $0x2e8] sm:$0xff] %v1613
        %1742 = vst [vmem:[%s272 + $0x2f0] sm:$0xff] %v1614
        %1743 = vst [vmem:[%s272 + $0x2f8] sm:$0xff] %v1615
        %1744 = vst [vmem:[%s272 + $0x300] sm:$0xff] %v1616
        %1745 = vst [vmem:[%s272 + $0x308] sm:$0xff] %v1617
        %1746 = vst [vmem:[%s272 + $0x310] sm:$0xff] %v1618
        %1747 = vst [vmem:[%s272 + $0x318] sm:$0xff] %v1619
        %1748 = vst [vmem:[%s272 + $0x320] sm:$0xff] %v1620
        %1749 = vst [vmem:[%s272 + $0x328] sm:$0xff] %v1621
        %1750 = vst [vmem:[%s272 + $0x330] sm:$0xff] %v1622
        %1751 = vst [vmem:[%s272 + $0x338] sm:$0xff] %v1623
        %1752 = vst [vmem:[%s272 + $0x340] sm:$0xff] %v1624
        %1753 = vst [vmem:[%s272 + $0x348] sm:$0xff] %v1625
        %1754 = vst [vmem:[%s272 + $0x350] sm:$0xff] %v1626
        %1755 = vst [vmem:[%s272 + $0x358] sm:$0xff] %v1627
        %1756 = vst [vmem:[%s272 + $0x360] sm:$0xff] %v1628
        %1757 = vst [vmem:[%s272 + $0x368] sm:$0xff] %v1629
        %1758 = vst [vmem:[%s272 + $0x370] sm:$0xff] %v1630
        %1759 = vst [vmem:[%s272 + $0x378] sm:$0xff] %v1631
        %1760 = vst [vmem:[%s272 + $0x380] sm:$0xff] %v1632
        %1761 = vst [vmem:[%s272 + $0x388] sm:$0xff] %v1633
        %1762 = vst [vmem:[%s272 + $0x390] sm:$0xff] %v1634
        %1763 = vst [vmem:[%s272 + $0x398] sm:$0xff] %v1635
        %1764 = vst [vmem:[%s272 + $0x3a0] sm:$0xff] %v1636
        %1765 = vst [vmem:[%s272 + $0x3a8] sm:$0xff] %v1637
        %1766 = vst [vmem:[%s272 + $0x3b0] sm:$0xff] %v1638
        %1767 = vst [vmem:[%s272 + $0x3b8] sm:$0xff] %v1639
        %1768 = vst [vmem:[%s272 + $0x3c0] sm:$0xff] %v1640
        %1769 = vst [vmem:[%s272 + $0x3c8] sm:$0xff] %v1641
        %1770 = vst [vmem:[%s272 + $0x3d0] sm:$0xff] %v1642
        %1771 = vst [vmem:[%s272 + $0x3d8] sm:$0xff] %v1643
        %1772 = vst [vmem:[%s272 + $0x3e0] sm:$0xff] %v1644
        %1773 = vst [vmem:[%s272 + $0x3e8] sm:$0xff] %v1645
        %1774 = vst [vmem:[%s272 + $0x3f0] sm:$0xff] %v1646
        %1775 = vst [vmem:[%s272 + $0x3f8] sm:$0xff] %v1647
        %s1776 = sand.u32 %s181, 1
        %s1777 = scalar_lea.sflag [#allocation3], %s1776
        %s1778 = sand.u32 %s181, 1
        %s1779 = smul.addr %s1778, 1024
        %s1780 = scalar_lea.vmem [#allocation2], %s1779
        // Predicated region
        $region49: #{layer_forward.3} parent=47 // pred_check
          %p1781 = pneg %p191
        $region50: #{layer_forward.3} parent=47 // pred_check_branch
          %1783 = sbr.rel (%p1781) target = $region52
        $region51: #{layer_forward.3} parent=47 // pred_region
          %s1784 = smul.u32 64, %s21
          %s1786 = ssub.s32 16384, 16384
          %1787 = vsyncadd %s1777, %s1786
          %s1788 = smul.addr %s1784, 2
          %s1789 = smul.addr %s1788, 128
          %s1790 = scalar_lea.hbm %s7, %s1789
          %s1791 = sshll.u32 %s1780, 4
          %s1792 = int_to_ptr.vmem [resolvable:$true] %s1791
          %1797 = dma.vmem_to_hbm [thread:$0]  %s1792, 16384, %s1790, %s1777, 256, 256, 16
        $region52: #{layer_forward.3} parent=47 // pred_fallthru
          _
      $region48: #{layer_forward.3} parent=5 // pred_fallthru
        _
      %p1798 = scmp.le.s32.totalorder 2, %s16
      // Predicated region
      $region53: #{layer_forward.3} parent=5 // pred_check
        %p1799 = pneg %p1798
      $region54: #{layer_forward.3} parent=5 // pred_check_branch
        %1801 = sbr.rel (%p1799) target = $region56
      $region55: #{layer_forward.3} parent=5 // pred_region
        %s1802 = ssub.s32 %s16, 2
        // Predicated region
        $region57: #{layer_forward.3} parent=55 // pred_check
          %p1803 = pneg %p197
        $region58: #{layer_forward.3} parent=55 // pred_check_branch
          %1805 = sbr.rel (%p1803) target = $region60
        $region59: #{layer_forward.3} parent=55 // pred_region
          %s1806 = sand.u32 %s182, 1
          %s1807 = scalar_lea.sflag [#allocation3], %s1806
          %s1808 = sand.u32 %s182, 1
          %s1809 = smul.addr %s1808, 1024
          %s1810 = scalar_lea.vmem [#allocation2], %s1809
          %1811 = dma.done %s1807, 16384
        $region60: #{layer_forward.3} parent=55 // pred_fallthru
          _
      $region56: #{layer_forward.3} parent=5 // pred_fallthru
        _
    $region6: #{layer_forward.3} parent=1 // loop_footer
      %s20 = sadd.s32 1, %s16
    $region7: #{layer_forward.3} parent=1 // loop_footer_branch
      %15 = sbr.rel target = $region3
    $region8: #{layer_forward.3} parent=1 // loop_exit
      _
    %1812 = vsyncpa [#allocation3], 1
    %s1813 = scalar_lea.sflag [#allocation3], 1
    %1814 = vsyncpa %s1813, 1

// kernel: layer_forward.2
$region0: #{layer_forward.2}
  #allocation0 [shape = 'u32[]', space=smem, size = 0x4, offset = 0x4, fixed_abs, tag = 'smem constant byte address 0x4 - core index']
  #allocation1 [shape = 'u32[144,128]{1,0:T(1,128)}', space=vmem, size = 0x12000, scoped, tag = 'internal scratch']
  %s0 = inlined_call_operand.hbm [shape: f32[2048,256], index: 0, kind: input, shape index: {}]
  %s1 = inlined_call_operand.hbm [shape: bf16[2048,256], index: 1, kind: input, shape index: {}]
  %s2 = inlined_call_operand.vmem [shape: bf16[256,128], index: 2, kind: input, shape index: {}]
  %s3 = inlined_call_operand.hbm [shape: f32[1,128], index: 3, kind: input, shape index: {}]
  %s4 = inlined_call_operand.vmem [shape: bf16[2048,128], index: 4, kind: output, shape index: {0}]
  %s5 = inlined_call_operand.vmem [shape: f32[16,128], index: 5, kind: output, shape index: {1}]
  %s6 = inlined_call_operand.vmem [shape: f32[16,128], index: 6, kind: output, shape index: {2}]
  %7 = xla_tuple %s4, %s5, %s6
  %s8 = sld [smem:[#allocation0]]
  $region81: #{layer_forward.2} parent=0
    _
  %s10 = ssub.s32 1, %s8
  %s11 = scalar_select 0, %s10, %s8
  $region1: #{layer_forward.2} parent=0
    #allocation2 [shape = 'u8[1048576]{0}', space=vmem, size = 0x100000, scoped, tag = 'input window, operand 0']
    #allocation3 [shape = 's32[2]{0}', space=sflag, size = 0x8, scoped, tag = 'scoped memory for layer_forward.2']
    #allocation4 [shape = 'u8[524288]{0}', space=vmem, size = 0x80000, scoped, tag = 'input window, operand 1']
    #allocation5 [shape = 's32[2]{0}', space=sflag, size = 0x8, scoped, tag = 'scoped memory for layer_forward.2']
    #allocation6 [shape = 'u8[512]{0}', space=vmem, size = 0x400, scoped, tag = 'input window, operand 3, single buffered']
    %12 = vsyncpa [#allocation3], 0
    %s13 = scalar_lea.sflag [#allocation3], 1
    %14 = vsyncpa %s13, 0
    %15 = vsyncpa [#allocation5], 0
    %s16 = scalar_lea.sflag [#allocation5], 1
    %17 = vsyncpa %s16, 0
    loop: start=0, step=1, limit=6
    $region2: #{layer_forward.2} parent=1 // loop_pre_header
      _
    $region3: #{layer_forward.2} parent=1 // loop_header
      %s19 = sphi 0, %s23
      %p20 = scmp.ge.s32.totalorder %s19, 6
      %s26 = sphi 0, %s38
      %s27 = sphi 0, %s34
      %s28 = sphi 0, %s26
      %s29 = sphi 0, %s27
      %s30 = sphi 0, %s28
      %s31 = sphi 0, %s29
      %s45 = sphi 0, %s47
      %s48 = sphi 0, %s45
      %s49 = sphi 0, %s48
      %s65 = sphi 0, %s49
      %s75 = sphi 0, %s77
      %s78 = sphi 0, %s75
      %s79 = sphi 0, %s78
      %s95 = sphi 0, %s79
      %s99 = sphi 0, %s99
      %s101 = sphi 0, %s99
      %s102 = sphi 0, %s101
      %s116 = sphi 0, %s102
      %s120 = sphi 0, %s120
      %s122 = sphi 0, %s120
      %s123 = sphi 0, %s122
      %s137 = sphi 0, %s123
      %s147 = sphi 0, %s149
      %s150 = sphi 0, %s147
      %s151 = sphi 0, %s150
      %s167 = sphi 0, %s151
      %s173 = sphi 0, %s175
      %s176 = sphi 0, %s173
      %s177 = sphi 0, %s176
      %s193 = sphi 0, %s177
      %s199 = sphi 0, %s201
      %s202 = sphi 0, %s199
      %s203 = sphi 0, %s202
      %s219 = sphi 0, %s203
    $region4: #{layer_forward.2} parent=1 // loop_header_branch
      %22 = sbr.rel (%p20) target = $region8
    $region5: #{layer_forward.2} parent=1 // loop_body
      %s24 = ssub.s32 %s19, 1
      %s25 = ssub.s32 %s19, 2
      %s32 = sadd.s32 1, %s27
      %p33 = scmp.ge.s32.totalorder %s32, 2
      %s34 = scalar_select %p33, 0, %s32
      %s35 = sadd.s32 1, %s26
      %s36 = scalar_select %p33, %s35, %s26
      %p37 = scmp.ge.s32.totalorder %s36, 2
      %s38 = scalar_select %p37, 0, %s36
      %s39 = smul.u32 %s26, 2
      %s40 = sadd.s32 %s39, %s27
      %s41 = smul.u32 %s38, 2
      %s42 = sadd.s32 %s41, %s34
      %s43 = ssub.s32 %s40, %s42
      %p44 = scmp.eq.s32.totalorder %s43, 0
      %s46 = sadd.s32 %s45, 1
      %s47 = scalar_select %p44, %s45, %s46
      %p50 = pneg %p44
      %p51 = scmp.eq.s32.totalorder %s19, 3
      %p52 = por %p50, %p51
      %p53 = scmp.ne.s32.totalorder %s45, %s48
      %p54 = scmp.eq.s32.totalorder %s19, 0
      %p55 = por %p53, %p54
      %p56 = scmp.ne.s32.totalorder %s45, %s48
      %p57 = scmp.eq.s32.totalorder %s24, 3
      %p58 = por %p56, %p57
      %p59 = scmp.ne.s32.totalorder %s48, %s49
      %p60 = scmp.eq.s32.totalorder %s24, 0
      %p61 = por %p59, %p60
      %p62 = scmp.ne.s32.totalorder %s48, %s49
      %p63 = scmp.eq.s32.totalorder %s25, 3
      %p64 = por %p62, %p63
      %p66 = scmp.ne.s32.totalorder %s49, %s65
      %p67 = scmp.eq.s32.totalorder %s25, 0
      %p68 = por %p66, %p67
      %s69 = smul.u32 %s26, 2
      %s70 = sadd.s32 %s69, %s27
      %s71 = smul.u32 %s38, 2
      %s72 = sadd.s32 %s71, %s34
      %s73 = ssub.s32 %s70, %s72
      %p74 = scmp.eq.s32.totalorder %s73, 0
      %s76 = sadd.s32 %s75, 1
      %s77 = scalar_select %p74, %s75, %s76
      %p80 = pneg %p74
      %p81 = scmp.eq.s32.totalorder %s19, 3
      %p82 = por %p80, %p81
      %p83 = scmp.ne.s32.totalorder %s75, %s78
      %p84 = scmp.eq.s32.totalorder %s19, 0
      %p85 = por %p83, %p84
      %p86 = scmp.ne.s32.totalorder %s75, %s78
      %p87 = scmp.eq.s32.totalorder %s24, 3
      %p88 = por %p86, %p87
      %p89 = scmp.ne.s32.totalorder %s78, %s79
      %p90 = scmp.eq.s32.totalorder %s24, 0
      %p91 = por %p89, %p90
      %p92 = scmp.ne.s32.totalorder %s78, %s79
      %p93 = scmp.eq.s32.totalorder %s25, 3
      %p94 = por %p92, %p93
      %p96 = scmp.ne.s32.totalorder %s79, %s95
      %p97 = scmp.eq.s32.totalorder %s25, 0
      %p98 = por %p96, %p97
      %s100 = sadd.s32 %s99, 1
      %p103 = scmp.eq.s32.totalorder %s19, 3
      %p104 = scmp.ne.s32.totalorder %s99, %s101
      %p105 = scmp.eq.s32.totalorder %s19, 0
      %p106 = por %p104, %p105
      %p107 = scmp.ne.s32.totalorder %s99, %s101
      %p108 = scmp.eq.s32.totalorder %s24, 3
      %p109 = por %p107, %p108
      %p110 = scmp.ne.s32.totalorder %s101, %s102
      %p111 = scmp.eq.s32.totalorder %s24, 0
      %p112 = por %p110, %p111
      %p113 = scmp.ne.s32.totalorder %s101, %s102
      %p114 = scmp.eq.s32.totalorder %s25, 3
      %p115 = por %p113, %p114
      %p117 = scmp.ne.s32.totalorder %s102, %s116
      %p118 = scmp.eq.s32.totalorder %s25, 0
      %p119 = por %p117, %p118
      %s121 = sadd.s32 %s120, 1
      %p124 = scmp.eq.s32.totalorder %s19, 3
      %p125 = scmp.ne.s32.totalorder %s120, %s122
      %p126 = scmp.eq.s32.totalorder %s19, 0
      %p127 = por %p125, %p126
      %p128 = scmp.ne.s32.totalorder %s120, %s122
      %p129 = scmp.eq.s32.totalorder %s24, 3
      %p130 = por %p128, %p129
      %p131 = scmp.ne.s32.totalorder %s122, %s123
      %p132 = scmp.eq.s32.totalorder %s24, 0
      %p133 = por %p131, %p132
      %p134 = scmp.ne.s32.totalorder %s122, %s123
      %p135 = scmp.eq.s32.totalorder %s25, 3
      %p136 = por %p134, %p135
      %p138 = scmp.ne.s32.totalorder %s123, %s137
      %p139 = scmp.eq.s32.totalorder %s25, 0
      %p140 = por %p138, %p139
      %s141 = smul.u32 %s26, 2
      %s142 = sadd.s32 %s141, %s27
      %s143 = smul.u32 %s38, 2
      %s144 = sadd.s32 %s143, %s34
      %s145 = ssub.s32 %s142, %s144
      %p146 = scmp.eq.s32.totalorder %s145, 0
      %s148 = sadd.s32 %s147, 1
      %s149 = scalar_select %p146, %s147, %s148
      %p152 = pneg %p146
      %p153 = scmp.eq.s32.totalorder %s19, 3
      %p154 = por %p152, %p153
      %p155 = scmp.ne.s32.totalorder %s147, %s150
      %p156 = scmp.eq.s32.totalorder %s19, 0
      %p157 = por %p155, %p156
      %p158 = scmp.ne.s32.totalorder %s147, %s150
      %p159 = scmp.eq.s32.totalorder %s24, 3
      %p160 = por %p158, %p159
      %p161 = scmp.ne.s32.totalorder %s150, %s151
      %p162 = scmp.eq.s32.totalorder %s24, 0
      %p163 = por %p161, %p162
      %p164 = scmp.ne.s32.totalorder %s150, %s151
      %p165 = scmp.eq.s32.totalorder %s25, 3
      %p166 = por %p164, %p165
      %p168 = scmp.ne.s32.totalorder %s151, %s167
      %p169 = scmp.eq.s32.totalorder %s25, 0
      %p170 = por %p168, %p169
      %s171 = ssub.s32 %s26, %s38
      %p172 = scmp.eq.s32.totalorder %s171, 0
      %s174 = sadd.s32 %s173, 1
      %s175 = scalar_select %p172, %s173, %s174
      %p178 = pneg %p172
      %p179 = scmp.eq.s32.totalorder %s19, 3
      %p180 = por %p178, %p179
      %p181 = scmp.ne.s32.totalorder %s173, %s176
      %p182 = scmp.eq.s32.totalorder %s19, 0
      %p183 = por %p181, %p182
      %p184 = scmp.ne.s32.totalorder %s173, %s176
      %p185 = scmp.eq.s32.totalorder %s24, 3
      %p186 = por %p184, %p185
      %p187 = scmp.ne.s32.totalorder %s176, %s177
      %p188 = scmp.eq.s32.totalorder %s24, 0
      %p189 = por %p187, %p188
      %p190 = scmp.ne.s32.totalorder %s176, %s177
      %p191 = scmp.eq.s32.totalorder %s25, 3
      %p192 = por %p190, %p191
      %p194 = scmp.ne.s32.totalorder %s177, %s193
      %p195 = scmp.eq.s32.totalorder %s25, 0
      %p196 = por %p194, %p195
      %s197 = ssub.s32 %s26, %s38
      %p198 = scmp.eq.s32.totalorder %s197, 0
      %s200 = sadd.s32 %s199, 1
      %s201 = scalar_select %p198, %s199, %s200
      %p204 = pneg %p198
      %p205 = scmp.eq.s32.totalorder %s19, 3
      %p206 = por %p204, %p205
      %p207 = scmp.ne.s32.totalorder %s199, %s202
      %p208 = scmp.eq.s32.totalorder %s19, 0
      %p209 = por %p207, %p208
      %p210 = scmp.ne.s32.totalorder %s199, %s202
      %p211 = scmp.eq.s32.totalorder %s24, 3
      %p212 = por %p210, %p211
      %p213 = scmp.ne.s32.totalorder %s202, %s203
      %p214 = scmp.eq.s32.totalorder %s24, 0
      %p215 = por %p213, %p214
      %p216 = scmp.ne.s32.totalorder %s202, %s203
      %p217 = scmp.eq.s32.totalorder %s25, 3
      %p218 = por %p216, %p217
      %p220 = scmp.ne.s32.totalorder %s203, %s219
      %p221 = scmp.eq.s32.totalorder %s25, 0
      %p222 = por %p220, %p221
      %p223 = scmp.le.s32.totalorder 1, %s19
      %p224 = scmp.lt.s32.totalorder %s19, 5
      %p225 = pnand %p223, %p224
      %p226 = pneg %p225
      // Predicated region
      $region9: #{layer_forward.2} parent=5 // pred_check
        _
      $region10: #{layer_forward.2} parent=5 // pred_check_branch
        %228 = sbr.rel (%p225) target = $region12
      $region11: #{layer_forward.2} parent=5 // pred_region
        %s229 = ssub.s32 %s19, 1
        // Predicated region
        $region13: #{layer_forward.2} parent=11 // pred_check
          %p230 = pneg %p112
        $region14: #{layer_forward.2} parent=11 // pred_check_branch
          %232 = sbr.rel (%p230) target = $region16
        $region15: #{layer_forward.2} parent=11 // pred_region
          _
        $region16: #{layer_forward.2} parent=11 // pred_fallthru
          _
        // Predicated region
        $region17: #{layer_forward.2} parent=11 // pred_check
          %p233 = pneg %p133
        $region18: #{layer_forward.2} parent=11 // pred_check_branch
          %235 = sbr.rel (%p233) target = $region20
        $region19: #{layer_forward.2} parent=11 // pred_region
          %s237 = ssub.s32 16, 16
          %238 = vsyncadd [#allocation5], %s237
          %s240 = sshll.u32 [#allocation6], 4
          %s241 = int_to_ptr.vmem [resolvable:$true] %s240
          %243 = dma.hbm_to_vmem [thread:$0]  %s3, 16, %s241, [#allocation5]
        $region20: #{layer_forward.2} parent=11 // pred_fallthru
          _
      $region12: #{layer_forward.2} parent=5 // pred_fallthru
        _
      %p244 = scmp.lt.s32.totalorder %s19, 4
      // Predicated region
      $region21: #{layer_forward.2} parent=5 // pred_check
        %p245 = pneg %p244
      $region22: #{layer_forward.2} parent=5 // pred_check_branch
        %247 = sbr.rel (%p245) target = $region24
      $region23: #{layer_forward.2} parent=5 // pred_region
        // Predicated region
        $region25: #{layer_forward.2} parent=23 // pred_check
          %p248 = pneg %p55
        $region26: #{layer_forward.2} parent=23 // pred_check_branch
          %250 = sbr.rel (%p248) target = $region28
        $region27: #{layer_forward.2} parent=23 // pred_region
          %s251 = sand.u32 %s45, 1
          %s252 = scalar_lea.sflag [#allocation3], %s251
          %s253 = sand.u32 %s45, 1
          %s254 = smul.addr %s253, 1024
          %s255 = scalar_lea.vmem [#allocation2], %s254
          %s256 = smul.u32 %s26, 2
          %s257 = sadd.s32 %s256, %s27
          %s258 = smul.u32 64, %s257
          %s260 = ssub.s32 16384, 16384
          %261 = vsyncadd %s252, %s260
          %s262 = smul.addr %s258, 2
          %s263 = smul.addr %s262, 128
          %s264 = scalar_lea.hbm %s0, %s263
          %s265 = sshll.u32 %s255, 4
          %s266 = int_to_ptr.vmem [resolvable:$true] %s265
          %271 = dma.hbm_to_vmem [thread:$0]  %s264, 16384, %s266, %s252, 256, 256, 16
        $region28: #{layer_forward.2} parent=23 // pred_fallthru
          _
        // Predicated region
        $region29: #{layer_forward.2} parent=23 // pred_check
          %p272 = pneg %p85
        $region30: #{layer_forward.2} parent=23 // pred_check_branch
          %274 = sbr.rel (%p272) target = $region32
        $region31: #{layer_forward.2} parent=23 // pred_region
          %s275 = sand.u32 %s19, 1
          %s276 = scalar_lea.sflag [#allocation5], %s275
          %s277 = sand.u32 %s75, 1
          %s278 = smul.addr %s277, 512
          %s279 = scalar_lea.vmem [#allocation4], %s278
          %s280 = smul.u32 %s26, 2
          %s281 = sadd.s32 %s280, %s27
          %s282 = smul.u32 64, %s281
          %s284 = ssub.s32 8192, 8192
          %285 = vsyncadd %s276, %s284
          %s286 = smul.addr %s282, 2
          %s287 = smul.addr %s286, 64
          %s288 = scalar_lea.hbm %s1, %s287
          %s289 = sshll.u32 %s279, 4
          %s290 = int_to_ptr.vmem [resolvable:$true] %s289
          %295 = dma.hbm_to_vmem [thread:$0]  %s288, 8192, %s290, %s276, 128, 128, 8
        $region32: #{layer_forward.2} parent=23 // pred_fallthru
          _
      $region24: #{layer_forward.2} parent=5 // pred_fallthru
        _
      %p296 = scmp.le.s32.totalorder 1, %s19
      %p297 = scmp.lt.s32.totalorder %s19, 5
      %p298 = pnand %p296, %p297
      %p299 = pneg %p298
      // Predicated region
      $region33: #{layer_forward.2} parent=5 // pred_check
        _
      $region34: #{layer_forward.2} parent=5 // pred_check_branch
        %301 = sbr.rel (%p298) target = $region36
      $region35: #{layer_forward.2} parent=5 // pred_region
        %s302 = ssub.s32 %s19, 1
        %s303 = sand.u32 %s48, 1
        %s304 = scalar_lea.sflag [#allocation3], %s303
        %s305 = sand.u32 %s48, 1
        %s306 = smul.addr %s305, 1024
        %s307 = scalar_lea.vmem [#allocation2], %s306
        // Predicated region
        $region37: #{layer_forward.2} parent=35 // pred_check
          %p308 = pneg %p61
        $region38: #{layer_forward.2} parent=35 // pred_check_branch
          %310 = sbr.rel (%p308) target = $region40
        $region39: #{layer_forward.2} parent=35 // pred_region
          %311 = dma.done %s304, 16384
        $region40: #{layer_forward.2} parent=35 // pred_fallthru
          _
        %s312 = sand.u32 %s24, 1
        %s313 = scalar_lea.sflag [#allocation5], %s312
        %s314 = sand.u32 %s78, 1
        %s315 = smul.addr %s314, 512
        %s316 = scalar_lea.vmem [#allocation4], %s315
        // Predicated region
        $region41: #{layer_forward.2} parent=35 // pred_check
          %p317 = pneg %p91
        $region42: #{layer_forward.2} parent=35 // pred_check_branch
          %319 = sbr.rel (%p317) target = $region44
        $region43: #{layer_forward.2} parent=35 // pred_region
          %320 = dma.done %s313, 8192
        $region44: #{layer_forward.2} parent=35 // pred_fallthru
          _
        // Predicated region
        $region45: #{layer_forward.2} parent=35 // pred_check
          %p321 = pneg %p133
        $region46: #{layer_forward.2} parent=35 // pred_check_branch
          %323 = sbr.rel (%p321) target = $region48
        $region47: #{layer_forward.2} parent=35 // pred_region
          %324 = dma.done [#allocation5], 16
        $region48: #{layer_forward.2} parent=35 // pred_fallthru
          _
        %s325 = sand.u32 %s48, 1
        %s326 = scalar_lea.sflag [#allocation3], %s325
        %s327 = sand.u32 %s48, 1
        %s328 = smul.addr %s327, 1024
        %s329 = scalar_lea.vmem [#allocation2], %s328
        %p330 = pneg %p61
        %p331 = pneg %p58
        %s332 = sand.u32 %s24, 1
        %s333 = scalar_lea.sflag [#allocation5], %s332
        %s334 = sand.u32 %s78, 1
        %s335 = smul.addr %s334, 512
        %s336 = scalar_lea.vmem [#allocation4], %s335
        %p337 = pneg %p91
        %p338 = pneg %p88
        %p339 = pneg %p112
        %p340 = pneg %p109
        %p341 = pneg %p133
        %p342 = pneg %p130
        %p343 = pneg %p163
        %p344 = pneg %p160
        %s345 = smul.u32 %s28, 2
        %s346 = sadd.s32 %s345, %s29
        %s347 = smul.u32 64, %s346
        %p348 = scmp.lt.s32.totalorder %s347, 255
        %s349 = scalar_select %p348, %s347, 255
        %s350 = smul.addr %s349, 4
        %s351 = scalar_lea.vmem %s4, %s350
        %p352 = pneg %p189
        %p353 = pneg %p186
        %p354 = scmp.lt.s32.totalorder %s28, 1
        %s355 = scalar_select %p354, %s28, 1
        %s356 = smul.addr %s355, 8
        %s357 = scalar_lea.vmem %s5, %s356
        %p358 = pneg %p215
        %p359 = pneg %p212
        %p360 = scmp.lt.s32.totalorder %s28, 1
        %s361 = scalar_select %p360, %s28, 1
        %s362 = smul.addr %s361, 8
        %s363 = scalar_lea.vmem %s6, %s362
        %s364 = smul.u32 %s28, 2
        %s365 = sadd.s32 %s364, %s29
        %s366 = smul.u32 64, %s365
        %s367 = smul.u32 %s28, 2
        %s368 = sadd.s32 %s367, %s29
        %s369 = smul.u32 64, %s368
        %s370 = smul.u32 %s28, 2
        %s371 = sadd.s32 %s370, %s29
        %s372 = smul.u32 64, %s371
        %p373 = scmp.lt.s32.totalorder %s372, 255
        %s374 = scalar_select %p373, %s372, 255
        %s375 = smul.addr %s374, 4
        %s376 = scalar_lea.vmem %s4, %s375
        %s377 = smul.u32 %s28, 2
        %s378 = sadd.s32 %s377, %s29
        %s379 = smul.u32 64, %s378
        %p380 = scmp.lt.s32.totalorder %s28, 1
        %s381 = scalar_select %p380, %s28, 1
        %s382 = smul.addr %s381, 8
        %s383 = scalar_lea.vmem %s5, %s382
        %p384 = scmp.lt.s32.totalorder %s28, 1
        %s385 = scalar_select %p384, %s28, 1
        %s386 = smul.addr %s385, 8
        %s387 = scalar_lea.vmem %s6, %s386
        %v391 = vld [vmem:[%s307] sm:$0xff]
        %v392 = vld [vmem:[%s307 + $0x8] sm:$0xff]
        %v393 = vld [vmem:[%s307 + $0x10] sm:$0xff]
        %v394 = vld [vmem:[%s307 + $0x18] sm:$0xff]
        %v395 = vld [vmem:[%s307 + $0x20] sm:$0xff]
        %v396 = vld [vmem:[%s307 + $0x28] sm:$0xff]
        %v397 = vld [vmem:[%s307 + $0x30] sm:$0xff]
        %v398 = vld [vmem:[%s307 + $0x38] sm:$0xff]
        %v399 = vld [vmem:[%s307 + $0x40] sm:$0xff]
        %v400 = vld [vmem:[%s307 + $0x48] sm:$0xff]
        %v401 = vld [vmem:[%s307 + $0x50] sm:$0xff]
        %v402 = vld [vmem:[%s307 + $0x58] sm:$0xff]
        %v403 = vld [vmem:[%s307 + $0x60] sm:$0xff]
        %v404 = vld [vmem:[%s307 + $0x68] sm:$0xff]
        %v405 = vld [vmem:[%s307 + $0x70] sm:$0xff]
        %v406 = vld [vmem:[%s307 + $0x78] sm:$0xff]
        %v407 = vld [vmem:[%s307 + $0x80] sm:$0xff]
        %v408 = vld [vmem:[%s307 + $0x88] sm:$0xff]
        %v409 = vld [vmem:[%s307 + $0x90] sm:$0xff]
        %v410 = vld [vmem:[%s307 + $0x98] sm:$0xff]
        %v411 = vld [vmem:[%s307 + $0xa0] sm:$0xff]
        %v412 = vld [vmem:[%s307 + $0xa8] sm:$0xff]
        %v413 = vld [vmem:[%s307 + $0xb0] sm:$0xff]
        %v414 = vld [vmem:[%s307 + $0xb8] sm:$0xff]
        %v415 = vld [vmem:[%s307 + $0xc0] sm:$0xff]
        %v416 = vld [vmem:[%s307 + $0xc8] sm:$0xff]
        %v417 = vld [vmem:[%s307 + $0xd0] sm:$0xff]
        %v418 = vld [vmem:[%s307 + $0xd8] sm:$0xff]
        %v419 = vld [vmem:[%s307 + $0xe0] sm:$0xff]
        %v420 = vld [vmem:[%s307 + $0xe8] sm:$0xff]
        %v421 = vld [vmem:[%s307 + $0xf0] sm:$0xff]
        %v422 = vld [vmem:[%s307 + $0xf8] sm:$0xff]
        %v423 = vld [vmem:[%s307 + $0x100] sm:$0xff]
        %v424 = vld [vmem:[%s307 + $0x108] sm:$0xff]
        %v425 = vld [vmem:[%s307 + $0x110] sm:$0xff]
        %v426 = vld [vmem:[%s307 + $0x118] sm:$0xff]
        %v427 = vld [vmem:[%s307 + $0x120] sm:$0xff]
        %v428 = vld [vmem:[%s307 + $0x128] sm:$0xff]
        %v429 = vld [vmem:[%s307 + $0x130] sm:$0xff]
        %v430 = vld [vmem:[%s307 + $0x138] sm:$0xff]
        %v431 = vld [vmem:[%s307 + $0x140] sm:$0xff]
        %v432 = vld [vmem:[%s307 + $0x148] sm:$0xff]
        %v433 = vld [vmem:[%s307 + $0x150] sm:$0xff]
        %v434 = vld [vmem:[%s307 + $0x158] sm:$0xff]
        %v435 = vld [vmem:[%s307 + $0x160] sm:$0xff]
        %v436 = vld [vmem:[%s307 + $0x168] sm:$0xff]
        %v437 = vld [vmem:[%s307 + $0x170] sm:$0xff]
        %v438 = vld [vmem:[%s307 + $0x178] sm:$0xff]
        %v439 = vld [vmem:[%s307 + $0x180] sm:$0xff]
        %v440 = vld [vmem:[%s307 + $0x188] sm:$0xff]
        %v441 = vld [vmem:[%s307 + $0x190] sm:$0xff]
        %v442 = vld [vmem:[%s307 + $0x198] sm:$0xff]
        %v443 = vld [vmem:[%s307 + $0x1a0] sm:$0xff]
        %v444 = vld [vmem:[%s307 + $0x1a8] sm:$0xff]
        %v445 = vld [vmem:[%s307 + $0x1b0] sm:$0xff]
        %v446 = vld [vmem:[%s307 + $0x1b8] sm:$0xff]
        %v447 = vld [vmem:[%s307 + $0x1c0] sm:$0xff]
        %v448 = vld [vmem:[%s307 + $0x1c8] sm:$0xff]
        %v449 = vld [vmem:[%s307 + $0x1d0] sm:$0xff]
        %v450 = vld [vmem:[%s307 + $0x1d8] sm:$0xff]
        %v451 = vld [vmem:[%s307 + $0x1e0] sm:$0xff]
        %v452 = vld [vmem:[%s307 + $0x1e8] sm:$0xff]
        %v453 = vld [vmem:[%s307 + $0x1f0] sm:$0xff]
        %v454 = vld [vmem:[%s307 + $0x1f8] sm:$0xff]
        %v455 = vld [vmem:[%s307 + $0x200] sm:$0xff]
        %v456 = vld [vmem:[%s307 + $0x208] sm:$0xff]
        %v457 = vld [vmem:[%s307 + $0x210] sm:$0xff]
        %v458 = vld [vmem:[%s307 + $0x218] sm:$0xff]
        %v459 = vld [vmem:[%s307 + $0x220] sm:$0xff]
        %v460 = vld [vmem:[%s307 + $0x228] sm:$0xff]
        %v461 = vld [vmem:[%s307 + $0x230] sm:$0xff]
        %v462 = vld [vmem:[%s307 + $0x238] sm:$0xff]
        %v463 = vld [vmem:[%s307 + $0x240] sm:$0xff]
        %v464 = vld [vmem:[%s307 + $0x248] sm:$0xff]
        %v465 = vld [vmem:[%s307 + $0x250] sm:$0xff]
        %v466 = vld [vmem:[%s307 + $0x258] sm:$0xff]
        %v467 = vld [vmem:[%s307 + $0x260] sm:$0xff]
        %v468 = vld [vmem:[%s307 + $0x268] sm:$0xff]
        %v469 = vld [vmem:[%s307 + $0x270] sm:$0xff]
        %v470 = vld [vmem:[%s307 + $0x278] sm:$0xff]
        %v471 = vld [vmem:[%s307 + $0x280] sm:$0xff]
        %v472 = vld [vmem:[%s307 + $0x288] sm:$0xff]
        %v473 = vld [vmem:[%s307 + $0x290] sm:$0xff]
        %v474 = vld [vmem:[%s307 + $0x298] sm:$0xff]
        %v475 = vld [vmem:[%s307 + $0x2a0] sm:$0xff]
        %v476 = vld [vmem:[%s307 + $0x2a8] sm:$0xff]
        %v477 = vld [vmem:[%s307 + $0x2b0] sm:$0xff]
        %v478 = vld [vmem:[%s307 + $0x2b8] sm:$0xff]
        %v479 = vld [vmem:[%s307 + $0x2c0] sm:$0xff]
        %v480 = vld [vmem:[%s307 + $0x2c8] sm:$0xff]
        %v481 = vld [vmem:[%s307 + $0x2d0] sm:$0xff]
        %v482 = vld [vmem:[%s307 + $0x2d8] sm:$0xff]
        %v483 = vld [vmem:[%s307 + $0x2e0] sm:$0xff]
        %v484 = vld [vmem:[%s307 + $0x2e8] sm:$0xff]
        %v485 = vld [vmem:[%s307 + $0x2f0] sm:$0xff]
        %v486 = vld [vmem:[%s307 + $0x2f8] sm:$0xff]
        %v487 = vld [vmem:[%s307 + $0x300] sm:$0xff]
        %v488 = vld [vmem:[%s307 + $0x308] sm:$0xff]
        %v489 = vld [vmem:[%s307 + $0x310] sm:$0xff]
        %v490 = vld [vmem:[%s307 + $0x318] sm:$0xff]
        %v491 = vld [vmem:[%s307 + $0x320] sm:$0xff]
        %v492 = vld [vmem:[%s307 + $0x328] sm:$0xff]
        %v493 = vld [vmem:[%s307 + $0x330] sm:$0xff]
        %v494 = vld [vmem:[%s307 + $0x338] sm:$0xff]
        %v495 = vld [vmem:[%s307 + $0x340] sm:$0xff]
        %v496 = vld [vmem:[%s307 + $0x348] sm:$0xff]
        %v497 = vld [vmem:[%s307 + $0x350] sm:$0xff]
        %v498 = vld [vmem:[%s307 + $0x358] sm:$0xff]
        %v499 = vld [vmem:[%s307 + $0x360] sm:$0xff]
        %v500 = vld [vmem:[%s307 + $0x368] sm:$0xff]
        %v501 = vld [vmem:[%s307 + $0x370] sm:$0xff]
        %v502 = vld [vmem:[%s307 + $0x378] sm:$0xff]
        %v503 = vld [vmem:[%s307 + $0x380] sm:$0xff]
        %v504 = vld [vmem:[%s307 + $0x388] sm:$0xff]
        %v505 = vld [vmem:[%s307 + $0x390] sm:$0xff]
        %v506 = vld [vmem:[%s307 + $0x398] sm:$0xff]
        %v507 = vld [vmem:[%s307 + $0x3a0] sm:$0xff]
        %v508 = vld [vmem:[%s307 + $0x3a8] sm:$0xff]
        %v509 = vld [vmem:[%s307 + $0x3b0] sm:$0xff]
        %v510 = vld [vmem:[%s307 + $0x3b8] sm:$0xff]
        %v511 = vld [vmem:[%s307 + $0x3c0] sm:$0xff]
        %v512 = vld [vmem:[%s307 + $0x3c8] sm:$0xff]
        %v513 = vld [vmem:[%s307 + $0x3d0] sm:$0xff]
        %v514 = vld [vmem:[%s307 + $0x3d8] sm:$0xff]
        %v515 = vld [vmem:[%s307 + $0x3e0] sm:$0xff]
        %v516 = vld [vmem:[%s307 + $0x3e8] sm:$0xff]
        %v517 = vld [vmem:[%s307 + $0x3f0] sm:$0xff]
        %v518 = vld [vmem:[%s307 + $0x3f8] sm:$0xff]
        %v519 = vld [vmem:[%s316] sm:$0xff]
        %v520 = vld [vmem:[%s316 + $0x8] sm:$0xff]
        %v521 = vld [vmem:[%s316 + $0x10] sm:$0xff]
        %v522 = vld [vmem:[%s316 + $0x18] sm:$0xff]
        %v523 = vld [vmem:[%s316 + $0x20] sm:$0xff]
        %v524 = vld [vmem:[%s316 + $0x28] sm:$0xff]
        %v525 = vld [vmem:[%s316 + $0x30] sm:$0xff]
        %v526 = vld [vmem:[%s316 + $0x38] sm:$0xff]
        %v527 = vld [vmem:[%s316 + $0x40] sm:$0xff]
        %v528 = vld [vmem:[%s316 + $0x48] sm:$0xff]
        %v529 = vld [vmem:[%s316 + $0x50] sm:$0xff]
        %v530 = vld [vmem:[%s316 + $0x58] sm:$0xff]
        %v531 = vld [vmem:[%s316 + $0x60] sm:$0xff]
        %v532 = vld [vmem:[%s316 + $0x68] sm:$0xff]
        %v533 = vld [vmem:[%s316 + $0x70] sm:$0xff]
        %v534 = vld [vmem:[%s316 + $0x78] sm:$0xff]
        %v535 = vld [vmem:[%s316 + $0x80] sm:$0xff]
        %v536 = vld [vmem:[%s316 + $0x88] sm:$0xff]
        %v537 = vld [vmem:[%s316 + $0x90] sm:$0xff]
        %v538 = vld [vmem:[%s316 + $0x98] sm:$0xff]
        %v539 = vld [vmem:[%s316 + $0xa0] sm:$0xff]
        %v540 = vld [vmem:[%s316 + $0xa8] sm:$0xff]
        %v541 = vld [vmem:[%s316 + $0xb0] sm:$0xff]
        %v542 = vld [vmem:[%s316 + $0xb8] sm:$0xff]
        %v543 = vld [vmem:[%s316 + $0xc0] sm:$0xff]
        %v544 = vld [vmem:[%s316 + $0xc8] sm:$0xff]
        %v545 = vld [vmem:[%s316 + $0xd0] sm:$0xff]
        %v546 = vld [vmem:[%s316 + $0xd8] sm:$0xff]
        %v547 = vld [vmem:[%s316 + $0xe0] sm:$0xff]
        %v548 = vld [vmem:[%s316 + $0xe8] sm:$0xff]
        %v549 = vld [vmem:[%s316 + $0xf0] sm:$0xff]
        %v550 = vld [vmem:[%s316 + $0xf8] sm:$0xff]
        %v551 = vld [vmem:[%s316 + $0x100] sm:$0xff]
        %v552 = vld [vmem:[%s316 + $0x108] sm:$0xff]
        %v553 = vld [vmem:[%s316 + $0x110] sm:$0xff]
        %v554 = vld [vmem:[%s316 + $0x118] sm:$0xff]
        %v555 = vld [vmem:[%s316 + $0x120] sm:$0xff]
        %v556 = vld [vmem:[%s316 + $0x128] sm:$0xff]
        %v557 = vld [vmem:[%s316 + $0x130] sm:$0xff]
        %v558 = vld [vmem:[%s316 + $0x138] sm:$0xff]
        %v559 = vld [vmem:[%s316 + $0x140] sm:$0xff]
        %v560 = vld [vmem:[%s316 + $0x148] sm:$0xff]
        %v561 = vld [vmem:[%s316 + $0x150] sm:$0xff]
        %v562 = vld [vmem:[%s316 + $0x158] sm:$0xff]
        %v563 = vld [vmem:[%s316 + $0x160] sm:$0xff]
        %v564 = vld [vmem:[%s316 + $0x168] sm:$0xff]
        %v565 = vld [vmem:[%s316 + $0x170] sm:$0xff]
        %v566 = vld [vmem:[%s316 + $0x178] sm:$0xff]
        %v567 = vld [vmem:[%s316 + $0x180] sm:$0xff]
        %v568 = vld [vmem:[%s316 + $0x188] sm:$0xff]
        %v569 = vld [vmem:[%s316 + $0x190] sm:$0xff]
        %v570 = vld [vmem:[%s316 + $0x198] sm:$0xff]
        %v571 = vld [vmem:[%s316 + $0x1a0] sm:$0xff]
        %v572 = vld [vmem:[%s316 + $0x1a8] sm:$0xff]
        %v573 = vld [vmem:[%s316 + $0x1b0] sm:$0xff]
        %v574 = vld [vmem:[%s316 + $0x1b8] sm:$0xff]
        %v575 = vld [vmem:[%s316 + $0x1c0] sm:$0xff]
        %v576 = vld [vmem:[%s316 + $0x1c8] sm:$0xff]
        %v577 = vld [vmem:[%s316 + $0x1d0] sm:$0xff]
        %v578 = vld [vmem:[%s316 + $0x1d8] sm:$0xff]
        %v579 = vld [vmem:[%s316 + $0x1e0] sm:$0xff]
        %v580 = vld [vmem:[%s316 + $0x1e8] sm:$0xff]
        %v581 = vld [vmem:[%s316 + $0x1f0] sm:$0xff]
        %v582 = vld [vmem:[%s316 + $0x1f8] sm:$0xff]
        %vm583 = vcmp.gt.bf16.partialorder %v519, 0
        %vm584 = vcmp.gt.bf16.partialorder %v520, 0
        %vm585 = vcmp.gt.bf16.partialorder %v521, 0
        %vm586 = vcmp.gt.bf16.partialorder %v522, 0
        %vm587 = vcmp.gt.bf16.partialorder %v523, 0
        %vm588 = vcmp.gt.bf16.partialorder %v524, 0
        %vm589 = vcmp.gt.bf16.partialorder %v525, 0
        %vm590 = vcmp.gt.bf16.partialorder %v526, 0
        %vm591 = vcmp.gt.bf16.partialorder %v527, 0
        %vm592 = vcmp.gt.bf16.partialorder %v528, 0
        %vm593 = vcmp.gt.bf16.partialorder %v529, 0
        %vm594 = vcmp.gt.bf16.partialorder %v530, 0
        %vm595 = vcmp.gt.bf16.partialorder %v531, 0
        %vm596 = vcmp.gt.bf16.partialorder %v532, 0
        %vm597 = vcmp.gt.bf16.partialorder %v533, 0
        %vm598 = vcmp.gt.bf16.partialorder %v534, 0
        %vm599 = vcmp.gt.bf16.partialorder %v535, 0
        %vm600 = vcmp.gt.bf16.partialorder %v536, 0
        %vm601 = vcmp.gt.bf16.partialorder %v537, 0
        %vm602 = vcmp.gt.bf16.partialorder %v538, 0
        %vm603 = vcmp.gt.bf16.partialorder %v539, 0
        %vm604 = vcmp.gt.bf16.partialorder %v540, 0
        %vm605 = vcmp.gt.bf16.partialorder %v541, 0
        %vm606 = vcmp.gt.bf16.partialorder %v542, 0
        %vm607 = vcmp.gt.bf16.partialorder %v543, 0
        %vm608 = vcmp.gt.bf16.partialorder %v544, 0
        %vm609 = vcmp.gt.bf16.partialorder %v545, 0
        %vm610 = vcmp.gt.bf16.partialorder %v546, 0
        %vm611 = vcmp.gt.bf16.partialorder %v547, 0
        %vm612 = vcmp.gt.bf16.partialorder %v548, 0
        %vm613 = vcmp.gt.bf16.partialorder %v549, 0
        %vm614 = vcmp.gt.bf16.partialorder %v550, 0
        %vm615 = vcmp.gt.bf16.partialorder %v551, 0
        %vm616 = vcmp.gt.bf16.partialorder %v552, 0
        %vm617 = vcmp.gt.bf16.partialorder %v553, 0
        %vm618 = vcmp.gt.bf16.partialorder %v554, 0
        %vm619 = vcmp.gt.bf16.partialorder %v555, 0
        %vm620 = vcmp.gt.bf16.partialorder %v556, 0
        %vm621 = vcmp.gt.bf16.partialorder %v557, 0
        %vm622 = vcmp.gt.bf16.partialorder %v558, 0
        %vm623 = vcmp.gt.bf16.partialorder %v559, 0
        %vm624 = vcmp.gt.bf16.partialorder %v560, 0
        %vm625 = vcmp.gt.bf16.partialorder %v561, 0
        %vm626 = vcmp.gt.bf16.partialorder %v562, 0
        %vm627 = vcmp.gt.bf16.partialorder %v563, 0
        %vm628 = vcmp.gt.bf16.partialorder %v564, 0
        %vm629 = vcmp.gt.bf16.partialorder %v565, 0
        %vm630 = vcmp.gt.bf16.partialorder %v566, 0
        %vm631 = vcmp.gt.bf16.partialorder %v567, 0
        %vm632 = vcmp.gt.bf16.partialorder %v568, 0
        %vm633 = vcmp.gt.bf16.partialorder %v569, 0
        %vm634 = vcmp.gt.bf16.partialorder %v570, 0
        %vm635 = vcmp.gt.bf16.partialorder %v571, 0
        %vm636 = vcmp.gt.bf16.partialorder %v572, 0
        %vm637 = vcmp.gt.bf16.partialorder %v573, 0
        %vm638 = vcmp.gt.bf16.partialorder %v574, 0
        %vm639 = vcmp.gt.bf16.partialorder %v575, 0
        %vm640 = vcmp.gt.bf16.partialorder %v576, 0
        %vm641 = vcmp.gt.bf16.partialorder %v577, 0
        %vm642 = vcmp.gt.bf16.partialorder %v578, 0
        %vm643 = vcmp.gt.bf16.partialorder %v579, 0
        %vm644 = vcmp.gt.bf16.partialorder %v580, 0
        %vm645 = vcmp.gt.bf16.partialorder %v581, 0
        %vm646 = vcmp.gt.bf16.partialorder %v582, 0
        %v647 = vsel %vm583, 65537, 0
        %v648 = vsel %vm584, 65537, 0
        %v649 = vsel %vm585, 65537, 0
        %v650 = vsel %vm586, 65537, 0
        %v651 = vsel %vm587, 65537, 0
        %v652 = vsel %vm588, 65537, 0
        %v653 = vsel %vm589, 65537, 0
        %v654 = vsel %vm590, 65537, 0
        %v655 = vsel %vm591, 65537, 0
        %v656 = vsel %vm592, 65537, 0
        %v657 = vsel %vm593, 65537, 0
        %v658 = vsel %vm594, 65537, 0
        %v659 = vsel %vm595, 65537, 0
        %v660 = vsel %vm596, 65537, 0
        %v661 = vsel %vm597, 65537, 0
        %v662 = vsel %vm598, 65537, 0
        %v663 = vsel %vm599, 65537, 0
        %v664 = vsel %vm600, 65537, 0
        %v665 = vsel %vm601, 65537, 0
        %v666 = vsel %vm602, 65537, 0
        %v667 = vsel %vm603, 65537, 0
        %v668 = vsel %vm604, 65537, 0
        %v669 = vsel %vm605, 65537, 0
        %v670 = vsel %vm606, 65537, 0
        %v671 = vsel %vm607, 65537, 0
        %v672 = vsel %vm608, 65537, 0
        %v673 = vsel %vm609, 65537, 0
        %v674 = vsel %vm610, 65537, 0
        %v675 = vsel %vm611, 65537, 0
        %v676 = vsel %vm612, 65537, 0
        %v677 = vsel %vm613, 65537, 0
        %v678 = vsel %vm614, 65537, 0
        %v679 = vsel %vm615, 65537, 0
        %v680 = vsel %vm616, 65537, 0
        %v681 = vsel %vm617, 65537, 0
        %v682 = vsel %vm618, 65537, 0
        %v683 = vsel %vm619, 65537, 0
        %v684 = vsel %vm620, 65537, 0
        %v685 = vsel %vm621, 65537, 0
        %v686 = vsel %vm622, 65537, 0
        %v687 = vsel %vm623, 65537, 0
        %v688 = vsel %vm624, 65537, 0
        %v689 = vsel %vm625, 65537, 0
        %v690 = vsel %vm626, 65537, 0
        %v691 = vsel %vm627, 65537, 0
        %v692 = vsel %vm628, 65537, 0
        %v693 = vsel %vm629, 65537, 0
        %v694 = vsel %vm630, 65537, 0
        %v695 = vsel %vm631, 65537, 0
        %v696 = vsel %vm632, 65537, 0
        %v697 = vsel %vm633, 65537, 0
        %v698 = vsel %vm634, 65537, 0
        %v699 = vsel %vm635, 65537, 0
        %v700 = vsel %vm636, 65537, 0
        %v701 = vsel %vm637, 65537, 0
        %v702 = vsel %vm638, 65537, 0
        %v703 = vsel %vm639, 65537, 0
        %v704 = vsel %vm640, 65537, 0
        %v705 = vsel %vm641, 65537, 0
        %v706 = vsel %vm642, 65537, 0
        %v707 = vsel %vm643, 65537, 0
        %v708 = vsel %vm644, 65537, 0
        %v709 = vsel %vm645, 65537, 0
        %v710 = vsel %vm646, 65537, 0
        %v711 = vunpack.c.l.b16 %v647
        %v712 = vunpack.c.h.b16 %v647
        %v713 = vunpack.c.l.b16 %v648
        %v714 = vunpack.c.h.b16 %v648
        %v715 = vunpack.c.l.b16 %v649
        %v716 = vunpack.c.h.b16 %v649
        %v717 = vunpack.c.l.b16 %v650
        %v718 = vunpack.c.h.b16 %v650
        %v719 = vunpack.c.l.b16 %v651
        %v720 = vunpack.c.h.b16 %v651
        %v721 = vunpack.c.l.b16 %v652
        %v722 = vunpack.c.h.b16 %v652
        %v723 = vunpack.c.l.b16 %v653
        %v724 = vunpack.c.h.b16 %v653
        %v725 = vunpack.c.l.b16 %v654
        %v726 = vunpack.c.h.b16 %v654
        %v727 = vunpack.c.l.b16 %v655
        %v728 = vunpack.c.h.b16 %v655
        %v729 = vunpack.c.l.b16 %v656
        %v730 = vunpack.c.h.b16 %v656
        %v731 = vunpack.c.l.b16 %v657
        %v732 = vunpack.c.h.b16 %v657
        %v733 = vunpack.c.l.b16 %v658
        %v734 = vunpack.c.h.b16 %v658
        %v735 = vunpack.c.l.b16 %v659
        %v736 = vunpack.c.h.b16 %v659
        %v737 = vunpack.c.l.b16 %v660
        %v738 = vunpack.c.h.b16 %v660
        %v739 = vunpack.c.l.b16 %v661
        %v740 = vunpack.c.h.b16 %v661
        %v741 = vunpack.c.l.b16 %v662
        %v742 = vunpack.c.h.b16 %v662
        %v743 = vunpack.c.l.b16 %v663
        %v744 = vunpack.c.h.b16 %v663
        %v745 = vunpack.c.l.b16 %v664
        %v746 = vunpack.c.h.b16 %v664
        %v747 = vunpack.c.l.b16 %v665
        %v748 = vunpack.c.h.b16 %v665
        %v749 = vunpack.c.l.b16 %v666
        %v750 = vunpack.c.h.b16 %v666
        %v751 = vunpack.c.l.b16 %v667
        %v752 = vunpack.c.h.b16 %v667
        %v753 = vunpack.c.l.b16 %v668
        %v754 = vunpack.c.h.b16 %v668
        %v755 = vunpack.c.l.b16 %v669
        %v756 = vunpack.c.h.b16 %v669
        %v757 = vunpack.c.l.b16 %v670
        %v758 = vunpack.c.h.b16 %v670
        %v759 = vunpack.c.l.b16 %v671
        %v760 = vunpack.c.h.b16 %v671
        %v761 = vunpack.c.l.b16 %v672
        %v762 = vunpack.c.h.b16 %v672
        %v763 = vunpack.c.l.b16 %v673
        %v764 = vunpack.c.h.b16 %v673
        %v765 = vunpack.c.l.b16 %v674
        %v766 = vunpack.c.h.b16 %v674
        %v767 = vunpack.c.l.b16 %v675
        %v768 = vunpack.c.h.b16 %v675
        %v769 = vunpack.c.l.b16 %v676
        %v770 = vunpack.c.h.b16 %v676
        %v771 = vunpack.c.l.b16 %v677
        %v772 = vunpack.c.h.b16 %v677
        %v773 = vunpack.c.l.b16 %v678
        %v774 = vunpack.c.h.b16 %v678
        %v775 = vunpack.c.l.b16 %v679
        %v776 = vunpack.c.h.b16 %v679
        %v777 = vunpack.c.l.b16 %v680
        %v778 = vunpack.c.h.b16 %v680
        %v779 = vunpack.c.l.b16 %v681
        %v780 = vunpack.c.h.b16 %v681
        %v781 = vunpack.c.l.b16 %v682
        %v782 = vunpack.c.h.b16 %v682
        %v783 = vunpack.c.l.b16 %v683
        %v784 = vunpack.c.h.b16 %v683
        %v785 = vunpack.c.l.b16 %v684
        %v786 = vunpack.c.h.b16 %v684
        %v787 = vunpack.c.l.b16 %v685
        %v788 = vunpack.c.h.b16 %v685
        %v789 = vunpack.c.l.b16 %v686
        %v790 = vunpack.c.h.b16 %v686
        %v791 = vunpack.c.l.b16 %v687
        %v792 = vunpack.c.h.b16 %v687
        %v793 = vunpack.c.l.b16 %v688
        %v794 = vunpack.c.h.b16 %v688
        %v795 = vunpack.c.l.b16 %v689
        %v796 = vunpack.c.h.b16 %v689
        %v797 = vunpack.c.l.b16 %v690
        %v798 = vunpack.c.h.b16 %v690
        %v799 = vunpack.c.l.b16 %v691
        %v800 = vunpack.c.h.b16 %v691
        %v801 = vunpack.c.l.b16 %v692
        %v802 = vunpack.c.h.b16 %v692
        %v803 = vunpack.c.l.b16 %v693
        %v804 = vunpack.c.h.b16 %v693
        %v805 = vunpack.c.l.b16 %v694
        %v806 = vunpack.c.h.b16 %v694
        %v807 = vunpack.c.l.b16 %v695
        %v808 = vunpack.c.h.b16 %v695
        %v809 = vunpack.c.l.b16 %v696
        %v810 = vunpack.c.h.b16 %v696
        %v811 = vunpack.c.l.b16 %v697
        %v812 = vunpack.c.h.b16 %v697
        %v813 = vunpack.c.l.b16 %v698
        %v814 = vunpack.c.h.b16 %v698
        %v815 = vunpack.c.l.b16 %v699
        %v816 = vunpack.c.h.b16 %v699
        %v817 = vunpack.c.l.b16 %v700
        %v818 = vunpack.c.h.b16 %v700
        %v819 = vunpack.c.l.b16 %v701
        %v820 = vunpack.c.h.b16 %v701
        %v821 = vunpack.c.l.b16 %v702
        %v822 = vunpack.c.h.b16 %v702
        %v823 = vunpack.c.l.b16 %v703
        %v824 = vunpack.c.h.b16 %v703
        %v825 = vunpack.c.l.b16 %v704
        %v826 = vunpack.c.h.b16 %v704
        %v827 = vunpack.c.l.b16 %v705
        %v828 = vunpack.c.h.b16 %v705
        %v829 = vunpack.c.l.b16 %v706
        %v830 = vunpack.c.h.b16 %v706
        %v831 = vunpack.c.l.b16 %v707
        %v832 = vunpack.c.h.b16 %v707
        %v833 = vunpack.c.l.b16 %v708
        %v834 = vunpack.c.h.b16 %v708
        %v835 = vunpack.c.l.b16 %v709
        %v836 = vunpack.c.h.b16 %v709
        %v837 = vunpack.c.l.b16 %v710
        %v838 = vunpack.c.h.b16 %v710
        %vm839 = vcmp.ne.s32.totalorder %v711, 0
        %vm840 = vcmp.ne.s32.totalorder %v712, 0
        %vm841 = vcmp.ne.s32.totalorder %v713, 0
        %vm842 = vcmp.ne.s32.totalorder %v714, 0
        %vm843 = vcmp.ne.s32.totalorder %v715, 0
        %vm844 = vcmp.ne.s32.totalorder %v716, 0
        %vm845 = vcmp.ne.s32.totalorder %v717, 0
        %vm846 = vcmp.ne.s32.totalorder %v718, 0
        %vm847 = vcmp.ne.s32.totalorder %v719, 0
        %vm848 = vcmp.ne.s32.totalorder %v720, 0
        %vm849 = vcmp.ne.s32.totalorder %v721, 0
        %vm850 = vcmp.ne.s32.totalorder %v722, 0
        %vm851 = vcmp.ne.s32.totalorder %v723, 0
        %vm852 = vcmp.ne.s32.totalorder %v724, 0
        %vm853 = vcmp.ne.s32.totalorder %v725, 0
        %vm854 = vcmp.ne.s32.totalorder %v726, 0
        %vm855 = vcmp.ne.s32.totalorder %v727, 0
        %vm856 = vcmp.ne.s32.totalorder %v728, 0
        %vm857 = vcmp.ne.s32.totalorder %v729, 0
        %vm858 = vcmp.ne.s32.totalorder %v730, 0
        %vm859 = vcmp.ne.s32.totalorder %v731, 0
        %vm860 = vcmp.ne.s32.totalorder %v732, 0
        %vm861 = vcmp.ne.s32.totalorder %v733, 0
        %vm862 = vcmp.ne.s32.totalorder %v734, 0
        %vm863 = vcmp.ne.s32.totalorder %v735, 0
        %vm864 = vcmp.ne.s32.totalorder %v736, 0
        %vm865 = vcmp.ne.s32.totalorder %v737, 0
        %vm866 = vcmp.ne.s32.totalorder %v738, 0
        %vm867 = vcmp.ne.s32.totalorder %v739, 0
        %vm868 = vcmp.ne.s32.totalorder %v740, 0
        %vm869 = vcmp.ne.s32.totalorder %v741, 0
        %vm870 = vcmp.ne.s32.totalorder %v742, 0
        %vm871 = vcmp.ne.s32.totalorder %v743, 0
        %vm872 = vcmp.ne.s32.totalorder %v744, 0
        %vm873 = vcmp.ne.s32.totalorder %v745, 0
        %vm874 = vcmp.ne.s32.totalorder %v746, 0
        %vm875 = vcmp.ne.s32.totalorder %v747, 0
        %vm876 = vcmp.ne.s32.totalorder %v748, 0
        %vm877 = vcmp.ne.s32.totalorder %v749, 0
        %vm878 = vcmp.ne.s32.totalorder %v750, 0
        %vm879 = vcmp.ne.s32.totalorder %v751, 0
        %vm880 = vcmp.ne.s32.totalorder %v752, 0
        %vm881 = vcmp.ne.s32.totalorder %v753, 0
        %vm882 = vcmp.ne.s32.totalorder %v754, 0
        %vm883 = vcmp.ne.s32.totalorder %v755, 0
        %vm884 = vcmp.ne.s32.totalorder %v756, 0
        %vm885 = vcmp.ne.s32.totalorder %v757, 0
        %vm886 = vcmp.ne.s32.totalorder %v758, 0
        %vm887 = vcmp.ne.s32.totalorder %v759, 0
        %vm888 = vcmp.ne.s32.totalorder %v760, 0
        %vm889 = vcmp.ne.s32.totalorder %v761, 0
        %vm890 = vcmp.ne.s32.totalorder %v762, 0
        %vm891 = vcmp.ne.s32.totalorder %v763, 0
        %vm892 = vcmp.ne.s32.totalorder %v764, 0
        %vm893 = vcmp.ne.s32.totalorder %v765, 0
        %vm894 = vcmp.ne.s32.totalorder %v766, 0
        %vm895 = vcmp.ne.s32.totalorder %v767, 0
        %vm896 = vcmp.ne.s32.totalorder %v768, 0
        %vm897 = vcmp.ne.s32.totalorder %v769, 0
        %vm898 = vcmp.ne.s32.totalorder %v770, 0
        %vm899 = vcmp.ne.s32.totalorder %v771, 0
        %vm900 = vcmp.ne.s32.totalorder %v772, 0
        %vm901 = vcmp.ne.s32.totalorder %v773, 0
        %vm902 = vcmp.ne.s32.totalorder %v774, 0
        %vm903 = vcmp.ne.s32.totalorder %v775, 0
        %vm904 = vcmp.ne.s32.totalorder %v776, 0
        %vm905 = vcmp.ne.s32.totalorder %v777, 0
        %vm906 = vcmp.ne.s32.totalorder %v778, 0
        %vm907 = vcmp.ne.s32.totalorder %v779, 0
        %vm908 = vcmp.ne.s32.totalorder %v780, 0
        %vm909 = vcmp.ne.s32.totalorder %v781, 0
        %vm910 = vcmp.ne.s32.totalorder %v782, 0
        %vm911 = vcmp.ne.s32.totalorder %v783, 0
        %vm912 = vcmp.ne.s32.totalorder %v784, 0
        %vm913 = vcmp.ne.s32.totalorder %v785, 0
        %vm914 = vcmp.ne.s32.totalorder %v786, 0
        %vm915 = vcmp.ne.s32.totalorder %v787, 0
        %vm916 = vcmp.ne.s32.totalorder %v788, 0
        %vm917 = vcmp.ne.s32.totalorder %v789, 0
        %vm918 = vcmp.ne.s32.totalorder %v790, 0
        %vm919 = vcmp.ne.s32.totalorder %v791, 0
        %vm920 = vcmp.ne.s32.totalorder %v792, 0
        %vm921 = vcmp.ne.s32.totalorder %v793, 0
        %vm922 = vcmp.ne.s32.totalorder %v794, 0
        %vm923 = vcmp.ne.s32.totalorder %v795, 0
        %vm924 = vcmp.ne.s32.totalorder %v796, 0
        %vm925 = vcmp.ne.s32.totalorder %v797, 0
        %vm926 = vcmp.ne.s32.totalorder %v798, 0
        %vm927 = vcmp.ne.s32.totalorder %v799, 0
        %vm928 = vcmp.ne.s32.totalorder %v800, 0
        %vm929 = vcmp.ne.s32.totalorder %v801, 0
        %vm930 = vcmp.ne.s32.totalorder %v802, 0
        %vm931 = vcmp.ne.s32.totalorder %v803, 0
        %vm932 = vcmp.ne.s32.totalorder %v804, 0
        %vm933 = vcmp.ne.s32.totalorder %v805, 0
        %vm934 = vcmp.ne.s32.totalorder %v806, 0
        %vm935 = vcmp.ne.s32.totalorder %v807, 0
        %vm936 = vcmp.ne.s32.totalorder %v808, 0
        %vm937 = vcmp.ne.s32.totalorder %v809, 0
        %vm938 = vcmp.ne.s32.totalorder %v810, 0
        %vm939 = vcmp.ne.s32.totalorder %v811, 0
        %vm940 = vcmp.ne.s32.totalorder %v812, 0
        %vm941 = vcmp.ne.s32.totalorder %v813, 0
        %vm942 = vcmp.ne.s32.totalorder %v814, 0
        %vm943 = vcmp.ne.s32.totalorder %v815, 0
        %vm944 = vcmp.ne.s32.totalorder %v816, 0
        %vm945 = vcmp.ne.s32.totalorder %v817, 0
        %vm946 = vcmp.ne.s32.totalorder %v818, 0
        %vm947 = vcmp.ne.s32.totalorder %v819, 0
        %vm948 = vcmp.ne.s32.totalorder %v820, 0
        %vm949 = vcmp.ne.s32.totalorder %v821, 0
        %vm950 = vcmp.ne.s32.totalorder %v822, 0
        %vm951 = vcmp.ne.s32.totalorder %v823, 0
        %vm952 = vcmp.ne.s32.totalorder %v824, 0
        %vm953 = vcmp.ne.s32.totalorder %v825, 0
        %vm954 = vcmp.ne.s32.totalorder %v826, 0
        %vm955 = vcmp.ne.s32.totalorder %v827, 0
        %vm956 = vcmp.ne.s32.totalorder %v828, 0
        %vm957 = vcmp.ne.s32.totalorder %v829, 0
        %vm958 = vcmp.ne.s32.totalorder %v830, 0
        %vm959 = vcmp.ne.s32.totalorder %v831, 0
        %vm960 = vcmp.ne.s32.totalorder %v832, 0
        %vm961 = vcmp.ne.s32.totalorder %v833, 0
        %vm962 = vcmp.ne.s32.totalorder %v834, 0
        %vm963 = vcmp.ne.s32.totalorder %v835, 0
        %vm964 = vcmp.ne.s32.totalorder %v836, 0
        %vm965 = vcmp.ne.s32.totalorder %v837, 0
        %vm966 = vcmp.ne.s32.totalorder %v838, 0
        %v967 = vsel %vm839, %v391, 0.0
        %v968 = vsel %vm840, %v392, 0.0
        %v969 = vsel %vm841, %v393, 0.0
        %v970 = vsel %vm842, %v394, 0.0
        %v971 = vsel %vm843, %v395, 0.0
        %v972 = vsel %vm844, %v396, 0.0
        %v973 = vsel %vm845, %v397, 0.0
        %v974 = vsel %vm846, %v398, 0.0
        %v975 = vsel %vm847, %v399, 0.0
        %v976 = vsel %vm848, %v400, 0.0
        %v977 = vsel %vm849, %v401, 0.0
        %v978 = vsel %vm850, %v402, 0.0
        %v979 = vsel %vm851, %v403, 0.0
        %v980 = vsel %vm852, %v404, 0.0
        %v981 = vsel %vm853, %v405, 0.0
        %v982 = vsel %vm854, %v406, 0.0
        %v983 = vsel %vm855, %v407, 0.0
        %v984 = vsel %vm856, %v408, 0.0
        %v985 = vsel %vm857, %v409, 0.0
        %v986 = vsel %vm858, %v410, 0.0
        %v987 = vsel %vm859, %v411, 0.0
        %v988 = vsel %vm860, %v412, 0.0
        %v989 = vsel %vm861, %v413, 0.0
        %v990 = vsel %vm862, %v414, 0.0
        %v991 = vsel %vm863, %v415, 0.0
        %v992 = vsel %vm864, %v416, 0.0
        %v993 = vsel %vm865, %v417, 0.0
        %v994 = vsel %vm866, %v418, 0.0
        %v995 = vsel %vm867, %v419, 0.0
        %v996 = vsel %vm868, %v420, 0.0
        %v997 = vsel %vm869, %v421, 0.0
        %v998 = vsel %vm870, %v422, 0.0
        %v999 = vsel %vm871, %v423, 0.0
        %v1000 = vsel %vm872, %v424, 0.0
        %v1001 = vsel %vm873, %v425, 0.0
        %v1002 = vsel %vm874, %v426, 0.0
        %v1003 = vsel %vm875, %v427, 0.0
        %v1004 = vsel %vm876, %v428, 0.0
        %v1005 = vsel %vm877, %v429, 0.0
        %v1006 = vsel %vm878, %v430, 0.0
        %v1007 = vsel %vm879, %v431, 0.0
        %v1008 = vsel %vm880, %v432, 0.0
        %v1009 = vsel %vm881, %v433, 0.0
        %v1010 = vsel %vm882, %v434, 0.0
        %v1011 = vsel %vm883, %v435, 0.0
        %v1012 = vsel %vm884, %v436, 0.0
        %v1013 = vsel %vm885, %v437, 0.0
        %v1014 = vsel %vm886, %v438, 0.0
        %v1015 = vsel %vm887, %v439, 0.0
        %v1016 = vsel %vm888, %v440, 0.0
        %v1017 = vsel %vm889, %v441, 0.0
        %v1018 = vsel %vm890, %v442, 0.0
        %v1019 = vsel %vm891, %v443, 0.0
        %v1020 = vsel %vm892, %v444, 0.0
        %v1021 = vsel %vm893, %v445, 0.0
        %v1022 = vsel %vm894, %v446, 0.0
        %v1023 = vsel %vm895, %v447, 0.0
        %v1024 = vsel %vm896, %v448, 0.0
        %v1025 = vsel %vm897, %v449, 0.0
        %v1026 = vsel %vm898, %v450, 0.0
        %v1027 = vsel %vm899, %v451, 0.0
        %v1028 = vsel %vm900, %v452, 0.0
        %v1029 = vsel %vm901, %v453, 0.0
        %v1030 = vsel %vm902, %v454, 0.0
        %v1031 = vsel %vm903, %v455, 0.0
        %v1032 = vsel %vm904, %v456, 0.0
        %v1033 = vsel %vm905, %v457, 0.0
        %v1034 = vsel %vm906, %v458, 0.0
        %v1035 = vsel %vm907, %v459, 0.0
        %v1036 = vsel %vm908, %v460, 0.0
        %v1037 = vsel %vm909, %v461, 0.0
        %v1038 = vsel %vm910, %v462, 0.0
        %v1039 = vsel %vm911, %v463, 0.0
        %v1040 = vsel %vm912, %v464, 0.0
        %v1041 = vsel %vm913, %v465, 0.0
        %v1042 = vsel %vm914, %v466, 0.0
        %v1043 = vsel %vm915, %v467, 0.0
        %v1044 = vsel %vm916, %v468, 0.0
        %v1045 = vsel %vm917, %v469, 0.0
        %v1046 = vsel %vm918, %v470, 0.0
        %v1047 = vsel %vm919, %v471, 0.0
        %v1048 = vsel %vm920, %v472, 0.0
        %v1049 = vsel %vm921, %v473, 0.0
        %v1050 = vsel %vm922, %v474, 0.0
        %v1051 = vsel %vm923, %v475, 0.0
        %v1052 = vsel %vm924, %v476, 0.0
        %v1053 = vsel %vm925, %v477, 0.0
        %v1054 = vsel %vm926, %v478, 0.0
        %v1055 = vsel %vm927, %v479, 0.0
        %v1056 = vsel %vm928, %v480, 0.0
        %v1057 = vsel %vm929, %v481, 0.0
        %v1058 = vsel %vm930, %v482, 0.0
        %v1059 = vsel %vm931, %v483, 0.0
        %v1060 = vsel %vm932, %v484, 0.0
        %v1061 = vsel %vm933, %v485, 0.0
        %v1062 = vsel %vm934, %v486, 0.0
        %v1063 = vsel %vm935, %v487, 0.0
        %v1064 = vsel %vm936, %v488, 0.0
        %v1065 = vsel %vm937, %v489, 0.0
        %v1066 = vsel %vm938, %v490, 0.0
        %v1067 = vsel %vm939, %v491, 0.0
        %v1068 = vsel %vm940, %v492, 0.0
        %v1069 = vsel %vm941, %v493, 0.0
        %v1070 = vsel %vm942, %v494, 0.0
        %v1071 = vsel %vm943, %v495, 0.0
        %v1072 = vsel %vm944, %v496, 0.0
        %v1073 = vsel %vm945, %v497, 0.0
        %v1074 = vsel %vm946, %v498, 0.0
        %v1075 = vsel %vm947, %v499, 0.0
        %v1076 = vsel %vm948, %v500, 0.0
        %v1077 = vsel %vm949, %v501, 0.0
        %v1078 = vsel %vm950, %v502, 0.0
        %v1079 = vsel %vm951, %v503, 0.0
        %v1080 = vsel %vm952, %v504, 0.0
        %v1081 = vsel %vm953, %v505, 0.0
        %v1082 = vsel %vm954, %v506, 0.0
        %v1083 = vsel %vm955, %v507, 0.0
        %v1084 = vsel %vm956, %v508, 0.0
        %v1085 = vsel %vm957, %v509, 0.0
        %v1086 = vsel %vm958, %v510, 0.0
        %v1087 = vsel %vm959, %v511, 0.0
        %v1088 = vsel %vm960, %v512, 0.0
        %v1089 = vsel %vm961, %v513, 0.0
        %v1090 = vsel %vm962, %v514, 0.0
        %v1091 = vsel %vm963, %v515, 0.0
        %v1092 = vsel %vm964, %v516, 0.0
        %v1093 = vsel %vm965, %v517, 0.0
        %v1094 = vsel %vm966, %v518, 0.0
        %v1095 = vpack.c.bf16 %v969, %v967
        %v1096 = vpack.c.bf16 %v970, %v968
        %v1097 = vpack.c.bf16 %v973, %v971
        %v1098 = vpack.c.bf16 %v974, %v972
        %v1099 = vpack.c.bf16 %v977, %v975
        %v1100 = vpack.c.bf16 %v978, %v976
        %v1101 = vpack.c.bf16 %v981, %v979
        %v1102 = vpack.c.bf16 %v982, %v980
        %v1103 = vpack.c.bf16 %v985, %v983
        %v1104 = vpack.c.bf16 %v986, %v984
        %v1105 = vpack.c.bf16 %v989, %v987
        %v1106 = vpack.c.bf16 %v990, %v988
        %v1107 = vpack.c.bf16 %v993, %v991
        %v1108 = vpack.c.bf16 %v994, %v992
        %v1109 = vpack.c.bf16 %v997, %v995
        %v1110 = vpack.c.bf16 %v998, %v996
        %v1111 = vpack.c.bf16 %v1001, %v999
        %v1112 = vpack.c.bf16 %v1002, %v1000
        %v1113 = vpack.c.bf16 %v1005, %v1003
        %v1114 = vpack.c.bf16 %v1006, %v1004
        %v1115 = vpack.c.bf16 %v1009, %v1007
        %v1116 = vpack.c.bf16 %v1010, %v1008
        %v1117 = vpack.c.bf16 %v1013, %v1011
        %v1118 = vpack.c.bf16 %v1014, %v1012
        %v1119 = vpack.c.bf16 %v1017, %v1015
        %v1120 = vpack.c.bf16 %v1018, %v1016
        %v1121 = vpack.c.bf16 %v1021, %v1019
        %v1122 = vpack.c.bf16 %v1022, %v1020
        %v1123 = vpack.c.bf16 %v1025, %v1023
        %v1124 = vpack.c.bf16 %v1026, %v1024
        %v1125 = vpack.c.bf16 %v1029, %v1027
        %v1126 = vpack.c.bf16 %v1030, %v1028
        %v1127 = vpack.c.bf16 %v1033, %v1031
        %v1128 = vpack.c.bf16 %v1034, %v1032
        %v1129 = vpack.c.bf16 %v1037, %v1035
        %v1130 = vpack.c.bf16 %v1038, %v1036
        %v1131 = vpack.c.bf16 %v1041, %v1039
        %v1132 = vpack.c.bf16 %v1042, %v1040
        %v1133 = vpack.c.bf16 %v1045, %v1043
        %v1134 = vpack.c.bf16 %v1046, %v1044
        %v1135 = vpack.c.bf16 %v1049, %v1047
        %v1136 = vpack.c.bf16 %v1050, %v1048
        %v1137 = vpack.c.bf16 %v1053, %v1051
        %v1138 = vpack.c.bf16 %v1054, %v1052
        %v1139 = vpack.c.bf16 %v1057, %v1055
        %v1140 = vpack.c.bf16 %v1058, %v1056
        %v1141 = vpack.c.bf16 %v1061, %v1059
        %v1142 = vpack.c.bf16 %v1062, %v1060
        %v1143 = vpack.c.bf16 %v1065, %v1063
        %v1144 = vpack.c.bf16 %v1066, %v1064
        %v1145 = vpack.c.bf16 %v1069, %v1067
        %v1146 = vpack.c.bf16 %v1070, %v1068
        %v1147 = vpack.c.bf16 %v1073, %v1071
        %v1148 = vpack.c.bf16 %v1074, %v1072
        %v1149 = vpack.c.bf16 %v1077, %v1075
        %v1150 = vpack.c.bf16 %v1078, %v1076
        %v1151 = vpack.c.bf16 %v1081, %v1079
        %v1152 = vpack.c.bf16 %v1082, %v1080
        %v1153 = vpack.c.bf16 %v1085, %v1083
        %v1154 = vpack.c.bf16 %v1086, %v1084
        %v1155 = vpack.c.bf16 %v1089, %v1087
        %v1156 = vpack.c.bf16 %v1090, %v1088
        %v1157 = vpack.c.bf16 %v1093, %v1091
        %v1158 = vpack.c.bf16 %v1094, %v1092
        %v1159 = vld [vmem:[%s2] sm:$0xf]
        %v1160 = vld [vmem:[%s2 + $0x4] sm:$0xf]
        %v1161 = vld [vmem:[%s2 + $0x8] sm:$0xf]
        %v1162 = vld [vmem:[%s2 + $0xc] sm:$0xf]
        %v1163 = vld [vmem:[%s2 + $0x10] sm:$0xf]
        %v1164 = vld [vmem:[%s2 + $0x14] sm:$0xf]
        %v1165 = vld [vmem:[%s2 + $0x18] sm:$0xf]
        %v1166 = vld [vmem:[%s2 + $0x1c] sm:$0xf]
        %v1167 = vld [vmem:[%s2 + $0x20] sm:$0xf]
        %v1168 = vld [vmem:[%s2 + $0x24] sm:$0xf]
        %v1169 = vld [vmem:[%s2 + $0x28] sm:$0xf]
        %v1170 = vld [vmem:[%s2 + $0x2c] sm:$0xf]
        %v1171 = vld [vmem:[%s2 + $0x30] sm:$0xf]
        %v1172 = vld [vmem:[%s2 + $0x34] sm:$0xf]
        %v1173 = vld [vmem:[%s2 + $0x38] sm:$0xf]
        %v1174 = vld [vmem:[%s2 + $0x3c] sm:$0xf]
        %v1175 = vld [vmem:[%s2 + $0x40] sm:$0xf]
        %v1176 = vld [vmem:[%s2 + $0x44] sm:$0xf]
        %v1177 = vld [vmem:[%s2 + $0x48] sm:$0xf]
        %v1178 = vld [vmem:[%s2 + $0x4c] sm:$0xf]
        %v1179 = vld [vmem:[%s2 + $0x50] sm:$0xf]
        %v1180 = vld [vmem:[%s2 + $0x54] sm:$0xf]
        %v1181 = vld [vmem:[%s2 + $0x58] sm:$0xf]
        %v1182 = vld [vmem:[%s2 + $0x5c] sm:$0xf]
        %v1183 = vld [vmem:[%s2 + $0x60] sm:$0xf]
        %v1184 = vld [vmem:[%s2 + $0x64] sm:$0xf]
        %v1185 = vld [vmem:[%s2 + $0x68] sm:$0xf]
        %v1186 = vld [vmem:[%s2 + $0x6c] sm:$0xf]
        %v1187 = vld [vmem:[%s2 + $0x70] sm:$0xf]
        %v1188 = vld [vmem:[%s2 + $0x74] sm:$0xf]
        %v1189 = vld [vmem:[%s2 + $0x78] sm:$0xf]
        %v1190 = vld [vmem:[%s2 + $0x7c] sm:$0xf]
        %v1191 = vld [vmem:[#allocation6] sm:$0x1]
        %v1193 = vlaneseq
        %v1194 = vshrl.u32 %v1193, 7
        %v1195 = vsub.s32 0, %v1194
        %v1196 = vrot.slane %v1191, %v1195
        %v1230 = vunpack.c.l.b16 %v1159
        %v1231 = vunpack.c.l.b16 %v1160
        %v1232 = vunpack.c.l.b16 %v1161
        %v1233 = vunpack.c.l.b16 %v1162
        %v1234 = vunpack.c.l.b16 %v1163
        %v1235 = vunpack.c.l.b16 %v1164
        %v1236 = vunpack.c.l.b16 %v1165
        %v1237 = vunpack.c.l.b16 %v1166
        %v1238 = vunpack.c.l.b16 %v1167
        %v1239 = vunpack.c.l.b16 %v1168
        %v1240 = vunpack.c.l.b16 %v1169
        %v1241 = vunpack.c.l.b16 %v1170
        %v1242 = vunpack.c.l.b16 %v1171
        %v1243 = vunpack.c.l.b16 %v1172
        %v1244 = vunpack.c.l.b16 %v1173
        %v1245 = vunpack.c.l.b16 %v1174
        %v1246 = vunpack.c.l.b16 %v1175
        %v1247 = vunpack.c.l.b16 %v1176
        %v1248 = vunpack.c.l.b16 %v1177
        %v1249 = vunpack.c.l.b16 %v1178
        %v1250 = vunpack.c.l.b16 %v1179
        %v1251 = vunpack.c.l.b16 %v1180
        %v1252 = vunpack.c.l.b16 %v1181
        %v1253 = vunpack.c.l.b16 %v1182
        %v1254 = vunpack.c.l.b16 %v1183
        %v1255 = vunpack.c.l.b16 %v1184
        %v1256 = vunpack.c.l.b16 %v1185
        %v1257 = vunpack.c.l.b16 %v1186
        %v1258 = vunpack.c.l.b16 %v1187
        %v1259 = vunpack.c.l.b16 %v1188
        %v1260 = vunpack.c.l.b16 %v1189
        %v1261 = vunpack.c.l.b16 %v1190
        %v1262 = vpack.c.b16 %v1231, %v1230
        %v1263 = vpack.c.b16 %v1233, %v1232
        %v1264 = vpack.c.b16 %v1235, %v1234
        %v1265 = vpack.c.b16 %v1237, %v1236
        %v1266 = vpack.c.b16 %v1239, %v1238
        %v1267 = vpack.c.b16 %v1241, %v1240
        %v1268 = vpack.c.b16 %v1243, %v1242
        %v1269 = vpack.c.b16 %v1245, %v1244
        %v1270 = vpack.c.b16 %v1247, %v1246
        %v1271 = vpack.c.b16 %v1249, %v1248
        %v1272 = vpack.c.b16 %v1251, %v1250
        %v1273 = vpack.c.b16 %v1253, %v1252
        %v1274 = vpack.c.b16 %v1255, %v1254
        %v1275 = vpack.c.b16 %v1257, %v1256
        %v1276 = vpack.c.b16 %v1259, %v1258
        %v1277 = vpack.c.b16 %v1261, %v1260
        %1294 = vmatprep.subr.bf16.mxu0 0
        %1295 = vmatpush1.bf16.msra.mxu0 %v1262
        %1296 = vmatprep.subr.bf16.mxu0 0
        %1297 = vmatpush1.bf16.msra.mxu0 %v1263
        %1298 = vmatprep.subr.bf16.mxu0 0
        %1299 = vmatpush1.bf16.msra.mxu0 %v1264
        %1300 = vmatprep.subr.bf16.mxu0 0
        %1301 = vmatpush1.bf16.msra.mxu0 %v1265
        %1302 = vmatprep.subr.bf16.mxu0 0
        %1303 = vmatpush1.bf16.msra.mxu0 %v1266
        %1304 = vmatprep.subr.bf16.mxu0 0
        %1305 = vmatpush1.bf16.msra.mxu0 %v1267
        %1306 = vmatprep.subr.bf16.mxu0 0
        %1307 = vmatpush1.bf16.msra.mxu0 %v1268
        %1308 = vmatprep.subr.bf16.mxu0 0
        %1309 = vmatpush1.bf16.msra.mxu0 %v1269
        %1310 = vmatprep.subr.bf16.mxu0 0
        %1311 = vmatpush1.bf16.msra.mxu0 %v1270
        %1312 = vmatprep.subr.bf16.mxu0 0
        %1313 = vmatpush1.bf16.msra.mxu0 %v1271
        %1314 = vmatprep.subr.bf16.mxu0 0
        %1315 = vmatpush1.bf16.msra.mxu0 %v1272
        %1316 = vmatprep.subr.bf16.mxu0 0
        %1317 = vmatpush1.bf16.msra.mxu0 %v1273
        %1318 = vmatprep.subr.bf16.mxu0 0
        %1319 = vmatpush1.bf16.msra.mxu0 %v1274
        %1320 = vmatprep.subr.bf16.mxu0 0
        %1321 = vmatpush1.bf16.msra.mxu0 %v1275
        %1322 = vmatprep.subr.bf16.mxu0 0
        %1323 = vmatpush1.bf16.msra.mxu0 %v1276
        %1324 = vmatprep.subr.bf16.mxu0 0
        %1325 = vmatpush1.bf16.msra.mxu0 %v1277
        %1326 = vmatprep.mubr.bf16.mxu0 %v1096
        %1327 = vmatmul.mubr.bf16.gmra.mrb[0].mxu0 %v1095
        %v1328 = vpop.f32.mrb[0].mxu0
        %v1329 = vadd.f32 %v1196, %v1328
        %v1330 = vpop.f32.mrb[0].mxu0
        %v1331 = vpop.f32.mrb[0].mxu0
        %v1332 = vadd.f32 %v1196, %v1331
        %v1333 = vpop.f32.mrb[0].mxu0
        %1334 = vmatprep.mubr.bf16.mxu0 %v1098
        %1335 = vmatmul.mubr.bf16.gmra.mrb[0].mxu0 %v1097
        %v1336 = vpop.f32.mrb[0].mxu0
        %v1337 = vadd.f32 %v1196, %v1336
        %v1338 = vpop.f32.mrb[0].mxu0
        %v1339 = vpop.f32.mrb[0].mxu0
        %v1340 = vadd.f32 %v1196, %v1339
        %v1341 = vpop.f32.mrb[0].mxu0
        %1342 = vmatprep.mubr.bf16.mxu0 %v1100
        %1343 = vmatmul.mubr.bf16.gmra.mrb[0].mxu0 %v1099
        %v1344 = vpop.f32.mrb[0].mxu0
        %v1345 = vadd.f32 %v1196, %v1344
        %v1346 = vpop.f32.mrb[0].mxu0
        %v1347 = vpop.f32.mrb[0].mxu0
        %v1348 = vadd.f32 %v1196, %v1347
        %v1349 = vpop.f32.mrb[0].mxu0
        %1350 = vmatprep.mubr.bf16.mxu0 %v1102
        %1351 = vmatmul.mubr.bf16.gmra.mrb[0].mxu0 %v1101
        %v1352 = vpop.f32.mrb[0].mxu0
        %v1353 = vadd.f32 %v1196, %v1352
        %v1354 = vpop.f32.mrb[0].mxu0
        %v1355 = vpop.f32.mrb[0].mxu0
        %v1356 = vadd.f32 %v1196, %v1355
        %v1357 = vpop.f32.mrb[0].mxu0
        %1358 = vmatprep.mubr.bf16.mxu0 %v1104
        %1359 = vmatmul.mubr.bf16.gmra.mrb[0].mxu0 %v1103
        %v1360 = vpop.f32.mrb[0].mxu0
        %v1361 = vadd.f32 %v1196, %v1360
        %v1362 = vpop.f32.mrb[0].mxu0
        %v1363 = vpop.f32.mrb[0].mxu0
        %v1364 = vadd.f32 %v1196, %v1363
        %v1365 = vpop.f32.mrb[0].mxu0
        %1366 = vmatprep.mubr.bf16.mxu0 %v1106
        %1367 = vmatmul.mubr.bf16.gmra.mrb[0].mxu0 %v1105
        %v1368 = vpop.f32.mrb[0].mxu0
        %v1369 = vadd.f32 %v1196, %v1368
        %v1370 = vpop.f32.mrb[0].mxu0
        %v1371 = vpop.f32.mrb[0].mxu0
        %v1372 = vadd.f32 %v1196, %v1371
        %v1373 = vpop.f32.mrb[0].mxu0
        %1374 = vmatprep.mubr.bf16.mxu0 %v1108
        %1375 = vmatmul.mubr.bf16.gmra.mrb[0].mxu0 %v1107
        %v1376 = vpop.f32.mrb[0].mxu0
        %v1377 = vadd.f32 %v1196, %v1376
        %v1378 = vpop.f32.mrb[0].mxu0
        %v1379 = vpop.f32.mrb[0].mxu0
        %v1380 = vadd.f32 %v1196, %v1379
        %v1381 = vpop.f32.mrb[0].mxu0
        %1382 = vmatprep.mubr.bf16.mxu0 %v1110
        %1383 = vmatmul.mubr.bf16.gmra.mrb[0].mxu0 %v1109
        %v1384 = vpop.f32.mrb[0].mxu0
        %v1385 = vadd.f32 %v1196, %v1384
        %v1386 = vpop.f32.mrb[0].mxu0
        %v1387 = vpop.f32.mrb[0].mxu0
        %v1388 = vadd.f32 %v1196, %v1387
        %v1389 = vpop.f32.mrb[0].mxu0
        %1390 = vmatprep.mubr.bf16.mxu0 %v1112
        %1391 = vmatmul.mubr.bf16.gmra.mrb[0].mxu0 %v1111
        %v1392 = vpop.f32.mrb[0].mxu0
        %v1393 = vadd.f32 %v1196, %v1392
        %v1394 = vpop.f32.mrb[0].mxu0
        %v1395 = vpop.f32.mrb[0].mxu0
        %v1396 = vadd.f32 %v1196, %v1395
        %v1397 = vpop.f32.mrb[0].mxu0
        %1398 = vmatprep.mubr.bf16.mxu0 %v1114
        %1399 = vmatmul.mubr.bf16.gmra.mrb[0].mxu0 %v1113
        %v1400 = vpop.f32.mrb[0].mxu0
        %v1401 = vadd.f32 %v1196, %v1400
        %v1402 = vpop.f32.mrb[0].mxu0
        %v1403 = vpop.f32.mrb[0].mxu0
        %v1404 = vadd.f32 %v1196, %v1403
        %v1405 = vpop.f32.mrb[0].mxu0
        %1406 = vmatprep.mubr.bf16.mxu0 %v1116
        %1407 = vmatmul.mubr.bf16.gmra.mrb[0].mxu0 %v1115
        %v1408 = vpop.f32.mrb[0].mxu0
        %v1409 = vadd.f32 %v1196, %v1408
        %v1410 = vpop.f32.mrb[0].mxu0
        %v1411 = vpop.f32.mrb[0].mxu0
        %v1412 = vadd.f32 %v1196, %v1411
        %v1413 = vpop.f32.mrb[0].mxu0
        %1414 = vmatprep.mubr.bf16.mxu0 %v1118
        %1415 = vmatmul.mubr.bf16.gmra.mrb[0].mxu0 %v1117
        %v1416 = vpop.f32.mrb[0].mxu0
        %v1417 = vadd.f32 %v1196, %v1416
        %v1418 = vpop.f32.mrb[0].mxu0
        %v1419 = vpop.f32.mrb[0].mxu0
        %v1420 = vadd.f32 %v1196, %v1419
        %v1421 = vpop.f32.mrb[0].mxu0
        %1422 = vmatprep.mubr.bf16.mxu0 %v1120
        %1423 = vmatmul.mubr.bf16.gmra.mrb[0].mxu0 %v1119
        %v1424 = vpop.f32.mrb[0].mxu0
        %v1425 = vadd.f32 %v1196, %v1424
        %v1426 = vpop.f32.mrb[0].mxu0
        %v1427 = vpop.f32.mrb[0].mxu0
        %v1428 = vadd.f32 %v1196, %v1427
        %v1429 = vpop.f32.mrb[0].mxu0
        %1430 = vmatprep.mubr.bf16.mxu0 %v1122
        %1431 = vmatmul.mubr.bf16.gmra.mrb[0].mxu0 %v1121
        %v1432 = vpop.f32.mrb[0].mxu0
        %v1433 = vadd.f32 %v1196, %v1432
        %v1434 = vpop.f32.mrb[0].mxu0
        %v1435 = vpop.f32.mrb[0].mxu0
        %v1436 = vadd.f32 %v1196, %v1435
        %v1437 = vpop.f32.mrb[0].mxu0
        %1438 = vmatprep.mubr.bf16.mxu0 %v1124
        %1439 = vmatmul.mubr.bf16.gmra.mrb[0].mxu0 %v1123
        %v1440 = vpop.f32.mrb[0].mxu0
        %v1441 = vadd.f32 %v1196, %v1440
        %v1442 = vpop.f32.mrb[0].mxu0
        %v1443 = vpop.f32.mrb[0].mxu0
        %v1444 = vadd.f32 %v1196, %v1443
        %v1445 = vpop.f32.mrb[0].mxu0
        %1446 = vmatprep.mubr.bf16.mxu0 %v1126
        %1447 = vmatmul.mubr.bf16.gmra.mrb[0].mxu0 %v1125
        %v1448 = vpop.f32.mrb[0].mxu0
        %v1449 = vadd.f32 %v1196, %v1448
        %v1450 = vpop.f32.mrb[0].mxu0
        %v1451 = vpop.f32.mrb[0].mxu0
        %v1452 = vadd.f32 %v1196, %v1451
        %v1453 = vpop.f32.mrb[0].mxu0
        %1454 = vmatprep.mubr.bf16.mxu0 %v1128
        %1455 = vmatmul.mubr.bf16.gmra.mrb[0].mxu0 %v1127
        %v1456 = vpop.f32.mrb[0].mxu0
        %v1457 = vadd.f32 %v1196, %v1456
        %v1458 = vpop.f32.mrb[0].mxu0
        %v1459 = vpop.f32.mrb[0].mxu0
        %v1460 = vadd.f32 %v1196, %v1459
        %v1461 = vpop.f32.mrb[0].mxu0
        %1462 = vmatprep.mubr.bf16.mxu0 %v1130
        %1463 = vmatmul.mubr.bf16.gmra.mrb[0].mxu0 %v1129
        %v1464 = vpop.f32.mrb[0].mxu0
        %v1465 = vadd.f32 %v1196, %v1464
        %v1466 = vpop.f32.mrb[0].mxu0
        %v1467 = vpop.f32.mrb[0].mxu0
        %v1468 = vadd.f32 %v1196, %v1467
        %v1469 = vpop.f32.mrb[0].mxu0
        %1470 = vmatprep.mubr.bf16.mxu0 %v1132
        %1471 = vmatmul.mubr.bf16.gmra.mrb[0].mxu0 %v1131
        %v1472 = vpop.f32.mrb[0].mxu0
        %v1473 = vadd.f32 %v1196, %v1472
        %v1474 = vpop.f32.mrb[0].mxu0
        %v1475 = vpop.f32.mrb[0].mxu0
        %v1476 = vadd.f32 %v1196, %v1475
        %v1477 = vpop.f32.mrb[0].mxu0
        %1478 = vmatprep.mubr.bf16.mxu0 %v1134
        %1479 = vmatmul.mubr.bf16.gmra.mrb[0].mxu0 %v1133
        %v1480 = vpop.f32.mrb[0].mxu0
        %v1481 = vadd.f32 %v1196, %v1480
        %v1482 = vpop.f32.mrb[0].mxu0
        %v1483 = vpop.f32.mrb[0].mxu0
        %v1484 = vadd.f32 %v1196, %v1483
        %v1485 = vpop.f32.mrb[0].mxu0
        %1486 = vmatprep.mubr.bf16.mxu0 %v1136
        %1487 = vmatmul.mubr.bf16.gmra.mrb[0].mxu0 %v1135
        %v1488 = vpop.f32.mrb[0].mxu0
        %v1489 = vadd.f32 %v1196, %v1488
        %v1490 = vpop.f32.mrb[0].mxu0
        %v1491 = vpop.f32.mrb[0].mxu0
        %v1492 = vadd.f32 %v1196, %v1491
        %v1493 = vpop.f32.mrb[0].mxu0
        %1494 = vmatprep.mubr.bf16.mxu0 %v1138
        %1495 = vmatmul.mubr.bf16.gmra.mrb[0].mxu0 %v1137
        %v1496 = vpop.f32.mrb[0].mxu0
        %v1497 = vadd.f32 %v1196, %v1496
        %v1498 = vpop.f32.mrb[0].mxu0
        %v1499 = vpop.f32.mrb[0].mxu0
        %v1500 = vadd.f32 %v1196, %v1499
        %v1501 = vpop.f32.mrb[0].mxu0
        %1502 = vmatprep.mubr.bf16.mxu0 %v1140
        %1503 = vmatmul.mubr.bf16.gmra.mrb[0].mxu0 %v1139
        %v1504 = vpop.f32.mrb[0].mxu0
        %v1505 = vadd.f32 %v1196, %v1504
        %v1506 = vpop.f32.mrb[0].mxu0
        %v1507 = vpop.f32.mrb[0].mxu0
        %v1508 = vadd.f32 %v1196, %v1507
        %v1509 = vpop.f32.mrb[0].mxu0
        %1510 = vmatprep.mubr.bf16.mxu0 %v1142
        %1511 = vmatmul.mubr.bf16.gmra.mrb[0].mxu0 %v1141
        %v1512 = vpop.f32.mrb[0].mxu0
        %v1513 = vadd.f32 %v1196, %v1512
        %v1514 = vpop.f32.mrb[0].mxu0
        %v1515 = vpop.f32.mrb[0].mxu0
        %v1516 = vadd.f32 %v1196, %v1515
        %v1517 = vpop.f32.mrb[0].mxu0
        %1518 = vmatprep.mubr.bf16.mxu0 %v1144
        %1519 = vmatmul.mubr.bf16.gmra.mrb[0].mxu0 %v1143
        %v1520 = vpop.f32.mrb[0].mxu0
        %v1521 = vadd.f32 %v1196, %v1520
        %v1522 = vpop.f32.mrb[0].mxu0
        %v1523 = vpop.f32.mrb[0].mxu0
        %v1524 = vadd.f32 %v1196, %v1523
        %v1525 = vpop.f32.mrb[0].mxu0
        %1526 = vmatprep.mubr.bf16.mxu0 %v1146
        %1527 = vmatmul.mubr.bf16.gmra.mrb[0].mxu0 %v1145
        %v1528 = vpop.f32.mrb[0].mxu0
        %v1529 = vadd.f32 %v1196, %v1528
        %v1530 = vpop.f32.mrb[0].mxu0
        %v1531 = vpop.f32.mrb[0].mxu0
        %v1532 = vadd.f32 %v1196, %v1531
        %v1533 = vpop.f32.mrb[0].mxu0
        %1534 = vmatprep.mubr.bf16.mxu0 %v1148
        %1535 = vmatmul.mubr.bf16.gmra.mrb[0].mxu0 %v1147
        %v1536 = vpop.f32.mrb[0].mxu0
        %v1537 = vadd.f32 %v1196, %v1536
        %v1538 = vpop.f32.mrb[0].mxu0
        %v1539 = vpop.f32.mrb[0].mxu0
        %v1540 = vadd.f32 %v1196, %v1539
        %v1541 = vpop.f32.mrb[0].mxu0
        %1542 = vmatprep.mubr.bf16.mxu0 %v1150
        %1543 = vmatmul.mubr.bf16.gmra.mrb[0].mxu0 %v1149
        %v1544 = vpop.f32.mrb[0].mxu0
        %v1545 = vadd.f32 %v1196, %v1544
        %v1546 = vpop.f32.mrb[0].mxu0
        %v1547 = vpop.f32.mrb[0].mxu0
        %v1548 = vadd.f32 %v1196, %v1547
        %v1549 = vpop.f32.mrb[0].mxu0
        %1550 = vmatprep.mubr.bf16.mxu0 %v1152
        %1551 = vmatmul.mubr.bf16.gmra.mrb[0].mxu0 %v1151
        %v1552 = vpop.f32.mrb[0].mxu0
        %v1553 = vadd.f32 %v1196, %v1552
        %v1554 = vpop.f32.mrb[0].mxu0
        %v1555 = vpop.f32.mrb[0].mxu0
        %v1556 = vadd.f32 %v1196, %v1555
        %v1557 = vpop.f32.mrb[0].mxu0
        %1558 = vmatprep.mubr.bf16.mxu0 %v1154
        %1559 = vmatmul.mubr.bf16.gmra.mrb[0].mxu0 %v1153
        %v1560 = vpop.f32.mrb[0].mxu0
        %v1561 = vadd.f32 %v1196, %v1560
        %v1562 = vpop.f32.mrb[0].mxu0
        %v1563 = vpop.f32.mrb[0].mxu0
        %v1564 = vadd.f32 %v1196, %v1563
        %v1565 = vpop.f32.mrb[0].mxu0
        %1566 = vmatprep.mubr.bf16.mxu0 %v1156
        %1567 = vmatmul.mubr.bf16.gmra.mrb[0].mxu0 %v1155
        %v1568 = vpop.f32.mrb[0].mxu0
        %v1569 = vadd.f32 %v1196, %v1568
        %v1570 = vpop.f32.mrb[0].mxu0
        %v1571 = vpop.f32.mrb[0].mxu0
        %v1572 = vadd.f32 %v1196, %v1571
        %v1573 = vpop.f32.mrb[0].mxu0
        %1574 = vmatprep.mubr.bf16.mxu0 %v1158
        %1575 = vmatmul.mubr.bf16.gmra.mrb[0].mxu0 %v1157
        %v1576 = vpop.f32.mrb[0].mxu0
        %v1577 = vadd.f32 %v1196, %v1576
        %v1578 = vpop.f32.mrb[0].mxu0
        %v1579 = vpop.f32.mrb[0].mxu0
        %v1580 = vadd.f32 %v1196, %v1579
        %v1581 = vpop.f32.mrb[0].mxu0
        %1582 = vdwg.mxu0
        %v1583 = vpack.c.bf16 %v1332, %v1329
        %v1584 = vpack.c.bf16 %v1340, %v1337
        %v1585 = vpack.c.bf16 %v1348, %v1345
        %v1586 = vpack.c.bf16 %v1356, %v1353
        %v1587 = vpack.c.bf16 %v1364, %v1361
        %v1588 = vpack.c.bf16 %v1372, %v1369
        %v1589 = vpack.c.bf16 %v1380, %v1377
        %v1590 = vpack.c.bf16 %v1388, %v1385
        %v1591 = vpack.c.bf16 %v1396, %v1393
        %v1592 = vpack.c.bf16 %v1404, %v1401
        %v1593 = vpack.c.bf16 %v1412, %v1409
        %v1594 = vpack.c.bf16 %v1420, %v1417
        %v1595 = vpack.c.bf16 %v1428, %v1425
        %v1596 = vpack.c.bf16 %v1436, %v1433
        %v1597 = vpack.c.bf16 %v1444, %v1441
        %v1598 = vpack.c.bf16 %v1452, %v1449
        %v1599 = vpack.c.bf16 %v1460, %v1457
        %v1600 = vpack.c.bf16 %v1468, %v1465
        %v1601 = vpack.c.bf16 %v1476, %v1473
        %v1602 = vpack.c.bf16 %v1484, %v1481
        %v1603 = vpack.c.bf16 %v1492, %v1489
        %v1604 = vpack.c.bf16 %v1500, %v1497
        %v1605 = vpack.c.bf16 %v1508, %v1505
        %v1606 = vpack.c.bf16 %v1516, %v1513
        %v1607 = vpack.c.bf16 %v1524, %v1521
        %v1608 = vpack.c.bf16 %v1532, %v1529
        %v1609 = vpack.c.bf16 %v1540, %v1537
        %v1610 = vpack.c.bf16 %v1548, %v1545
        %v1611 = vpack.c.bf16 %v1556, %v1553
        %v1612 = vpack.c.bf16 %v1564, %v1561
        %v1613 = vpack.c.bf16 %v1572, %v1569
        %v1614 = vpack.c.bf16 %v1580, %v1577
        %v1647 = vunpack.c.l.b16 %v1583
        %v1648 = vunpack.c.h.b16 %v1583
        %v1649 = vunpack.c.l.b16 %v1584
        %v1650 = vunpack.c.h.b16 %v1584
        %v1651 = vunpack.c.l.b16 %v1585
        %v1652 = vunpack.c.h.b16 %v1585
        %v1653 = vunpack.c.l.b16 %v1586
        %v1654 = vunpack.c.h.b16 %v1586
        %v1655 = vunpack.c.l.b16 %v1587
        %v1656 = vunpack.c.h.b16 %v1587
        %v1657 = vunpack.c.l.b16 %v1588
        %v1658 = vunpack.c.h.b16 %v1588
        %v1659 = vunpack.c.l.b16 %v1589
        %v1660 = vunpack.c.h.b16 %v1589
        %v1661 = vunpack.c.l.b16 %v1590
        %v1662 = vunpack.c.h.b16 %v1590
        %v1663 = vunpack.c.l.b16 %v1591
        %v1664 = vunpack.c.h.b16 %v1591
        %v1665 = vunpack.c.l.b16 %v1592
        %v1666 = vunpack.c.h.b16 %v1592
        %v1667 = vunpack.c.l.b16 %v1593
        %v1668 = vunpack.c.h.b16 %v1593
        %v1669 = vunpack.c.l.b16 %v1594
        %v1670 = vunpack.c.h.b16 %v1594
        %v1671 = vunpack.c.l.b16 %v1595
        %v1672 = vunpack.c.h.b16 %v1595
        %v1673 = vunpack.c.l.b16 %v1596
        %v1674 = vunpack.c.h.b16 %v1596
        %v1675 = vunpack.c.l.b16 %v1597
        %v1676 = vunpack.c.h.b16 %v1597
        %v1677 = vunpack.c.l.b16 %v1598
        %v1678 = vunpack.c.h.b16 %v1598
        %v1679 = vunpack.c.l.b16 %v1599
        %v1680 = vunpack.c.h.b16 %v1599
        %v1681 = vunpack.c.l.b16 %v1600
        %v1682 = vunpack.c.h.b16 %v1600
        %v1683 = vunpack.c.l.b16 %v1601
        %v1684 = vunpack.c.h.b16 %v1601
        %v1685 = vunpack.c.l.b16 %v1602
        %v1686 = vunpack.c.h.b16 %v1602
        %v1687 = vunpack.c.l.b16 %v1603
        %v1688 = vunpack.c.h.b16 %v1603
        %v1689 = vunpack.c.l.b16 %v1604
        %v1690 = vunpack.c.h.b16 %v1604
        %v1691 = vunpack.c.l.b16 %v1605
        %v1692 = vunpack.c.h.b16 %v1605
        %v1693 = vunpack.c.l.b16 %v1606
        %v1694 = vunpack.c.h.b16 %v1606
        %v1695 = vunpack.c.l.b16 %v1607
        %v1696 = vunpack.c.h.b16 %v1607
        %v1697 = vunpack.c.l.b16 %v1608
        %v1698 = vunpack.c.h.b16 %v1608
        %v1699 = vunpack.c.l.b16 %v1609
        %v1700 = vunpack.c.h.b16 %v1609
        %v1701 = vunpack.c.l.b16 %v1610
        %v1702 = vunpack.c.h.b16 %v1610
        %v1703 = vunpack.c.l.b16 %v1611
        %v1704 = vunpack.c.h.b16 %v1611
        %v1705 = vunpack.c.l.b16 %v1612
        %v1706 = vunpack.c.h.b16 %v1612
        %v1707 = vunpack.c.l.b16 %v1613
        %v1708 = vunpack.c.h.b16 %v1613
        %v1709 = vunpack.c.l.b16 %v1614
        %v1710 = vunpack.c.h.b16 %v1614
        %v1711 = vpack.c.b16 %v1647, %v1647
        %v1712 = vpack.c.b16 %v1648, %v1648
        %v1713 = vpack.c.b16 %v1649, %v1649
        %v1714 = vpack.c.b16 %v1650, %v1650
        %v1715 = vpack.c.b16 %v1651, %v1651
        %v1716 = vpack.c.b16 %v1652, %v1652
        %v1717 = vpack.c.b16 %v1653, %v1653
        %v1718 = vpack.c.b16 %v1654, %v1654
        %v1719 = vpack.c.b16 %v1655, %v1655
        %v1720 = vpack.c.b16 %v1656, %v1656
        %v1721 = vpack.c.b16 %v1657, %v1657
        %v1722 = vpack.c.b16 %v1658, %v1658
        %v1723 = vpack.c.b16 %v1659, %v1659
        %v1724 = vpack.c.b16 %v1660, %v1660
        %v1725 = vpack.c.b16 %v1661, %v1661
        %v1726 = vpack.c.b16 %v1662, %v1662
        %v1727 = vpack.c.b16 %v1663, %v1663
        %v1728 = vpack.c.b16 %v1664, %v1664
        %v1729 = vpack.c.b16 %v1665, %v1665
        %v1730 = vpack.c.b16 %v1666, %v1666
        %v1731 = vpack.c.b16 %v1667, %v1667
        %v1732 = vpack.c.b16 %v1668, %v1668
        %v1733 = vpack.c.b16 %v1669, %v1669
        %v1734 = vpack.c.b16 %v1670, %v1670
        %v1735 = vpack.c.b16 %v1671, %v1671
        %v1736 = vpack.c.b16 %v1672, %v1672
        %v1737 = vpack.c.b16 %v1673, %v1673
        %v1738 = vpack.c.b16 %v1674, %v1674
        %v1739 = vpack.c.b16 %v1675, %v1675
        %v1740 = vpack.c.b16 %v1676, %v1676
        %v1741 = vpack.c.b16 %v1677, %v1677
        %v1742 = vpack.c.b16 %v1678, %v1678
        %v1743 = vpack.c.b16 %v1679, %v1679
        %v1744 = vpack.c.b16 %v1680, %v1680
        %v1745 = vpack.c.b16 %v1681, %v1681
        %v1746 = vpack.c.b16 %v1682, %v1682
        %v1747 = vpack.c.b16 %v1683, %v1683
        %v1748 = vpack.c.b16 %v1684, %v1684
        %v1749 = vpack.c.b16 %v1685, %v1685
        %v1750 = vpack.c.b16 %v1686, %v1686
        %v1751 = vpack.c.b16 %v1687, %v1687
        %v1752 = vpack.c.b16 %v1688, %v1688
        %v1753 = vpack.c.b16 %v1689, %v1689
        %v1754 = vpack.c.b16 %v1690, %v1690
        %v1755 = vpack.c.b16 %v1691, %v1691
        %v1756 = vpack.c.b16 %v1692, %v1692
        %v1757 = vpack.c.b16 %v1693, %v1693
        %v1758 = vpack.c.b16 %v1694, %v1694
        %v1759 = vpack.c.b16 %v1695, %v1695
        %v1760 = vpack.c.b16 %v1696, %v1696
        %v1761 = vpack.c.b16 %v1697, %v1697
        %v1762 = vpack.c.b16 %v1698, %v1698
        %v1763 = vpack.c.b16 %v1699, %v1699
        %v1764 = vpack.c.b16 %v1700, %v1700
        %v1765 = vpack.c.b16 %v1701, %v1701
        %v1766 = vpack.c.b16 %v1702, %v1702
        %v1767 = vpack.c.b16 %v1703, %v1703
        %v1768 = vpack.c.b16 %v1704, %v1704
        %v1769 = vpack.c.b16 %v1705, %v1705
        %v1770 = vpack.c.b16 %v1706, %v1706
        %v1771 = vpack.c.b16 %v1707, %v1707
        %v1772 = vpack.c.b16 %v1708, %v1708
        %v1773 = vpack.c.b16 %v1709, %v1709
        %v1774 = vpack.c.b16 %v1710, %v1710
        %1839 = vst [vmem:[%s376] sm:$0xf] %v1711
        %1840 = vst [vmem:[%s376 + $0x4] sm:$0xf] %v1712
        %1841 = vst [vmem:[%s376 + $0x8] sm:$0xf] %v1713
        %1842 = vst [vmem:[%s376 + $0xc] sm:$0xf] %v1714
        %1843 = vst [vmem:[%s376 + $0x10] sm:$0xf] %v1715
        %1844 = vst [vmem:[%s376 + $0x14] sm:$0xf] %v1716
        %1845 = vst [vmem:[%s376 + $0x18] sm:$0xf] %v1717
        %1846 = vst [vmem:[%s376 + $0x1c] sm:$0xf] %v1718
        %1847 = vst [vmem:[%s376 + $0x20] sm:$0xf] %v1719
        %1848 = vst [vmem:[%s376 + $0x24] sm:$0xf] %v1720
        %1849 = vst [vmem:[%s376 + $0x28] sm:$0xf] %v1721
        %1850 = vst [vmem:[%s376 + $0x2c] sm:$0xf] %v1722
        %1851 = vst [vmem:[%s376 + $0x30] sm:$0xf] %v1723
        %1852 = vst [vmem:[%s376 + $0x34] sm:$0xf] %v1724
        %1853 = vst [vmem:[%s376 + $0x38] sm:$0xf] %v1725
        %1854 = vst [vmem:[%s376 + $0x3c] sm:$0xf] %v1726
        %1855 = vst [vmem:[%s376 + $0x40] sm:$0xf] %v1727
        %1856 = vst [vmem:[%s376 + $0x44] sm:$0xf] %v1728
        %1857 = vst [vmem:[%s376 + $0x48] sm:$0xf] %v1729
        %1858 = vst [vmem:[%s376 + $0x4c] sm:$0xf] %v1730
        %1859 = vst [vmem:[%s376 + $0x50] sm:$0xf] %v1731
        %1860 = vst [vmem:[%s376 + $0x54] sm:$0xf] %v1732
        %1861 = vst [vmem:[%s376 + $0x58] sm:$0xf] %v1733
        %1862 = vst [vmem:[%s376 + $0x5c] sm:$0xf] %v1734
        %1863 = vst [vmem:[%s376 + $0x60] sm:$0xf] %v1735
        %1864 = vst [vmem:[%s376 + $0x64] sm:$0xf] %v1736
        %1865 = vst [vmem:[%s376 + $0x68] sm:$0xf] %v1737
        %1866 = vst [vmem:[%s376 + $0x6c] sm:$0xf] %v1738
        %1867 = vst [vmem:[%s376 + $0x70] sm:$0xf] %v1739
        %1868 = vst [vmem:[%s376 + $0x74] sm:$0xf] %v1740
        %1869 = vst [vmem:[%s376 + $0x78] sm:$0xf] %v1741
        %1870 = vst [vmem:[%s376 + $0x7c] sm:$0xf] %v1742
        %1871 = vst [vmem:[%s376 + $0x80] sm:$0xf] %v1743
        %1872 = vst [vmem:[%s376 + $0x84] sm:$0xf] %v1744
        %1873 = vst [vmem:[%s376 + $0x88] sm:$0xf] %v1745
        %1874 = vst [vmem:[%s376 + $0x8c] sm:$0xf] %v1746
        %1875 = vst [vmem:[%s376 + $0x90] sm:$0xf] %v1747
        %1876 = vst [vmem:[%s376 + $0x94] sm:$0xf] %v1748
        %1877 = vst [vmem:[%s376 + $0x98] sm:$0xf] %v1749
        %1878 = vst [vmem:[%s376 + $0x9c] sm:$0xf] %v1750
        %1879 = vst [vmem:[%s376 + $0xa0] sm:$0xf] %v1751
        %1880 = vst [vmem:[%s376 + $0xa4] sm:$0xf] %v1752
        %1881 = vst [vmem:[%s376 + $0xa8] sm:$0xf] %v1753
        %1882 = vst [vmem:[%s376 + $0xac] sm:$0xf] %v1754
        %1883 = vst [vmem:[%s376 + $0xb0] sm:$0xf] %v1755
        %1884 = vst [vmem:[%s376 + $0xb4] sm:$0xf] %v1756
        %1885 = vst [vmem:[%s376 + $0xb8] sm:$0xf] %v1757
        %1886 = vst [vmem:[%s376 + $0xbc] sm:$0xf] %v1758
        %1887 = vst [vmem:[%s376 + $0xc0] sm:$0xf] %v1759
        %1888 = vst [vmem:[%s376 + $0xc4] sm:$0xf] %v1760
        %1889 = vst [vmem:[%s376 + $0xc8] sm:$0xf] %v1761
        %1890 = vst [vmem:[%s376 + $0xcc] sm:$0xf] %v1762
        %1891 = vst [vmem:[%s376 + $0xd0] sm:$0xf] %v1763
        %1892 = vst [vmem:[%s376 + $0xd4] sm:$0xf] %v1764
        %1893 = vst [vmem:[%s376 + $0xd8] sm:$0xf] %v1765
        %1894 = vst [vmem:[%s376 + $0xdc] sm:$0xf] %v1766
        %1895 = vst [vmem:[%s376 + $0xe0] sm:$0xf] %v1767
        %1896 = vst [vmem:[%s376 + $0xe4] sm:$0xf] %v1768
        %1897 = vst [vmem:[%s376 + $0xe8] sm:$0xf] %v1769
        %1898 = vst [vmem:[%s376 + $0xec] sm:$0xf] %v1770
        %1899 = vst [vmem:[%s376 + $0xf0] sm:$0xf] %v1771
        %1900 = vst [vmem:[%s376 + $0xf4] sm:$0xf] %v1772
        %1901 = vst [vmem:[%s376 + $0xf8] sm:$0xf] %v1773
        %1902 = vst [vmem:[%s376 + $0xfc] sm:$0xf] %v1774
        %p1903 = scmp.eq.s32.totalorder %s29, 0
        // Predicated region
        $region49: #{layer_forward.2} parent=35 // pred_check
          %p1904 = pneg %p1903
        $region50: #{layer_forward.2} parent=35 // pred_check_branch
          %1906 = sbr.rel (%p1904) target = $region52
        $region51: #{layer_forward.2} parent=35 // pred_region
          %1907 = vst [vmem:[%s383] sm:$0xff] 0.0
          %1908 = vst [vmem:[%s387] sm:$0xff] 0.0
        $region52: #{layer_forward.2} parent=35 // pred_fallthru
          _
        %v1909 = vld [vmem:[%s383] sm:$0xff]
        %v1910 = vadd.f32 %v1329, %v1332
        %v1911 = vadd.f32 %v1910, %v1337
        %v1912 = vadd.f32 %v1911, %v1340
        %v1913 = vadd.f32 %v1912, %v1345
        %v1914 = vadd.f32 %v1913, %v1348
        %v1915 = vadd.f32 %v1914, %v1353
        %v1916 = vadd.f32 %v1915, %v1356
        %v1917 = vadd.f32 %v1916, %v1361
        %v1918 = vadd.f32 %v1917, %v1364
        %v1919 = vadd.f32 %v1918, %v1369
        %v1920 = vadd.f32 %v1919, %v1372
        %v1921 = vadd.f32 %v1920, %v1377
        %v1922 = vadd.f32 %v1921, %v1380
        %v1923 = vadd.f32 %v1922, %v1385
        %v1924 = vadd.f32 %v1923, %v1388
        %v1925 = vadd.f32 %v1924, %v1393
        %v1926 = vadd.f32 %v1925, %v1396
        %v1927 = vadd.f32 %v1926, %v1401
        %v1928 = vadd.f32 %v1927, %v1404
        %v1929 = vadd.f32 %v1928, %v1409
        %v1930 = vadd.f32 %v1929, %v1412
        %v1931 = vadd.f32 %v1930, %v1417
        %v1932 = vadd.f32 %v1931, %v1420
        %v1933 = vadd.f32 %v1932, %v1425
        %v1934 = vadd.f32 %v1933, %v1428
        %v1935 = vadd.f32 %v1934, %v1433
        %v1936 = vadd.f32 %v1935, %v1436
        %v1937 = vadd.f32 %v1936, %v1441
        %v1938 = vadd.f32 %v1937, %v1444
        %v1939 = vadd.f32 %v1938, %v1449
        %v1940 = vadd.f32 %v1939, %v1452
        %v1941 = vadd.f32 %v1940, %v1457
        %v1942 = vadd.f32 %v1941, %v1460
        %v1943 = vadd.f32 %v1942, %v1465
        %v1944 = vadd.f32 %v1943, %v1468
        %v1945 = vadd.f32 %v1944, %v1473
        %v1946 = vadd.f32 %v1945, %v1476
        %v1947 = vadd.f32 %v1946, %v1481
        %v1948 = vadd.f32 %v1947, %v1484
        %v1949 = vadd.f32 %v1948, %v1489
        %v1950 = vadd.f32 %v1949, %v1492
        %v1951 = vadd.f32 %v1950, %v1497
        %v1952 = vadd.f32 %v1951, %v1500
        %v1953 = vadd.f32 %v1952, %v1505
        %v1954 = vadd.f32 %v1953, %v1508
        %v1955 = vadd.f32 %v1954, %v1513
        %v1956 = vadd.f32 %v1955, %v1516
        %v1957 = vadd.f32 %v1956, %v1521
        %v1958 = vadd.f32 %v1957, %v1524
        %v1959 = vadd.f32 %v1958, %v1529
        %v1960 = vadd.f32 %v1959, %v1532
        %v1961 = vadd.f32 %v1960, %v1537
        %v1962 = vadd.f32 %v1961, %v1540
        %v1963 = vadd.f32 %v1962, %v1545
        %v1964 = vadd.f32 %v1963, %v1548
        %v1965 = vadd.f32 %v1964, %v1553
        %v1966 = vadd.f32 %v1965, %v1556
        %v1967 = vadd.f32 %v1966, %v1561
        %v1968 = vadd.f32 %v1967, %v1564
        %v1969 = vadd.f32 %v1968, %v1569
        %v1970 = vadd.f32 %v1969, %v1572
        %v1971 = vadd.f32 %v1970, %v1577
        %v1972 = vadd.f32 %v1971, %v1580
        %v1973 = vadd.f32 %v1909, %v1972
        %1974 = vst [vmem:[%s383] sm:$0xff] %v1973
        %v1975 = vld [vmem:[%s387] sm:$0xff]
        %v1976 = vmul.f32 %v1329, %v1329
        %v1977 = vmul.f32 %v1332, %v1332
        %v1978 = vmul.f32 %v1337, %v1337
        %v1979 = vmul.f32 %v1340, %v1340
        %v1980 = vmul.f32 %v1345, %v1345
        %v1981 = vmul.f32 %v1348, %v1348
        %v1982 = vmul.f32 %v1353, %v1353
        %v1983 = vmul.f32 %v1356, %v1356
        %v1984 = vmul.f32 %v1361, %v1361
        %v1985 = vmul.f32 %v1364, %v1364
        %v1986 = vmul.f32 %v1369, %v1369
        %v1987 = vmul.f32 %v1372, %v1372
        %v1988 = vmul.f32 %v1377, %v1377
        %v1989 = vmul.f32 %v1380, %v1380
        %v1990 = vmul.f32 %v1385, %v1385
        %v1991 = vmul.f32 %v1388, %v1388
        %v1992 = vmul.f32 %v1393, %v1393
        %v1993 = vmul.f32 %v1396, %v1396
        %v1994 = vmul.f32 %v1401, %v1401
        %v1995 = vmul.f32 %v1404, %v1404
        %v1996 = vmul.f32 %v1409, %v1409
        %v1997 = vmul.f32 %v1412, %v1412
        %v1998 = vmul.f32 %v1417, %v1417
        %v1999 = vmul.f32 %v1420, %v1420
        %v2000 = vmul.f32 %v1425, %v1425
        %v2001 = vmul.f32 %v1428, %v1428
        %v2002 = vmul.f32 %v1433, %v1433
        %v2003 = vmul.f32 %v1436, %v1436
        %v2004 = vmul.f32 %v1441, %v1441
        %v2005 = vmul.f32 %v1444, %v1444
        %v2006 = vmul.f32 %v1449, %v1449
        %v2007 = vmul.f32 %v1452, %v1452
        %v2008 = vmul.f32 %v1457, %v1457
        %v2009 = vmul.f32 %v1460, %v1460
        %v2010 = vmul.f32 %v1465, %v1465
        %v2011 = vmul.f32 %v1468, %v1468
        %v2012 = vmul.f32 %v1473, %v1473
        %v2013 = vmul.f32 %v1476, %v1476
        %v2014 = vmul.f32 %v1481, %v1481
        %v2015 = vmul.f32 %v1484, %v1484
        %v2016 = vmul.f32 %v1489, %v1489
        %v2017 = vmul.f32 %v1492, %v1492
        %v2018 = vmul.f32 %v1497, %v1497
        %v2019 = vmul.f32 %v1500, %v1500
        %v2020 = vmul.f32 %v1505, %v1505
        %v2021 = vmul.f32 %v1508, %v1508
        %v2022 = vmul.f32 %v1513, %v1513
        %v2023 = vmul.f32 %v1516, %v1516
        %v2024 = vmul.f32 %v1521, %v1521
        %v2025 = vmul.f32 %v1524, %v1524
        %v2026 = vmul.f32 %v1529, %v1529
        %v2027 = vmul.f32 %v1532, %v1532
        %v2028 = vmul.f32 %v1537, %v1537
        %v2029 = vmul.f32 %v1540, %v1540
        %v2030 = vmul.f32 %v1545, %v1545
        %v2031 = vmul.f32 %v1548, %v1548
        %v2032 = vmul.f32 %v1553, %v1553
        %v2033 = vmul.f32 %v1556, %v1556
        %v2034 = vmul.f32 %v1561, %v1561
        %v2035 = vmul.f32 %v1564, %v1564
        %v2036 = vmul.f32 %v1569, %v1569
        %v2037 = vmul.f32 %v1572, %v1572
        %v2038 = vmul.f32 %v1577, %v1577
        %v2039 = vmul.f32 %v1580, %v1580
        %v2040 = vadd.f32 %v1976, %v1977
        %v2041 = vadd.f32 %v2040, %v1978
        %v2042 = vadd.f32 %v2041, %v1979
        %v2043 = vadd.f32 %v2042, %v1980
        %v2044 = vadd.f32 %v2043, %v1981
        %v2045 = vadd.f32 %v2044, %v1982
        %v2046 = vadd.f32 %v2045, %v1983
        %v2047 = vadd.f32 %v2046, %v1984
        %v2048 = vadd.f32 %v2047, %v1985
        %v2049 = vadd.f32 %v2048, %v1986
        %v2050 = vadd.f32 %v2049, %v1987
        %v2051 = vadd.f32 %v2050, %v1988
        %v2052 = vadd.f32 %v2051, %v1989
        %v2053 = vadd.f32 %v2052, %v1990
        %v2054 = vadd.f32 %v2053, %v1991
        %v2055 = vadd.f32 %v2054, %v1992
        %v2056 = vadd.f32 %v2055, %v1993
        %v2057 = vadd.f32 %v2056, %v1994
        %v2058 = vadd.f32 %v2057, %v1995
        %v2059 = vadd.f32 %v2058, %v1996
        %v2060 = vadd.f32 %v2059, %v1997
        %v2061 = vadd.f32 %v2060, %v1998
        %v2062 = vadd.f32 %v2061, %v1999
        %v2063 = vadd.f32 %v2062, %v2000
        %v2064 = vadd.f32 %v2063, %v2001
        %v2065 = vadd.f32 %v2064, %v2002
        %v2066 = vadd.f32 %v2065, %v2003
        %v2067 = vadd.f32 %v2066, %v2004
        %v2068 = vadd.f32 %v2067, %v2005
        %v2069 = vadd.f32 %v2068, %v2006
        %v2070 = vadd.f32 %v2069, %v2007
        %v2071 = vadd.f32 %v2070, %v2008
        %v2072 = vadd.f32 %v2071, %v2009
        %v2073 = vadd.f32 %v2072, %v2010
        %v2074 = vadd.f32 %v2073, %v2011
        %v2075 = vadd.f32 %v2074, %v2012
        %v2076 = vadd.f32 %v2075, %v2013
        %v2077 = vadd.f32 %v2076, %v2014
        %v2078 = vadd.f32 %v2077, %v2015
        %v2079 = vadd.f32 %v2078, %v2016
        %v2080 = vadd.f32 %v2079, %v2017
        %v2081 = vadd.f32 %v2080, %v2018
        %v2082 = vadd.f32 %v2081, %v2019
        %v2083 = vadd.f32 %v2082, %v2020
        %v2084 = vadd.f32 %v2083, %v2021
        %v2085 = vadd.f32 %v2084, %v2022
        %v2086 = vadd.f32 %v2085, %v2023
        %v2087 = vadd.f32 %v2086, %v2024
        %v2088 = vadd.f32 %v2087, %v2025
        %v2089 = vadd.f32 %v2088, %v2026
        %v2090 = vadd.f32 %v2089, %v2027
        %v2091 = vadd.f32 %v2090, %v2028
        %v2092 = vadd.f32 %v2091, %v2029
        %v2093 = vadd.f32 %v2092, %v2030
        %v2094 = vadd.f32 %v2093, %v2031
        %v2095 = vadd.f32 %v2094, %v2032
        %v2096 = vadd.f32 %v2095, %v2033
        %v2097 = vadd.f32 %v2096, %v2034
        %v2098 = vadd.f32 %v2097, %v2035
        %v2099 = vadd.f32 %v2098, %v2036
        %v2100 = vadd.f32 %v2099, %v2037
        %v2101 = vadd.f32 %v2100, %v2038
        %v2102 = vadd.f32 %v2101, %v2039
        %v2103 = vadd.f32 %v1975, %v2102
        %2104 = vst [vmem:[%s387] sm:$0xff] %v2103
        %s2105 = smul.u32 %s28, 2
        %s2106 = sadd.s32 %s2105, %s29
        %s2107 = smul.u32 64, %s2106
        %p2108 = scmp.lt.s32.totalorder %s2107, 255
        %s2109 = scalar_select %p2108, %s2107, 255
        %s2110 = smul.addr %s2109, 4
        %s2111 = scalar_lea.vmem %s4, %s2110
        %p2112 = scmp.lt.s32.totalorder %s28, 1
        %s2113 = scalar_select %p2112, %s28, 1
        %s2114 = smul.addr %s2113, 8
        %s2115 = scalar_lea.vmem %s5, %s2114
        %p2116 = scmp.lt.s32.totalorder %s28, 1
        %s2117 = scalar_select %p2116, %s28, 1
        %s2118 = smul.addr %s2117, 8
        %s2119 = scalar_lea.vmem %s6, %s2118
        // Predicated region
        $region53: #{layer_forward.2} parent=35 // pred_check
          %p2120 = pneg %p160
        $region54: #{layer_forward.2} parent=35 // pred_check_branch
          %2122 = sbr.rel (%p2120) target = $region56
        $region55: #{layer_forward.2} parent=35 // pred_region
          %s2123 = smul.u32 %s28, 2
          %s2124 = sadd.s32 %s2123, %s29
          %s2125 = smul.u32 64, %s2124
        $region56: #{layer_forward.2} parent=35 // pred_fallthru
          _
        // Predicated region
        $region57: #{layer_forward.2} parent=35 // pred_check
          %p2126 = pneg %p186
        $region58: #{layer_forward.2} parent=35 // pred_check_branch
          %2128 = sbr.rel (%p2126) target = $region60
        $region59: #{layer_forward.2} parent=35 // pred_region
          _
        $region60: #{layer_forward.2} parent=35 // pred_fallthru
          _
        // Predicated region
        $region61: #{layer_forward.2} parent=35 // pred_check
          %p2129 = pneg %p212
        $region62: #{layer_forward.2} parent=35 // pred_check_branch
          %2131 = sbr.rel (%p2129) target = $region64
        $region63: #{layer_forward.2} parent=35 // pred_region
          _
        $region64: #{layer_forward.2} parent=35 // pred_fallthru
          _
      $region36: #{layer_forward.2} parent=5 // pred_fallthru
        _
      %p2132 = scmp.le.s32.totalorder 2, %s19
      // Predicated region
      $region65: #{layer_forward.2} parent=5 // pred_check
        %p2133 = pneg %p2132
      $region66: #{layer_forward.2} parent=5 // pred_check_branch
        %2135 = sbr.rel (%p2133) target = $region68
      $region67: #{layer_forward.2} parent=5 // pred_region
        %s2136 = ssub.s32 %s19, 2
        // Predicated region
        $region69: #{layer_forward.2} parent=67 // pred_check
          %p2137 = pneg %p166
        $region70: #{layer_forward.2} parent=67 // pred_check_branch
          %2139 = sbr.rel (%p2137) target = $region72
        $region71: #{layer_forward.2} parent=67 // pred_region
          %s2140 = smul.u32 %s30, 2
          %s2141 = sadd.s32 %s2140, %s31
          %s2142 = smul.u32 64, %s2141
          %p2143 = scmp.lt.s32.totalorder %s2142, 255
          %s2144 = scalar_select %p2143, %s2142, 255
          %s2145 = smul.addr %s2144, 4
          %s2146 = scalar_lea.vmem %s4, %s2145
        $region72: #{layer_forward.2} parent=67 // pred_fallthru
          _
        // Predicated region
        $region73: #{layer_forward.2} parent=67 // pred_check
          %p2147 = pneg %p192
        $region74: #{layer_forward.2} parent=67 // pred_check_branch
          %2149 = sbr.rel (%p2147) target = $region76
        $region75: #{layer_forward.2} parent=67 // pred_region
          %p2150 = scmp.lt.s32.totalorder %s30, 1
          %s2151 = scalar_select %p2150, %s30, 1
          %s2152 = smul.addr %s2151, 8
          %s2153 = scalar_lea.vmem %s5, %s2152
        $region76: #{layer_forward.2} parent=67 // pred_fallthru
          _
        // Predicated region
        $region77: #{layer_forward.2} parent=67 // pred_check
          %p2154 = pneg %p218
        $region78: #{layer_forward.2} parent=67 // pred_check_branch
          %2156 = sbr.rel (%p2154) target = $region80
        $region79: #{layer_forward.2} parent=67 // pred_region
          %p2157 = scmp.lt.s32.totalorder %s30, 1
          %s2158 = scalar_select %p2157, %s30, 1
          %s2159 = smul.addr %s2158, 8
          %s2160 = scalar_lea.vmem %s6, %s2159
        $region80: #{layer_forward.2} parent=67 // pred_fallthru
          _
      $region68: #{layer_forward.2} parent=5 // pred_fallthru
        _
    $region6: #{layer_forward.2} parent=1 // loop_footer
      %s23 = sadd.s32 1, %s19
    $region7: #{layer_forward.2} parent=1 // loop_footer_branch
      %18 = sbr.rel target = $region3
    $region8: #{layer_forward.2} parent=1 // loop_exit
      _
    %2161 = vsyncpa [#allocation3], 1
    %s2162 = scalar_lea.sflag [#allocation3], 1
    %2163 = vsyncpa %s2162, 1
    %2164 = vsyncpa [#allocation5], 1
    %s2165 = scalar_lea.sflag [#allocation5], 1
    %2166 = vsyncpa %s2165, 1

</llo_original>
